<compile_context>
chip_gen: v7x
topology: tpu7x:2x2x1
jax: 0.10.0
libtpu: 0.0.40
codegen_flags: <defaults>
</compile_context>

<pallas_src>
import jax
import jax.numpy as jnp
from jax import lax
from jax.experimental import pallas as pl
from jax.experimental.pallas import tpu as pltpu

# --- small, module-consistent sizes --------------------------------------
B = 2               # batch (pad to 8 in deployment: same cycles, 4x throughput)
T = 8               # sequence length (feature frames)
FRAME = 16          # raw samples per frame (stub frontend)
DIM = 32            # dim_extractor (torch default 1024, scaled down)
HID = DIM // 2      # per-direction LSTM hidden size (torch: dim_extractor // 2)
D2 = 2 * HID        # packed hidden width (fwd | bwd) == DIM
G = 8 * HID         # packed gate width: 4 gates x 2 directions = 128 lanes


# --- weight slab layout (row offsets, all multiples of 8) -----------------
def _r8(n):
    return ((n + 7) // 8) * 8

OFF_FEW = 0                         # (FRAME, DIM)   feature-extractor weight
OFF_FEB = OFF_FEW + _r8(FRAME)      # (1, DIM)       feature-extractor bias
OFF_WIH0 = OFF_FEB + 8              # (DIM, G)       layer0 input weights
OFF_WHH0 = OFF_WIH0 + _r8(DIM)      # (2H, G)        layer0 recurrent weights
OFF_B0 = OFF_WHH0 + _r8(D2)         # (1, G)         layer0 bias (b_ih + b_hh)
OFF_WIH1 = OFF_B0 + 8               # (2H, G)        layer1 input weights
OFF_WHH1 = OFF_WIH1 + _r8(D2)       # (2H, G)        layer1 recurrent weights
OFF_B1 = OFF_WHH1 + _r8(D2)         # (1, G)         layer1 bias
OFF_PW1 = OFF_B1 + 8                # (DIM, 2*DIM)   PoolAttFF linear1
OFF_PB1 = OFF_PW1 + _r8(DIM)        # (1, 2*DIM)
OFF_PW2 = OFF_PB1 + 8               # (1, 2*DIM)     PoolAttFF linear2 (row)
OFF_PW3 = OFF_PW2 + 8               # (1, DIM)       PoolAttFF linear3 (row)
OFF_SCAL = OFF_PW3 + 8              # (1, 2)         [pb2, pb3]
SLAB_ROWS = OFF_SCAL + 8


def _vmem():
    return pl.BlockSpec(memory_space=pltpu.MemorySpace.VMEM)


def _sig(x):
    # explicit sigmoid (exp on EUP + div) -- guaranteed Mosaic lowering
    return 1.0 / (1.0 + jnp.exp(-x))


# --------------------------------------------------------------------------
# Fused kernel: feature stub -> 2x bidirectional LSTM -> PoolAttFF -> sigmoid
# --------------------------------------------------------------------------
def _fused_kernel(x_ref, w_ref, out_ref, feats_ref, zbuf, hbuf):
    # ---- unpack the single coalesced weight slab (static slices) ----------
    fe_w = w_ref[OFF_FEW:OFF_FEW + FRAME, 0:DIM]
    fe_b = w_ref[OFF_FEB:OFF_FEB + 1, 0:DIM]
    wih0 = w_ref[OFF_WIH0:OFF_WIH0 + DIM, :]
    whh0 = w_ref[OFF_WHH0:OFF_WHH0 + D2, :]
    b0 = w_ref[OFF_B0:OFF_B0 + 1, :]
    wih1 = w_ref[OFF_WIH1:OFF_WIH1 + D2, :]
    whh1 = w_ref[OFF_WHH1:OFF_WHH1 + D2, :]
    b1 = w_ref[OFF_B1:OFF_B1 + 1, :]
    pw1 = w_ref[OFF_PW1:OFF_PW1 + DIM, 0:2 * DIM]
    pb1 = w_ref[OFF_PB1:OFF_PB1 + 1, 0:2 * DIM]
    pw2 = w_ref[OFF_PW2:OFF_PW2 + 1, 0:2 * DIM]
    pw3 = w_ref[OFF_PW3:OFF_PW3 + 1, 0:DIM]
    scal = w_ref[OFF_SCAL:OFF_SCAL + 1, 0:2]
    pb2 = scal[:, 0:1]
    pb3 = scal[:, 1:2]

    # fwd-direction gate-column mask (interleaved HID-wide blocks, fwd = even
    # block); HID is a power of two so `lane & HID == 0` <=> even block.
    lane = lax.broadcasted_iota(jnp.int32, (1, G), 1)
    fwd_cols = (lane & HID) == 0

    # ---- feature-extractor stub (frozen linear framing frontend) ----------
    # x_ref is already time-major flat: row (t*B + b) = frame t of sample b.
    feats = jnp.dot(x_ref[...], fe_w, preferred_element_type=jnp.float32) + fe_b
    feats_ref[...] = feats                               # (T*B, DIM) time-major

    def run_layer(z, whh):
        """One bidirectional LSTM layer.
        z:   (T*B, G) hoisted input projection (bias included), time-major.
        Returns the time-aligned output sequence (T*B, 2H)."""
        # (1) direction select + time reversal, hoisted OUT of the recurrence.
        #     zbuf[s] = fwd gate cols of z[s] | bwd gate cols of z[T-1-s].
        for t in range(T):
            zf = z[t * B:(t + 1) * B, :]
            zb = z[(T - 1 - t) * B:(T - t) * B, :]
            zbuf[t * B:(t + 1) * B, :] = jnp.where(fwd_cols, zf, zb)

        # (2) serial recurrence, fully unrolled (T=8, static).
        def step(s, carry):
            h, c = carry                                 # (B, 2H) packed fwd|bwd
            row = pl.multiple_of(s * B, B)
            gates = zbuf[pl.ds(row, B), :] + jnp.dot(
                h, whh, preferred_element_type=jnp.float32)      # (B, G)
            sg = _sig(gates)                             # full 128-lane EUP pass
            tg = jnp.tanh(gates)                         # full 128-lane EUP pass
            i = sg[:, 0 * D2:1 * D2]
            f = sg[:, 1 * D2:2 * D2]
            g = tg[:, 2 * D2:3 * D2]
            o = sg[:, 3 * D2:4 * D2]
            c = f * c + i * g
            h = o * jnp.tanh(c)
            hbuf[pl.ds(row, B), :] = h                   # one full packed store
            return (h, c)

        zero = jnp.zeros((B, D2), jnp.float32)
        lax.fori_loop(0, T, step, (zero, zero), unroll=True)

        # (3) time-align the backward half outside the loop: processed step s
        #     of the bwd direction corresponds to real time T-1-s.
        raw = hbuf[...]                                  # (T*B, 2H) snapshot
        fwd_part = raw[:, 0:HID]                         # already time-aligned
        bwd_part = jnp.concatenate(
            [raw[(T - 1 - t) * B:(T - t) * B, HID:D2] for t in range(T)],
            axis=0)
        return jnp.concatenate([fwd_part, bwd_part], axis=-1)   # (T*B, 2H)

    # ---- layer 0: hoisted input projection for all T at once --------------
    z0 = jnp.dot(feats, wih0, preferred_element_type=jnp.float32) + b0
    seq0 = run_layer(z0, whh0)

    # ---- layer 1 (inter-layer dropout(0.1) is identity at inference) ------
    z1 = jnp.dot(seq0, wih1, preferred_element_type=jnp.float32) + b1
    seq1 = run_layer(z1, whh1)                           # (T*B, 2H == DIM)

    # ---- PoolAttFF + sigmoid (dropout identity at inference) --------------
    h1 = jnp.maximum(
        jnp.dot(seq1, pw1, preferred_element_type=jnp.float32) + pb1, 0.0)
    # attention logits: VPU multiply + lane reduction (avoids an N=1 matmul)
    att = jnp.sum(h1 * pw2, axis=-1, keepdims=True) + pb2       # (T*B, 1)

    # exact softmax over time + weighted pooling, statically unrolled over T
    m = att[0:B, :]
    for t in range(1, T):
        m = jnp.maximum(m, att[t * B:(t + 1) * B, :])            # (B, 1)
    num = jnp.zeros((B, DIM), jnp.float32)
    den = jnp.zeros((B, 1), jnp.float32)
    for t in range(T):
        e_t = jnp.exp(att[t * B:(t + 1) * B, :] - m)             # (B, 1)
        den = den + e_t
        num = num + e_t * seq1[t * B:(t + 1) * B, :]             # (B, DIM)
    pooled = num / den                                           # (B, DIM)

    y = jnp.sum(pooled * pw3, axis=-1, keepdims=True) + pb3      # (B, 1)
    out_ref[...] = _sig(y)


# --------------------------------------------------------------------------
# Parameter construction (deterministic, synthetic) + slab packing
# --------------------------------------------------------------------------
def init_params(key):
    keys = iter(jax.random.split(key, 32))

    def nrm(shape, scale=0.1):
        return scale * jax.random.normal(next(keys), shape, jnp.float32)

    def pack_cols(wf, wb):
        # interleave per-gate blocks: [i_f i_b f_f f_b g_f g_b o_f o_b]
        blocks = []
        for k in range(4):
            blocks.append(wf[:, k * HID:(k + 1) * HID])
            blocks.append(wb[:, k * HID:(k + 1) * HID])
        return jnp.concatenate(blocks, axis=1)

    def pack_whh(whh_f, whh_b):
        # rows 0:H (h_fwd) feed only *_f columns, rows H:2H (h_bwd) only *_b
        # columns -> one lane-dense (2H, 8H) matmul per step.  At real XLSR
        # dims, de-pad this into two dense per-direction matmuls instead.
        zeros = jnp.zeros((HID, HID), jnp.float32)
        top, bot = [], []
        for k in range(4):
            top += [whh_f[:, k * HID:(k + 1) * HID], zeros]
            bot += [zeros, whh_b[:, k * HID:(k + 1) * HID]]
        return jnp.concatenate(
            [jnp.concatenate(top, axis=1), jnp.concatenate(bot, axis=1)],
            axis=0)

    fe_w, fe_b = nrm((FRAME, DIM)), nrm((1, DIM))
    lstm = []
    for layer in range(2):
        din = DIM if layer == 0 else D2
        wih_f, wih_b = nrm((din, 4 * HID)), nrm((din, 4 * HID))   # W_ih^T
        whh_f, whh_b = nrm((HID, 4 * HID)), nrm((HID, 4 * HID))   # W_hh^T
        b_f, b_b = nrm((1, 4 * HID)), nrm((1, 4 * HID))           # b_ih + b_hh
        lstm.append((pack_cols(wih_f, wih_b),
                     pack_whh(whh_f, whh_b),
                     pack_cols(b_f, b_b)))
    pw1, pb1 = nrm((DIM, 2 * DIM)), nrm((1, 2 * DIM))
    pw2, pb2 = nrm((1, 2 * DIM)), nrm((1, 1))
    pw3, pb3 = nrm((1, DIM)), nrm((1, 1))

    # NOTE: at real XLSR dims (DIM=1024) cast weights to bf16, de-pad whh and
    # stream layer-1 weights from HBM (make_async_copy overlapped with the
    # layer-0 recurrence) -- all-resident f32 would not fit v7x's 64 MiB VMEM.
    slab = jnp.zeros((SLAB_ROWS, G), jnp.float32)

    def put(s, off, m):
        return s.at[off:off + m.shape[0], 0:m.shape[1]].set(m)

    slab = put(slab, OFF_FEW, fe_w)
    slab = put(slab, OFF_FEB, fe_b)
    slab = put(slab, OFF_WIH0, lstm[0][0])
    slab = put(slab, OFF_WHH0, lstm[0][1])
    slab = put(slab, OFF_B0, lstm[0][2])
    slab = put(slab, OFF_WIH1, lstm[1][0])
    slab = put(slab, OFF_WHH1, lstm[1][1])
    slab = put(slab, OFF_B1, lstm[1][2])
    slab = put(slab, OFF_PW1, pw1)
    slab = put(slab, OFF_PB1, pb1)
    slab = put(slab, OFF_PW2, pw2)
    slab = put(slab, OFF_PW3, pw3)
    slab = put(slab, OFF_SCAL, jnp.concatenate([pb2, pb3], axis=1))
    return {"slab": slab}


# --------------------------------------------------------------------------
# Full forward pass (single fused pallas_call, 2 input DMAs total)
# --------------------------------------------------------------------------
@jax.jit
def xlsr_metric_predictor_full(x, params):
    # TODO(synk): the real Wav2Vec2Wrapper_no_helper (pretrained XLSR
    # transformer) has no clean in-script Pallas equivalent; it is replaced by
    # a frozen deterministic linear framing frontend producing
    # last_hidden_state of shape (B, T, dim_extractor).

    # time-major flat layout (row = t*B + b), done once in XLA outside the
    # kernel so the kernel never transposes.
    x_tm = x.reshape(B, T, FRAME).transpose(1, 0, 2).reshape(T * B, FRAME)

    out, feats_tm = pl.pallas_call(
        _fused_kernel,
        out_shape=(jax.ShapeDtypeStruct((B, 1), jnp.float32),
                   jax.ShapeDtypeStruct((T * B, DIM), jnp.float32)),
        in_specs=[_vmem(), _vmem()],
        out_specs=(_vmem(), _vmem()),
        scratch_shapes=[
            pltpu.VMEM((T * B, G), jnp.float32),   # direction-selected gate inputs
            pltpu.VMEM((T * B, D2), jnp.float32),  # per-layer packed output seq
        ],
        # NOTE(v7x): for 2-TensorCore chips add a leading "parallel" batch grid
        # axis (one utterance per grid point) to use the second core.
    )(x_tm, params["slab"])

    out_feats = feats_tm.reshape(T, B, DIM).transpose(1, 0, 2)   # (B, T, DIM)
    return out, out_feats


if __name__ == "__main__":
    key = jax.random.PRNGKey(0)
    pkey, xkey = jax.random.split(key)
    params = init_params(pkey)
    x = jax.random.normal(xkey, (B, T * FRAME), jnp.float32)  # raw waveform

    out, out_feats = xlsr_metric_predictor_full(x, params)
    jax.block_until_ready((out, out_feats))

    assert out.shape == (B, 1), out.shape
    assert out_feats.shape == (B, T, DIM), out_feats.shape
    assert bool(jnp.all(jnp.isfinite(out)))
    assert bool(jnp.all((out >= 0.0) & (out <= 1.0)))
    assert bool(jnp.all(jnp.isfinite(out_feats)))
    print("KERNEL_OK")
</pallas_src>

<mosaic_0001>
module attributes {stable_mosaic.version = 11 : i64} {
  func.func @_fused_kernel(%arg0: memref<16x16xf32, #tpu.memory_space<vmem>>, %arg1: memref<232x128xf32, #tpu.memory_space<vmem>>, %arg2: memref<2x1xf32, #tpu.memory_space<vmem>>, %arg3: memref<16x32xf32, #tpu.memory_space<vmem>>, %arg4: memref<16x128xf32, #tpu.memory_space<vmem>>, %arg5: memref<16x32xf32, #tpu.memory_space<vmem>>) attributes {dimension_semantics = [], scalar_prefetch = 0 : i64, scratch_operands = 2 : i64, tpu.core_type = #tpu.core_type<tc>} {
    %c0 = arith.constant 0 : index
    %c0_0 = arith.constant 0 : index
    %0 = vector.load %arg1[%c0, %c0_0] : memref<232x128xf32, #tpu.memory_space<vmem>>, vector<16x32xf32>
    %c16 = arith.constant 16 : index
    %c0_1 = arith.constant 0 : index
    %1 = vector.load %arg1[%c16, %c0_1] : memref<232x128xf32, #tpu.memory_space<vmem>>, vector<1x32xf32>
    %c24 = arith.constant 24 : index
    %c0_2 = arith.constant 0 : index
    %2 = vector.load %arg1[%c24, %c0_2] : memref<232x128xf32, #tpu.memory_space<vmem>>, vector<32x128xf32>
    %c56 = arith.constant 56 : index
    %c0_3 = arith.constant 0 : index
    %3 = vector.load %arg1[%c56, %c0_3] : memref<232x128xf32, #tpu.memory_space<vmem>>, vector<32x128xf32>
    %c88 = arith.constant 88 : index
    %c0_4 = arith.constant 0 : index
    %4 = vector.load %arg1[%c88, %c0_4] : memref<232x128xf32, #tpu.memory_space<vmem>>, vector<1x128xf32>
    %c96 = arith.constant 96 : index
    %c0_5 = arith.constant 0 : index
    %5 = vector.load %arg1[%c96, %c0_5] : memref<232x128xf32, #tpu.memory_space<vmem>>, vector<32x128xf32>
    %c128 = arith.constant 128 : index
    %c0_6 = arith.constant 0 : index
    %6 = vector.load %arg1[%c128, %c0_6] : memref<232x128xf32, #tpu.memory_space<vmem>>, vector<32x128xf32>
    %c160 = arith.constant 160 : index
    %c0_7 = arith.constant 0 : index
    %7 = vector.load %arg1[%c160, %c0_7] : memref<232x128xf32, #tpu.memory_space<vmem>>, vector<1x128xf32>
    %c168 = arith.constant 168 : index
    %c0_8 = arith.constant 0 : index
    %8 = vector.load %arg1[%c168, %c0_8] : memref<232x128xf32, #tpu.memory_space<vmem>>, vector<32x64xf32>
    %c200 = arith.constant 200 : index
    %c0_9 = arith.constant 0 : index
    %9 = vector.load %arg1[%c200, %c0_9] : memref<232x128xf32, #tpu.memory_space<vmem>>, vector<1x64xf32>
    %c208 = arith.constant 208 : index
    %c0_10 = arith.constant 0 : index
    %10 = vector.load %arg1[%c208, %c0_10] : memref<232x128xf32, #tpu.memory_space<vmem>>, vector<1x64xf32>
    %c216 = arith.constant 216 : index
    %c0_11 = arith.constant 0 : index
    %11 = vector.load %arg1[%c216, %c0_11] : memref<232x128xf32, #tpu.memory_space<vmem>>, vector<1x32xf32>
    %c224 = arith.constant 224 : index
    %c0_12 = arith.constant 0 : index
    %12 = vector.load %arg1[%c224, %c0_12] : memref<232x128xf32, #tpu.memory_space<vmem>>, vector<1x2xf32>
    %13 = vector.extract_strided_slice %12 {offsets = [0, 0], sizes = [1, 1], strides = [1, 1]} : vector<1x2xf32> to vector<1x1xf32>
    %14 = vector.extract_strided_slice %12 {offsets = [0, 1], sizes = [1, 1], strides = [1, 1]} : vector<1x2xf32> to vector<1x1xf32>
    %15 = tpu.iota {dimensions = array<i32: 1>} : vector<1x128xi32>
    %c16_i32 = arith.constant 16 : i32
    %16 = vector.broadcast %c16_i32 : i32 to vector<1x128xi32>
    %17 = arith.andi %15, %16 : vector<1x128xi32>
    %c0_i32 = arith.constant 0 : i32
    %18 = vector.broadcast %c0_i32 : i32 to vector<1x128xi32>
    %19 = arith.cmpi eq, %17, %18 : vector<1x128xi32>
    %c0_13 = arith.constant 0 : index
    %c0_14 = arith.constant 0 : index
    %20 = vector.load %arg0[%c0_13, %c0_14] : memref<16x16xf32, #tpu.memory_space<vmem>>, vector<16x16xf32>
    %cst = arith.constant dense<0.000000e+00> : vector<16x32xf32>
    %21 = tpu.matmul %20, %0, %cst {dimension_numbers = #tpu.dot_dimension_numbers<[1], [0], [0], [1], [0, 0, 1, 1], [], []>} : vector<16x16xf32>, vector<16x32xf32>, vector<16x32xf32> -> vector<16x32xf32>
    %22 = vector.broadcast %1 : vector<1x32xf32> to vector<16x32xf32>
    %23 = arith.addf %21, %22 : vector<16x32xf32>
    %c0_15 = arith.constant 0 : index
    %c0_16 = arith.constant 0 : index
    %24 = vector.load %arg3[%c0_15, %c0_16] : memref<16x32xf32, #tpu.memory_space<vmem>>, vector<16x32xf32>
    tpu.vector_store %arg3[%c0_15, %c0_16], %23 {strides = array<i32>} : memref<16x32xf32, #tpu.memory_space<vmem>>, vector<16x32xf32>,
    %cst_17 = arith.constant dense<0.000000e+00> : vector<16x128xf32>
    %25 = tpu.matmul %23, %2, %cst_17 {dimension_numbers = #tpu.dot_dimension_numbers<[1], [0], [0], [1], [0, 0, 1, 1], [], []>} : vector<16x32xf32>, vector<32x128xf32>, vector<16x128xf32> -> vector<16x128xf32>
    %26 = vector.broadcast %4 : vector<1x128xf32> to vector<16x128xf32>
    %27 = arith.addf %25, %26 : vector<16x128xf32>
    %28 = vector.extract_strided_slice %27 {offsets = [0, 0], sizes = [2, 128], strides = [1, 1]} : vector<16x128xf32> to vector<2x128xf32>
    %29 = vector.extract_strided_slice %27 {offsets = [14, 0], sizes = [2, 128], strides = [1, 1]} : vector<16x128xf32> to vector<2x128xf32>
    %30 = vector.shape_cast %19 : vector<1x128xi1> to vector<1x128xi1>
    %31 = vector.broadcast %30 : vector<1x128xi1> to vector<2x128xi1>
    %32 = arith.select %31, %28, %29 : vector<2x128xi1>, vector<2x128xf32>
    %c0_18 = arith.constant 0 : index
    %c0_19 = arith.constant 0 : index
    %33 = vector.load %arg4[%c0_18, %c0_19] : memref<16x128xf32, #tpu.memory_space<vmem>>, vector<2x128xf32>
    tpu.vector_store %arg4[%c0_18, %c0_19], %32 {strides = array<i32>} : memref<16x128xf32, #tpu.memory_space<vmem>>, vector<2x128xf32>,
    %34 = vector.extract_strided_slice %27 {offsets = [2, 0], sizes = [2, 128], strides = [1, 1]} : vector<16x128xf32> to vector<2x128xf32>
    %35 = vector.extract_strided_slice %27 {offsets = [12, 0], sizes = [2, 128], strides = [1, 1]} : vector<16x128xf32> to vector<2x128xf32>
    %36 = vector.shape_cast %19 : vector<1x128xi1> to vector<1x128xi1>
    %37 = vector.broadcast %36 : vector<1x128xi1> to vector<2x128xi1>
    %38 = arith.select %37, %34, %35 : vector<2x128xi1>, vector<2x128xf32>
    %c2 = arith.constant 2 : index
    %c0_20 = arith.constant 0 : index
    %39 = vector.load %arg4[%c2, %c0_20] : memref<16x128xf32, #tpu.memory_space<vmem>>, vector<2x128xf32>
    tpu.vector_store %arg4[%c2, %c0_20], %38 {strides = array<i32>} : memref<16x128xf32, #tpu.memory_space<vmem>>, vector<2x128xf32>,
    %40 = vector.extract_strided_slice %27 {offsets = [4, 0], sizes = [2, 128], strides = [1, 1]} : vector<16x128xf32> to vector<2x128xf32>
    %41 = vector.extract_strided_slice %27 {offsets = [10, 0], sizes = [2, 128], strides = [1, 1]} : vector<16x128xf32> to vector<2x128xf32>
    %42 = vector.shape_cast %19 : vector<1x128xi1> to vector<1x128xi1>
    %43 = vector.broadcast %42 : vector<1x128xi1> to vector<2x128xi1>
    %44 = arith.select %43, %40, %41 : vector<2x128xi1>, vector<2x128xf32>
    %c4 = arith.constant 4 : index
    %c0_21 = arith.constant 0 : index
    %45 = vector.load %arg4[%c4, %c0_21] : memref<16x128xf32, #tpu.memory_space<vmem>>, vector<2x128xf32>
    tpu.vector_store %arg4[%c4, %c0_21], %44 {strides = array<i32>} : memref<16x128xf32, #tpu.memory_space<vmem>>, vector<2x128xf32>,
    %46 = vector.extract_strided_slice %27 {offsets = [6, 0], sizes = [2, 128], strides = [1, 1]} : vector<16x128xf32> to vector<2x128xf32>
    %47 = vector.extract_strided_slice %27 {offsets = [8, 0], sizes = [2, 128], strides = [1, 1]} : vector<16x128xf32> to vector<2x128xf32>
    %48 = vector.shape_cast %19 : vector<1x128xi1> to vector<1x128xi1>
    %49 = vector.broadcast %48 : vector<1x128xi1> to vector<2x128xi1>
    %50 = arith.select %49, %46, %47 : vector<2x128xi1>, vector<2x128xf32>
    %c6 = arith.constant 6 : index
    %c0_22 = arith.constant 0 : index
    %51 = vector.load %arg4[%c6, %c0_22] : memref<16x128xf32, #tpu.memory_space<vmem>>, vector<2x128xf32>
    tpu.vector_store %arg4[%c6, %c0_22], %50 {strides = array<i32>} : memref<16x128xf32, #tpu.memory_space<vmem>>, vector<2x128xf32>,
    %52 = vector.extract_strided_slice %27 {offsets = [8, 0], sizes = [2, 128], strides = [1, 1]} : vector<16x128xf32> to vector<2x128xf32>
    %53 = vector.extract_strided_slice %27 {offsets = [6, 0], sizes = [2, 128], strides = [1, 1]} : vector<16x128xf32> to vector<2x128xf32>
    %54 = vector.shape_cast %19 : vector<1x128xi1> to vector<1x128xi1>
    %55 = vector.broadcast %54 : vector<1x128xi1> to vector<2x128xi1>
    %56 = arith.select %55, %52, %53 : vector<2x128xi1>, vector<2x128xf32>
    %c8 = arith.constant 8 : index
    %c0_23 = arith.constant 0 : index
    %57 = vector.load %arg4[%c8, %c0_23] : memref<16x128xf32, #tpu.memory_space<vmem>>, vector<2x128xf32>
    tpu.vector_store %arg4[%c8, %c0_23], %56 {strides = array<i32>} : memref<16x128xf32, #tpu.memory_space<vmem>>, vector<2x128xf32>,
    %58 = vector.extract_strided_slice %27 {offsets = [10, 0], sizes = [2, 128], strides = [1, 1]} : vector<16x128xf32> to vector<2x128xf32>
    %59 = vector.extract_strided_slice %27 {offsets = [4, 0], sizes = [2, 128], strides = [1, 1]} : vector<16x128xf32> to vector<2x128xf32>
    %60 = vector.shape_cast %19 : vector<1x128xi1> to vector<1x128xi1>
    %61 = vector.broadcast %60 : vector<1x128xi1> to vector<2x128xi1>
    %62 = arith.select %61, %58, %59 : vector<2x128xi1>, vector<2x128xf32>
    %c10 = arith.constant 10 : index
    %c0_24 = arith.constant 0 : index
    %63 = vector.load %arg4[%c10, %c0_24] : memref<16x128xf32, #tpu.memory_space<vmem>>, vector<2x128xf32>
    tpu.vector_store %arg4[%c10, %c0_24], %62 {strides = array<i32>} : memref<16x128xf32, #tpu.memory_space<vmem>>, vector<2x128xf32>,
    %64 = vector.extract_strided_slice %27 {offsets = [12, 0], sizes = [2, 128], strides = [1, 1]} : vector<16x128xf32> to vector<2x128xf32>
    %65 = vector.extract_strided_slice %27 {offsets = [2, 0], sizes = [2, 128], strides = [1, 1]} : vector<16x128xf32> to vector<2x128xf32>
    %66 = vector.shape_cast %19 : vector<1x128xi1> to vector<1x128xi1>
    %67 = vector.broadcast %66 : vector<1x128xi1> to vector<2x128xi1>
    %68 = arith.select %67, %64, %65 : vector<2x128xi1>, vector<2x128xf32>
    %c12 = arith.constant 12 : index
    %c0_25 = arith.constant 0 : index
    %69 = vector.load %arg4[%c12, %c0_25] : memref<16x128xf32, #tpu.memory_space<vmem>>, vector<2x128xf32>
    tpu.vector_store %arg4[%c12, %c0_25], %68 {strides = array<i32>} : memref<16x128xf32, #tpu.memory_space<vmem>>, vector<2x128xf32>,
    %70 = vector.extract_strided_slice %27 {offsets = [14, 0], sizes = [2, 128], strides = [1, 1]} : vector<16x128xf32> to vector<2x128xf32>
    %71 = vector.extract_strided_slice %27 {offsets = [0, 0], sizes = [2, 128], strides = [1, 1]} : vector<16x128xf32> to vector<2x128xf32>
    %72 = vector.shape_cast %19 : vector<1x128xi1> to vector<1x128xi1>
    %73 = vector.broadcast %72 : vector<1x128xi1> to vector<2x128xi1>
    %74 = arith.select %73, %70, %71 : vector<2x128xi1>, vector<2x128xf32>
    %c14 = arith.constant 14 : index
    %c0_26 = arith.constant 0 : index
    %75 = vector.load %arg4[%c14, %c0_26] : memref<16x128xf32, #tpu.memory_space<vmem>>, vector<2x128xf32>
    tpu.vector_store %arg4[%c14, %c0_26], %74 {strides = array<i32>} : memref<16x128xf32, #tpu.memory_space<vmem>>, vector<2x128xf32>,
    %cst_27 = arith.constant 0.000000e+00 : f32
    %76 = vector.broadcast %cst_27 : f32 to vector<2x32xf32>
    %c0_i32_28 = arith.constant 0 : i32
    %c2_i32 = arith.constant 2 : i32
    %77 = arith.muli %c0_i32_28, %c2_i32 : i32
    %78 = tpu.assume_multiple %77, 2 : i32
    %79 = arith.index_cast %78 : i32 to index
    %c0_29 = arith.constant 0 : index
    %80 = vector.load %arg4[%79, %c0_29] : memref<16x128xf32, #tpu.memory_space<vmem>>, vector<2x128xf32>
    %cst_30 = arith.constant dense<0.000000e+00> : vector<2x128xf32>
    %81 = tpu.matmul %76, %3, %cst_30 {dimension_numbers = #tpu.dot_dimension_numbers<[1], [0], [0], [1], [0, 0, 1, 1], [], []>} : vector<2x32xf32>, vector<32x128xf32>, vector<2x128xf32> -> vector<2x128xf32>
    %82 = arith.addf %80, %81 : vector<2x128xf32>
    %cst_31 = arith.constant 0.000000e+00 : f32
    %83 = vector.broadcast %cst_31 : f32 to vector<2x128xf32>
    %84 = arith.subf %83, %82 : vector<2x128xf32>
    %85 = math.exp %84 : vector<2x128xf32>
    %cst_32 = arith.constant 1.000000e+00 : f32
    %86 = vector.broadcast %cst_32 : f32 to vector<2x128xf32>
    %87 = arith.addf %86, %85 : vector<2x128xf32>
    %cst_33 = arith.constant 1.000000e+00 : f32
    %88 = vector.broadcast %cst_33 : f32 to vector<2x128xf32>
    %89 = arith.divf %88, %87 : vector<2x128xf32>
    %90 = math.tanh %82 : vector<2x128xf32>
    %91 = vector.extract_strided_slice %89 {offsets = [0, 0], sizes = [2, 32], strides = [1, 1]} : vector<2x128xf32> to vector<2x32xf32>
    %92 = vector.extract_strided_slice %89 {offsets = [0, 32], sizes = [2, 32], strides = [1, 1]} : vector<2x128xf32> to vector<2x32xf32>
    %93 = vector.extract_strided_slice %90 {offsets = [0, 64], sizes = [2, 32], strides = [1, 1]} : vector<2x128xf32> to vector<2x32xf32>
    %94 = vector.extract_strided_slice %89 {offsets = [0, 96], sizes = [2, 32], strides = [1, 1]} : vector<2x128xf32> to vector<2x32xf32>
    %95 = arith.mulf %92, %76 : vector<2x32xf32>
    %96 = arith.mulf %91, %93 : vector<2x32xf32>
    %97 = arith.addf %95, %96 : vector<2x32xf32>
    %98 = math.tanh %97 : vector<2x32xf32>
    %99 = arith.mulf %94, %98 : vector<2x32xf32>
    %100 = arith.index_cast %78 : i32 to index
    %c0_34 = arith.constant 0 : index
    %101 = vector.load %arg5[%100, %c0_34] : memref<16x32xf32, #tpu.memory_space<vmem>>, vector<2x32xf32>
    tpu.vector_store %arg5[%100, %c0_34], %99 {strides = array<i32>} : memref<16x32xf32, #tpu.memory_space<vmem>>, vector<2x32xf32>,
    %c1_i32 = arith.constant 1 : i32
    %c2_i32_35 = arith.constant 2 : i32
    %102 = arith.muli %c1_i32, %c2_i32_35 : i32
    %103 = tpu.assume_multiple %102, 2 : i32
    %104 = arith.index_cast %103 : i32 to index
    %c0_36 = arith.constant 0 : index
    %105 = vector.load %arg4[%104, %c0_36] : memref<16x128xf32, #tpu.memory_space<vmem>>, vector<2x128xf32>
    %cst_37 = arith.constant dense<0.000000e+00> : vector<2x128xf32>
    %106 = tpu.matmul %99, %3, %cst_37 {dimension_numbers = #tpu.dot_dimension_numbers<[1], [0], [0], [1], [0, 0, 1, 1], [], []>} : vector<2x32xf32>, vector<32x128xf32>, vector<2x128xf32> -> vector<2x128xf32>
    %107 = arith.addf %105, %106 : vector<2x128xf32>
    %cst_38 = arith.constant 0.000000e+00 : f32
    %108 = vector.broadcast %cst_38 : f32 to vector<2x128xf32>
    %109 = arith.subf %108, %107 : vector<2x128xf32>
    %110 = math.exp %109 : vector<2x128xf32>
    %cst_39 = arith.constant 1.000000e+00 : f32
    %111 = vector.broadcast %cst_39 : f32 to vector<2x128xf32>
    %112 = arith.addf %111, %110 : vector<2x128xf32>
    %cst_40 = arith.constant 1.000000e+00 : f32
    %113 = vector.broadcast %cst_40 : f32 to vector<2x128xf32>
    %114 = arith.divf %113, %112 : vector<2x128xf32>
    %115 = math.tanh %107 : vector<2x128xf32>
    %116 = vector.extract_strided_slice %114 {offsets = [0, 0], sizes = [2, 32], strides = [1, 1]} : vector<2x128xf32> to vector<2x32xf32>
    %117 = vector.extract_strided_slice %114 {offsets = [0, 32], sizes = [2, 32], strides = [1, 1]} : vector<2x128xf32> to vector<2x32xf32>
    %118 = vector.extract_strided_slice %115 {offsets = [0, 64], sizes = [2, 32], strides = [1, 1]} : vector<2x128xf32> to vector<2x32xf32>
    %119 = vector.extract_strided_slice %114 {offsets = [0, 96], sizes = [2, 32], strides = [1, 1]} : vector<2x128xf32> to vector<2x32xf32>
    %120 = arith.mulf %117, %97 : vector<2x32xf32>
    %121 = arith.mulf %116, %118 : vector<2x32xf32>
    %122 = arith.addf %120, %121 : vector<2x32xf32>
    %123 = math.tanh %122 : vector<2x32xf32>
    %124 = arith.mulf %119, %123 : vector<2x32xf32>
    %125 = arith.index_cast %103 : i32 to index
    %c0_41 = arith.constant 0 : index
    %126 = vector.load %arg5[%125, %c0_41] : memref<16x32xf32, #tpu.memory_space<vmem>>, vector<2x32xf32>
    tpu.vector_store %arg5[%125, %c0_41], %124 {strides = array<i32>} : memref<16x32xf32, #tpu.memory_space<vmem>>, vector<2x32xf32>,
    %c2_i32_42 = arith.constant 2 : i32
    %c2_i32_43 = arith.constant 2 : i32
    %127 = arith.muli %c2_i32_42, %c2_i32_43 : i32
    %128 = tpu.assume_multiple %127, 2 : i32
    %129 = arith.index_cast %128 : i32 to index
    %c0_44 = arith.constant 0 : index
    %130 = vector.load %arg4[%129, %c0_44] : memref<16x128xf32, #tpu.memory_space<vmem>>, vector<2x128xf32>
    %cst_45 = arith.constant dense<0.000000e+00> : vector<2x128xf32>
    %131 = tpu.matmul %124, %3, %cst_45 {dimension_numbers = #tpu.dot_dimension_numbers<[1], [0], [0], [1], [0, 0, 1, 1], [], []>} : vector<2x32xf32>, vector<32x128xf32>, vector<2x128xf32> -> vector<2x128xf32>
    %132 = arith.addf %130, %131 : vector<2x128xf32>
    %cst_46 = arith.constant 0.000000e+00 : f32
    %133 = vector.broadcast %cst_46 : f32 to vector<2x128xf32>
    %134 = arith.subf %133, %132 : vector<2x128xf32>
    %135 = math.exp %134 : vector<2x128xf32>
    %cst_47 = arith.constant 1.000000e+00 : f32
    %136 = vector.broadcast %cst_47 : f32 to vector<2x128xf32>
    %137 = arith.addf %136, %135 : vector<2x128xf32>
    %cst_48 = arith.constant 1.000000e+00 : f32
    %138 = vector.broadcast %cst_48 : f32 to vector<2x128xf32>
    %139 = arith.divf %138, %137 : vector<2x128xf32>
    %140 = math.tanh %132 : vector<2x128xf32>
    %141 = vector.extract_strided_slice %139 {offsets = [0, 0], sizes = [2, 32], strides = [1, 1]} : vector<2x128xf32> to vector<2x32xf32>
    %142 = vector.extract_strided_slice %139 {offsets = [0, 32], sizes = [2, 32], strides = [1, 1]} : vector<2x128xf32> to vector<2x32xf32>
    %143 = vector.extract_strided_slice %140 {offsets = [0, 64], sizes = [2, 32], strides = [1, 1]} : vector<2x128xf32> to vector<2x32xf32>
    %144 = vector.extract_strided_slice %139 {offsets = [0, 96], sizes = [2, 32], strides = [1, 1]} : vector<2x128xf32> to vector<2x32xf32>
    %145 = arith.mulf %142, %122 : vector<2x32xf32>
    %146 = arith.mulf %141, %143 : vector<2x32xf32>
    %147 = arith.addf %145, %146 : vector<2x32xf32>
    %148 = math.tanh %147 : vector<2x32xf32>
    %149 = arith.mulf %144, %148 : vector<2x32xf32>
    %150 = arith.index_cast %128 : i32 to index
    %c0_49 = arith.constant 0 : index
    %151 = vector.load %arg5[%150, %c0_49] : memref<16x32xf32, #tpu.memory_space<vmem>>, vector<2x32xf32>
    tpu.vector_store %arg5[%150, %c0_49], %149 {strides = array<i32>} : memref<16x32xf32, #tpu.memory_space<vmem>>, vector<2x32xf32>,
    %c3_i32 = arith.constant 3 : i32
    %c2_i32_50 = arith.constant 2 : i32
    %152 = arith.muli %c3_i32, %c2_i32_50 : i32
    %153 = tpu.assume_multiple %152, 2 : i32
    %154 = arith.index_cast %153 : i32 to index
    %c0_51 = arith.constant 0 : index
    %155 = vector.load %arg4[%154, %c0_51] : memref<16x128xf32, #tpu.memory_space<vmem>>, vector<2x128xf32>
    %cst_52 = arith.constant dense<0.000000e+00> : vector<2x128xf32>
    %156 = tpu.matmul %149, %3, %cst_52 {dimension_numbers = #tpu.dot_dimension_numbers<[1], [0], [0], [1], [0, 0, 1, 1], [], []>} : vector<2x32xf32>, vector<32x128xf32>, vector<2x128xf32> -> vector<2x128xf32>
    %157 = arith.addf %155, %156 : vector<2x128xf32>
    %cst_53 = arith.constant 0.000000e+00 : f32
    %158 = vector.broadcast %cst_53 : f32 to vector<2x128xf32>
    %159 = arith.subf %158, %157 : vector<2x128xf32>
    %160 = math.exp %159 : vector<2x128xf32>
    %cst_54 = arith.constant 1.000000e+00 : f32
    %161 = vector.broadcast %cst_54 : f32 to vector<2x128xf32>
    %162 = arith.addf %161, %160 : vector<2x128xf32>
    %cst_55 = arith.constant 1.000000e+00 : f32
    %163 = vector.broadcast %cst_55 : f32 to vector<2x128xf32>
    %164 = arith.divf %163, %162 : vector<2x128xf32>
    %165 = math.tanh %157 : vector<2x128xf32>
    %166 = vector.extract_strided_slice %164 {offsets = [0, 0], sizes = [2, 32], strides = [1, 1]} : vector<2x128xf32> to vector<2x32xf32>
    %167 = vector.extract_strided_slice %164 {offsets = [0, 32], sizes = [2, 32], strides = [1, 1]} : vector<2x128xf32> to vector<2x32xf32>
    %168 = vector.extract_strided_slice %165 {offsets = [0, 64], sizes = [2, 32], strides = [1, 1]} : vector<2x128xf32> to vector<2x32xf32>
    %169 = vector.extract_strided_slice %164 {offsets = [0, 96], sizes = [2, 32], strides = [1, 1]} : vector<2x128xf32> to vector<2x32xf32>
    %170 = arith.mulf %167, %147 : vector<2x32xf32>
    %171 = arith.mulf %166, %168 : vector<2x32xf32>
    %172 = arith.addf %170, %171 : vector<2x32xf32>
    %173 = math.tanh %172 : vector<2x32xf32>
    %174 = arith.mulf %169, %173 : vector<2x32xf32>
    %175 = arith.index_cast %153 : i32 to index
    %c0_56 = arith.constant 0 : index
    %176 = vector.load %arg5[%175, %c0_56] : memref<16x32xf32, #tpu.memory_space<vmem>>, vector<2x32xf32>
    tpu.vector_store %arg5[%175, %c0_56], %174 {strides = array<i32>} : memref<16x32xf32, #tpu.memory_space<vmem>>, vector<2x32xf32>,
    %c4_i32 = arith.constant 4 : i32
    %c2_i32_57 = arith.constant 2 : i32
    %177 = arith.muli %c4_i32, %c2_i32_57 : i32
    %178 = tpu.assume_multiple %177, 2 : i32
    %179 = arith.index_cast %178 : i32 to index
    %c0_58 = arith.constant 0 : index
    %180 = vector.load %arg4[%179, %c0_58] : memref<16x128xf32, #tpu.memory_space<vmem>>, vector<2x128xf32>
    %cst_59 = arith.constant dense<0.000000e+00> : vector<2x128xf32>
    %181 = tpu.matmul %174, %3, %cst_59 {dimension_numbers = #tpu.dot_dimension_numbers<[1], [0], [0], [1], [0, 0, 1, 1], [], []>} : vector<2x32xf32>, vector<32x128xf32>, vector<2x128xf32> -> vector<2x128xf32>
    %182 = arith.addf %180, %181 : vector<2x128xf32>
    %cst_60 = arith.constant 0.000000e+00 : f32
    %183 = vector.broadcast %cst_60 : f32 to vector<2x128xf32>
    %184 = arith.subf %183, %182 : vector<2x128xf32>
    %185 = math.exp %184 : vector<2x128xf32>
    %cst_61 = arith.constant 1.000000e+00 : f32
    %186 = vector.broadcast %cst_61 : f32 to vector<2x128xf32>
    %187 = arith.addf %186, %185 : vector<2x128xf32>
    %cst_62 = arith.constant 1.000000e+00 : f32
    %188 = vector.broadcast %cst_62 : f32 to vector<2x128xf32>
    %189 = arith.divf %188, %187 : vector<2x128xf32>
    %190 = math.tanh %182 : vector<2x128xf32>
    %191 = vector.extract_strided_slice %189 {offsets = [0, 0], sizes = [2, 32], strides = [1, 1]} : vector<2x128xf32> to vector<2x32xf32>
    %192 = vector.extract_strided_slice %189 {offsets = [0, 32], sizes = [2, 32], strides = [1, 1]} : vector<2x128xf32> to vector<2x32xf32>
    %193 = vector.extract_strided_slice %190 {offsets = [0, 64], sizes = [2, 32], strides = [1, 1]} : vector<2x128xf32> to vector<2x32xf32>
    %194 = vector.extract_strided_slice %189 {offsets = [0, 96], sizes = [2, 32], strides = [1, 1]} : vector<2x128xf32> to vector<2x32xf32>
    %195 = arith.mulf %192, %172 : vector<2x32xf32>
    %196 = arith.mulf %191, %193 : vector<2x32xf32>
    %197 = arith.addf %195, %196 : vector<2x32xf32>
    %198 = math.tanh %197 : vector<2x32xf32>
    %199 = arith.mulf %194, %198 : vector<2x32xf32>
    %200 = arith.index_cast %178 : i32 to index
    %c0_63 = arith.constant 0 : index
    %201 = vector.load %arg5[%200, %c0_63] : memref<16x32xf32, #tpu.memory_space<vmem>>, vector<2x32xf32>
    tpu.vector_store %arg5[%200, %c0_63], %199 {strides = array<i32>} : memref<16x32xf32, #tpu.memory_space<vmem>>, vector<2x32xf32>,
    %c5_i32 = arith.constant 5 : i32
    %c2_i32_64 = arith.constant 2 : i32
    %202 = arith.muli %c5_i32, %c2_i32_64 : i32
    %203 = tpu.assume_multiple %202, 2 : i32
    %204 = arith.index_cast %203 : i32 to index
    %c0_65 = arith.constant 0 : index
    %205 = vector.load %arg4[%204, %c0_65] : memref<16x128xf32, #tpu.memory_space<vmem>>, vector<2x128xf32>
    %cst_66 = arith.constant dense<0.000000e+00> : vector<2x128xf32>
    %206 = tpu.matmul %199, %3, %cst_66 {dimension_numbers = #tpu.dot_dimension_numbers<[1], [0], [0], [1], [0, 0, 1, 1], [], []>} : vector<2x32xf32>, vector<32x128xf32>, vector<2x128xf32> -> vector<2x128xf32>
    %207 = arith.addf %205, %206 : vector<2x128xf32>
    %cst_67 = arith.constant 0.000000e+00 : f32
    %208 = vector.broadcast %cst_67 : f32 to vector<2x128xf32>
    %209 = arith.subf %208, %207 : vector<2x128xf32>
    %210 = math.exp %209 : vector<2x128xf32>
    %cst_68 = arith.constant 1.000000e+00 : f32
    %211 = vector.broadcast %cst_68 : f32 to vector<2x128xf32>
    %212 = arith.addf %211, %210 : vector<2x128xf32>
    %cst_69 = arith.constant 1.000000e+00 : f32
    %213 = vector.broadcast %cst_69 : f32 to vector<2x128xf32>
    %214 = arith.divf %213, %212 : vector<2x128xf32>
    %215 = math.tanh %207 : vector<2x128xf32>
    %216 = vector.extract_strided_slice %214 {offsets = [0, 0], sizes = [2, 32], strides = [1, 1]} : vector<2x128xf32> to vector<2x32xf32>
    %217 = vector.extract_strided_slice %214 {offsets = [0, 32], sizes = [2, 32], strides = [1, 1]} : vector<2x128xf32> to vector<2x32xf32>
    %218 = vector.extract_strided_slice %215 {offsets = [0, 64], sizes = [2, 32], strides = [1, 1]} : vector<2x128xf32> to vector<2x32xf32>
    %219 = vector.extract_strided_slice %214 {offsets = [0, 96], sizes = [2, 32], strides = [1, 1]} : vector<2x128xf32> to vector<2x32xf32>
    %220 = arith.mulf %217, %197 : vector<2x32xf32>
    %221 = arith.mulf %216, %218 : vector<2x32xf32>
    %222 = arith.addf %220, %221 : vector<2x32xf32>
    %223 = math.tanh %222 : vector<2x32xf32>
    %224 = arith.mulf %219, %223 : vector<2x32xf32>
    %225 = arith.index_cast %203 : i32 to index
    %c0_70 = arith.constant 0 : index
    %226 = vector.load %arg5[%225, %c0_70] : memref<16x32xf32, #tpu.memory_space<vmem>>, vector<2x32xf32>
    tpu.vector_store %arg5[%225, %c0_70], %224 {strides = array<i32>} : memref<16x32xf32, #tpu.memory_space<vmem>>, vector<2x32xf32>,
    %c6_i32 = arith.constant 6 : i32
    %c2_i32_71 = arith.constant 2 : i32
    %227 = arith.muli %c6_i32, %c2_i32_71 : i32
    %228 = tpu.assume_multiple %227, 2 : i32
    %229 = arith.index_cast %228 : i32 to index
    %c0_72 = arith.constant 0 : index
    %230 = vector.load %arg4[%229, %c0_72] : memref<16x128xf32, #tpu.memory_space<vmem>>, vector<2x128xf32>
    %cst_73 = arith.constant dense<0.000000e+00> : vector<2x128xf32>
    %231 = tpu.matmul %224, %3, %cst_73 {dimension_numbers = #tpu.dot_dimension_numbers<[1], [0], [0], [1], [0, 0, 1, 1], [], []>} : vector<2x32xf32>, vector<32x128xf32>, vector<2x128xf32> -> vector<2x128xf32>
    %232 = arith.addf %230, %231 : vector<2x128xf32>
    %cst_74 = arith.constant 0.000000e+00 : f32
    %233 = vector.broadcast %cst_74 : f32 to vector<2x128xf32>
    %234 = arith.subf %233, %232 : vector<2x128xf32>
    %235 = math.exp %234 : vector<2x128xf32>
    %cst_75 = arith.constant 1.000000e+00 : f32
    %236 = vector.broadcast %cst_75 : f32 to vector<2x128xf32>
    %237 = arith.addf %236, %235 : vector<2x128xf32>
    %cst_76 = arith.constant 1.000000e+00 : f32
    %238 = vector.broadcast %cst_76 : f32 to vector<2x128xf32>
    %239 = arith.divf %238, %237 : vector<2x128xf32>
    %240 = math.tanh %232 : vector<2x128xf32>
    %241 = vector.extract_strided_slice %239 {offsets = [0, 0], sizes = [2, 32], strides = [1, 1]} : vector<2x128xf32> to vector<2x32xf32>
    %242 = vector.extract_strided_slice %239 {offsets = [0, 32], sizes = [2, 32], strides = [1, 1]} : vector<2x128xf32> to vector<2x32xf32>
    %243 = vector.extract_strided_slice %240 {offsets = [0, 64], sizes = [2, 32], strides = [1, 1]} : vector<2x128xf32> to vector<2x32xf32>
    %244 = vector.extract_strided_slice %239 {offsets = [0, 96], sizes = [2, 32], strides = [1, 1]} : vector<2x128xf32> to vector<2x32xf32>
    %245 = arith.mulf %242, %222 : vector<2x32xf32>
    %246 = arith.mulf %241, %243 : vector<2x32xf32>
    %247 = arith.addf %245, %246 : vector<2x32xf32>
    %248 = math.tanh %247 : vector<2x32xf32>
    %249 = arith.mulf %244, %248 : vector<2x32xf32>
    %250 = arith.index_cast %228 : i32 to index
    %c0_77 = arith.constant 0 : index
    %251 = vector.load %arg5[%250, %c0_77] : memref<16x32xf32, #tpu.memory_space<vmem>>, vector<2x32xf32>
    tpu.vector_store %arg5[%250, %c0_77], %249 {strides = array<i32>} : memref<16x32xf32, #tpu.memory_space<vmem>>, vector<2x32xf32>,
    %c7_i32 = arith.constant 7 : i32
    %c2_i32_78 = arith.constant 2 : i32
    %252 = arith.muli %c7_i32, %c2_i32_78 : i32
    %253 = tpu.assume_multiple %252, 2 : i32
    %254 = arith.index_cast %253 : i32 to index
    %c0_79 = arith.constant 0 : index
    %255 = vector.load %arg4[%254, %c0_79] : memref<16x128xf32, #tpu.memory_space<vmem>>, vector<2x128xf32>
    %cst_80 = arith.constant dense<0.000000e+00> : vector<2x128xf32>
    %256 = tpu.matmul %249, %3, %cst_80 {dimension_numbers = #tpu.dot_dimension_numbers<[1], [0], [0], [1], [0, 0, 1, 1], [], []>} : vector<2x32xf32>, vector<32x128xf32>, vector<2x128xf32> -> vector<2x128xf32>
    %257 = arith.addf %255, %256 : vector<2x128xf32>
    %cst_81 = arith.constant 0.000000e+00 : f32
    %258 = vector.broadcast %cst_81 : f32 to vector<2x128xf32>
    %259 = arith.subf %258, %257 : vector<2x128xf32>
    %260 = math.exp %259 : vector<2x128xf32>
    %cst_82 = arith.constant 1.000000e+00 : f32
    %261 = vector.broadcast %cst_82 : f32 to vector<2x128xf32>
    %262 = arith.addf %261, %260 : vector<2x128xf32>
    %cst_83 = arith.constant 1.000000e+00 : f32
    %263 = vector.broadcast %cst_83 : f32 to vector<2x128xf32>
    %264 = arith.divf %263, %262 : vector<2x128xf32>
    %265 = math.tanh %257 : vector<2x128xf32>
    %266 = vector.extract_strided_slice %264 {offsets = [0, 0], sizes = [2, 32], strides = [1, 1]} : vector<2x128xf32> to vector<2x32xf32>
    %267 = vector.extract_strided_slice %264 {offsets = [0, 32], sizes = [2, 32], strides = [1, 1]} : vector<2x128xf32> to vector<2x32xf32>
    %268 = vector.extract_strided_slice %265 {offsets = [0, 64], sizes = [2, 32], strides = [1, 1]} : vector<2x128xf32> to vector<2x32xf32>
    %269 = vector.extract_strided_slice %264 {offsets = [0, 96], sizes = [2, 32], strides = [1, 1]} : vector<2x128xf32> to vector<2x32xf32>
    %270 = arith.mulf %267, %247 : vector<2x32xf32>
    %271 = arith.mulf %266, %268 : vector<2x32xf32>
    %272 = arith.addf %270, %271 : vector<2x32xf32>
    %273 = math.tanh %272 : vector<2x32xf32>
    %274 = arith.mulf %269, %273 : vector<2x32xf32>
    %275 = arith.index_cast %253 : i32 to index
    %c0_84 = arith.constant 0 : index
    %276 = vector.load %arg5[%275, %c0_84] : memref<16x32xf32, #tpu.memory_space<vmem>>, vector<2x32xf32>
    tpu.vector_store %arg5[%275, %c0_84], %274 {strides = array<i32>} : memref<16x32xf32, #tpu.memory_space<vmem>>, vector<2x32xf32>,
    %c8_i32 = arith.constant 8 : i32
    %c0_85 = arith.constant 0 : index
    %c0_86 = arith.constant 0 : index
    %277 = vector.load %arg5[%c0_85, %c0_86] : memref<16x32xf32, #tpu.memory_space<vmem>>, vector<16x32xf32>
    %278 = vector.extract_strided_slice %277 {offsets = [0, 0], sizes = [16, 16], strides = [1, 1]} : vector<16x32xf32> to vector<16x16xf32>
    %279 = vector.extract_strided_slice %277 {offsets = [14, 16], sizes = [2, 16], strides = [1, 1]} : vector<16x32xf32> to vector<2x16xf32>
    %280 = vector.extract_strided_slice %277 {offsets = [12, 16], sizes = [2, 16], strides = [1, 1]} : vector<16x32xf32> to vector<2x16xf32>
    %281 = vector.extract_strided_slice %277 {offsets = [10, 16], sizes = [2, 16], strides = [1, 1]} : vector<16x32xf32> to vector<2x16xf32>
    %282 = vector.extract_strided_slice %277 {offsets = [8, 16], sizes = [2, 16], strides = [1, 1]} : vector<16x32xf32> to vector<2x16xf32>
    %283 = vector.extract_strided_slice %277 {offsets = [6, 16], sizes = [2, 16], strides = [1, 1]} : vector<16x32xf32> to vector<2x16xf32>
    %284 = vector.extract_strided_slice %277 {offsets = [4, 16], sizes = [2, 16], strides = [1, 1]} : vector<16x32xf32> to vector<2x16xf32>
    %285 = vector.extract_strided_slice %277 {offsets = [2, 16], sizes = [2, 16], strides = [1, 1]} : vector<16x32xf32> to vector<2x16xf32>
    %286 = vector.extract_strided_slice %277 {offsets = [0, 16], sizes = [2, 16], strides = [1, 1]} : vector<16x32xf32> to vector<2x16xf32>
    %287 = tpu.concatenate %279, %280, %281, %282, %283, %284, %285, %286 in 0 : vector<2x16xf32>, vector<2x16xf32>, vector<2x16xf32>, vector<2x16xf32>, vector<2x16xf32>, vector<2x16xf32>, vector<2x16xf32>, vector<2x16xf32> -> vector<16x16xf32>
    %288 = tpu.concatenate %278, %287 in 1 : vector<16x16xf32>, vector<16x16xf32> -> vector<16x32xf32>
    %cst_87 = arith.constant dense<0.000000e+00> : vector<16x128xf32>
    %289 = tpu.matmul %288, %5, %cst_87 {dimension_numbers = #tpu.dot_dimension_numbers<[1], [0], [0], [1], [0, 0, 1, 1], [], []>} : vector<16x32xf32>, vector<32x128xf32>, vector<16x128xf32> -> vector<16x128xf32>
    %290 = vector.broadcast %7 : vector<1x128xf32> to vector<16x128xf32>
    %291 = arith.addf %289, %290 : vector<16x128xf32>
    %292 = vector.extract_strided_slice %291 {offsets = [0, 0], sizes = [2, 128], strides = [1, 1]} : vector<16x128xf32> to vector<2x128xf32>
    %293 = vector.extract_strided_slice %291 {offsets = [14, 0], sizes = [2, 128], strides = [1, 1]} : vector<16x128xf32> to vector<2x128xf32>
    %294 = vector.shape_cast %19 : vector<1x128xi1> to vector<1x128xi1>
    %295 = vector.broadcast %294 : vector<1x128xi1> to vector<2x128xi1>
    %296 = arith.select %295, %292, %293 : vector<2x128xi1>, vector<2x128xf32>
    %c0_88 = arith.constant 0 : index
    %c0_89 = arith.constant 0 : index
    %297 = vector.load %arg4[%c0_88, %c0_89] : memref<16x128xf32, #tpu.memory_space<vmem>>, vector<2x128xf32>
    tpu.vector_store %arg4[%c0_88, %c0_89], %296 {strides = array<i32>} : memref<16x128xf32, #tpu.memory_space<vmem>>, vector<2x128xf32>,
    %298 = vector.extract_strided_slice %291 {offsets = [2, 0], sizes = [2, 128], strides = [1, 1]} : vector<16x128xf32> to vector<2x128xf32>
    %299 = vector.extract_strided_slice %291 {offsets = [12, 0], sizes = [2, 128], strides = [1, 1]} : vector<16x128xf32> to vector<2x128xf32>
    %300 = vector.shape_cast %19 : vector<1x128xi1> to vector<1x128xi1>
    %301 = vector.broadcast %300 : vector<1x128xi1> to vector<2x128xi1>
    %302 = arith.select %301, %298, %299 : vector<2x128xi1>, vector<2x128xf32>
    %c2_90 = arith.constant 2 : index
    %c0_91 = arith.constant 0 : index
    %303 = vector.load %arg4[%c2_90, %c0_91] : memref<16x128xf32, #tpu.memory_space<vmem>>, vector<2x128xf32>
    tpu.vector_store %arg4[%c2_90, %c0_91], %302 {strides = array<i32>} : memref<16x128xf32, #tpu.memory_space<vmem>>, vector<2x128xf32>,
    %304 = vector.extract_strided_slice %291 {offsets = [4, 0], sizes = [2, 128], strides = [1, 1]} : vector<16x128xf32> to vector<2x128xf32>
    %305 = vector.extract_strided_slice %291 {offsets = [10, 0], sizes = [2, 128], strides = [1, 1]} : vector<16x128xf32> to vector<2x128xf32>
    %306 = vector.shape_cast %19 : vector<1x128xi1> to vector<1x128xi1>
    %307 = vector.broadcast %306 : vector<1x128xi1> to vector<2x128xi1>
    %308 = arith.select %307, %304, %305 : vector<2x128xi1>, vector<2x128xf32>
    %c4_92 = arith.constant 4 : index
    %c0_93 = arith.constant 0 : index
    %309 = vector.load %arg4[%c4_92, %c0_93] : memref<16x128xf32, #tpu.memory_space<vmem>>, vector<2x128xf32>
    tpu.vector_store %arg4[%c4_92, %c0_93], %308 {strides = array<i32>} : memref<16x128xf32, #tpu.memory_space<vmem>>, vector<2x128xf32>,
    %310 = vector.extract_strided_slice %291 {offsets = [6, 0], sizes = [2, 128], strides = [1, 1]} : vector<16x128xf32> to vector<2x128xf32>
    %311 = vector.extract_strided_slice %291 {offsets = [8, 0], sizes = [2, 128], strides = [1, 1]} : vector<16x128xf32> to vector<2x128xf32>
    %312 = vector.shape_cast %19 : vector<1x128xi1> to vector<1x128xi1>
    %313 = vector.broadcast %312 : vector<1x128xi1> to vector<2x128xi1>
    %314 = arith.select %313, %310, %311 : vector<2x128xi1>, vector<2x128xf32>
    %c6_94 = arith.constant 6 : index
    %c0_95 = arith.constant 0 : index
    %315 = vector.load %arg4[%c6_94, %c0_95] : memref<16x128xf32, #tpu.memory_space<vmem>>, vector<2x128xf32>
    tpu.vector_store %arg4[%c6_94, %c0_95], %314 {strides = array<i32>} : memref<16x128xf32, #tpu.memory_space<vmem>>, vector<2x128xf32>,
    %316 = vector.extract_strided_slice %291 {offsets = [8, 0], sizes = [2, 128], strides = [1, 1]} : vector<16x128xf32> to vector<2x128xf32>
    %317 = vector.extract_strided_slice %291 {offsets = [6, 0], sizes = [2, 128], strides = [1, 1]} : vector<16x128xf32> to vector<2x128xf32>
    %318 = vector.shape_cast %19 : vector<1x128xi1> to vector<1x128xi1>
    %319 = vector.broadcast %318 : vector<1x128xi1> to vector<2x128xi1>
    %320 = arith.select %319, %316, %317 : vector<2x128xi1>, vector<2x128xf32>
    %c8_96 = arith.constant 8 : index
    %c0_97 = arith.constant 0 : index
    %321 = vector.load %arg4[%c8_96, %c0_97] : memref<16x128xf32, #tpu.memory_space<vmem>>, vector<2x128xf32>
    tpu.vector_store %arg4[%c8_96, %c0_97], %320 {strides = array<i32>} : memref<16x128xf32, #tpu.memory_space<vmem>>, vector<2x128xf32>,
    %322 = vector.extract_strided_slice %291 {offsets = [10, 0], sizes = [2, 128], strides = [1, 1]} : vector<16x128xf32> to vector<2x128xf32>
    %323 = vector.extract_strided_slice %291 {offsets = [4, 0], sizes = [2, 128], strides = [1, 1]} : vector<16x128xf32> to vector<2x128xf32>
    %324 = vector.shape_cast %19 : vector<1x128xi1> to vector<1x128xi1>
    %325 = vector.broadcast %324 : vector<1x128xi1> to vector<2x128xi1>
    %326 = arith.select %325, %322, %323 : vector<2x128xi1>, vector<2x128xf32>
    %c10_98 = arith.constant 10 : index
    %c0_99 = arith.constant 0 : index
    %327 = vector.load %arg4[%c10_98, %c0_99] : memref<16x128xf32, #tpu.memory_space<vmem>>, vector<2x128xf32>
    tpu.vector_store %arg4[%c10_98, %c0_99], %326 {strides = array<i32>} : memref<16x128xf32, #tpu.memory_space<vmem>>, vector<2x128xf32>,
    %328 = vector.extract_strided_slice %291 {offsets = [12, 0], sizes = [2, 128], strides = [1, 1]} : vector<16x128xf32> to vector<2x128xf32>
    %329 = vector.extract_strided_slice %291 {offsets = [2, 0], sizes = [2, 128], strides = [1, 1]} : vector<16x128xf32> to vector<2x128xf32>
    %330 = vector.shape_cast %19 : vector<1x128xi1> to vector<1x128xi1>
    %331 = vector.broadcast %330 : vector<1x128xi1> to vector<2x128xi1>
    %332 = arith.select %331, %328, %329 : vector<2x128xi1>, vector<2x128xf32>
    %c12_100 = arith.constant 12 : index
    %c0_101 = arith.constant 0 : index
    %333 = vector.load %arg4[%c12_100, %c0_101] : memref<16x128xf32, #tpu.memory_space<vmem>>, vector<2x128xf32>
    tpu.vector_store %arg4[%c12_100, %c0_101], %332 {strides = array<i32>} : memref<16x128xf32, #tpu.memory_space<vmem>>, vector<2x128xf32>,
    %334 = vector.extract_strided_slice %291 {offsets = [14, 0], sizes = [2, 128], strides = [1, 1]} : vector<16x128xf32> to vector<2x128xf32>
    %335 = vector.extract_strided_slice %291 {offsets = [0, 0], sizes = [2, 128], strides = [1, 1]} : vector<16x128xf32> to vector<2x128xf32>
    %336 = vector.shape_cast %19 : vector<1x128xi1> to vector<1x128xi1>
    %337 = vector.broadcast %336 : vector<1x128xi1> to vector<2x128xi1>
    %338 = arith.select %337, %334, %335 : vector<2x128xi1>, vector<2x128xf32>
    %c14_102 = arith.constant 14 : index
    %c0_103 = arith.constant 0 : index
    %339 = vector.load %arg4[%c14_102, %c0_103] : memref<16x128xf32, #tpu.memory_space<vmem>>, vector<2x128xf32>
    tpu.vector_store %arg4[%c14_102, %c0_103], %338 {strides = array<i32>} : memref<16x128xf32, #tpu.memory_space<vmem>>, vector<2x128xf32>,
    %cst_104 = arith.constant 0.000000e+00 : f32
    %340 = vector.broadcast %cst_104 : f32 to vector<2x32xf32>
    %c0_i32_105 = arith.constant 0 : i32
    %c2_i32_106 = arith.constant 2 : i32
    %341 = arith.muli %c0_i32_105, %c2_i32_106 : i32
    %342 = tpu.assume_multiple %341, 2 : i32
    %343 = arith.index_cast %342 : i32 to index
    %c0_107 = arith.constant 0 : index
    %344 = vector.load %arg4[%343, %c0_107] : memref<16x128xf32, #tpu.memory_space<vmem>>, vector<2x128xf32>
    %cst_108 = arith.constant dense<0.000000e+00> : vector<2x128xf32>
    %345 = tpu.matmul %340, %6, %cst_108 {dimension_numbers = #tpu.dot_dimension_numbers<[1], [0], [0], [1], [0, 0, 1, 1], [], []>} : vector<2x32xf32>, vector<32x128xf32>, vector<2x128xf32> -> vector<2x128xf32>
    %346 = arith.addf %344, %345 : vector<2x128xf32>
    %cst_109 = arith.constant 0.000000e+00 : f32
    %347 = vector.broadcast %cst_109 : f32 to vector<2x128xf32>
    %348 = arith.subf %347, %346 : vector<2x128xf32>
    %349 = math.exp %348 : vector<2x128xf32>
    %cst_110 = arith.constant 1.000000e+00 : f32
    %350 = vector.broadcast %cst_110 : f32 to vector<2x128xf32>
    %351 = arith.addf %350, %349 : vector<2x128xf32>
    %cst_111 = arith.constant 1.000000e+00 : f32
    %352 = vector.broadcast %cst_111 : f32 to vector<2x128xf32>
    %353 = arith.divf %352, %351 : vector<2x128xf32>
    %354 = math.tanh %346 : vector<2x128xf32>
    %355 = vector.extract_strided_slice %353 {offsets = [0, 0], sizes = [2, 32], strides = [1, 1]} : vector<2x128xf32> to vector<2x32xf32>
    %356 = vector.extract_strided_slice %353 {offsets = [0, 32], sizes = [2, 32], strides = [1, 1]} : vector<2x128xf32> to vector<2x32xf32>
    %357 = vector.extract_strided_slice %354 {offsets = [0, 64], sizes = [2, 32], strides = [1, 1]} : vector<2x128xf32> to vector<2x32xf32>
    %358 = vector.extract_strided_slice %353 {offsets = [0, 96], sizes = [2, 32], strides = [1, 1]} : vector<2x128xf32> to vector<2x32xf32>
    %359 = arith.mulf %356, %340 : vector<2x32xf32>
    %360 = arith.mulf %355, %357 : vector<2x32xf32>
    %361 = arith.addf %359, %360 : vector<2x32xf32>
    %362 = math.tanh %361 : vector<2x32xf32>
    %363 = arith.mulf %358, %362 : vector<2x32xf32>
    %364 = arith.index_cast %342 : i32 to index
    %c0_112 = arith.constant 0 : index
    %365 = vector.load %arg5[%364, %c0_112] : memref<16x32xf32, #tpu.memory_space<vmem>>, vector<2x32xf32>
    tpu.vector_store %arg5[%364, %c0_112], %363 {strides = array<i32>} : memref<16x32xf32, #tpu.memory_space<vmem>>, vector<2x32xf32>,
    %c1_i32_113 = arith.constant 1 : i32
    %c2_i32_114 = arith.constant 2 : i32
    %366 = arith.muli %c1_i32_113, %c2_i32_114 : i32
    %367 = tpu.assume_multiple %366, 2 : i32
    %368 = arith.index_cast %367 : i32 to index
    %c0_115 = arith.constant 0 : index
    %369 = vector.load %arg4[%368, %c0_115] : memref<16x128xf32, #tpu.memory_space<vmem>>, vector<2x128xf32>
    %cst_116 = arith.constant dense<0.000000e+00> : vector<2x128xf32>
    %370 = tpu.matmul %363, %6, %cst_116 {dimension_numbers = #tpu.dot_dimension_numbers<[1], [0], [0], [1], [0, 0, 1, 1], [], []>} : vector<2x32xf32>, vector<32x128xf32>, vector<2x128xf32> -> vector<2x128xf32>
    %371 = arith.addf %369, %370 : vector<2x128xf32>
    %cst_117 = arith.constant 0.000000e+00 : f32
    %372 = vector.broadcast %cst_117 : f32 to vector<2x128xf32>
    %373 = arith.subf %372, %371 : vector<2x128xf32>
    %374 = math.exp %373 : vector<2x128xf32>
    %cst_118 = arith.constant 1.000000e+00 : f32
    %375 = vector.broadcast %cst_118 : f32 to vector<2x128xf32>
    %376 = arith.addf %375, %374 : vector<2x128xf32>
    %cst_119 = arith.constant 1.000000e+00 : f32
    %377 = vector.broadcast %cst_119 : f32 to vector<2x128xf32>
    %378 = arith.divf %377, %376 : vector<2x128xf32>
    %379 = math.tanh %371 : vector<2x128xf32>
    %380 = vector.extract_strided_slice %378 {offsets = [0, 0], sizes = [2, 32], strides = [1, 1]} : vector<2x128xf32> to vector<2x32xf32>
    %381 = vector.extract_strided_slice %378 {offsets = [0, 32], sizes = [2, 32], strides = [1, 1]} : vector<2x128xf32> to vector<2x32xf32>
    %382 = vector.extract_strided_slice %379 {offsets = [0, 64], sizes = [2, 32], strides = [1, 1]} : vector<2x128xf32> to vector<2x32xf32>
    %383 = vector.extract_strided_slice %378 {offsets = [0, 96], sizes = [2, 32], strides = [1, 1]} : vector<2x128xf32> to vector<2x32xf32>
    %384 = arith.mulf %381, %361 : vector<2x32xf32>
    %385 = arith.mulf %380, %382 : vector<2x32xf32>
    %386 = arith.addf %384, %385 : vector<2x32xf32>
    %387 = math.tanh %386 : vector<2x32xf32>
    %388 = arith.mulf %383, %387 : vector<2x32xf32>
    %389 = arith.index_cast %367 : i32 to index
    %c0_120 = arith.constant 0 : index
    %390 = vector.load %arg5[%389, %c0_120] : memref<16x32xf32, #tpu.memory_space<vmem>>, vector<2x32xf32>
    tpu.vector_store %arg5[%389, %c0_120], %388 {strides = array<i32>} : memref<16x32xf32, #tpu.memory_space<vmem>>, vector<2x32xf32>,
    %c2_i32_121 = arith.constant 2 : i32
    %c2_i32_122 = arith.constant 2 : i32
    %391 = arith.muli %c2_i32_121, %c2_i32_122 : i32
    %392 = tpu.assume_multiple %391, 2 : i32
    %393 = arith.index_cast %392 : i32 to index
    %c0_123 = arith.constant 0 : index
    %394 = vector.load %arg4[%393, %c0_123] : memref<16x128xf32, #tpu.memory_space<vmem>>, vector<2x128xf32>
    %cst_124 = arith.constant dense<0.000000e+00> : vector<2x128xf32>
    %395 = tpu.matmul %388, %6, %cst_124 {dimension_numbers = #tpu.dot_dimension_numbers<[1], [0], [0], [1], [0, 0, 1, 1], [], []>} : vector<2x32xf32>, vector<32x128xf32>, vector<2x128xf32> -> vector<2x128xf32>
    %396 = arith.addf %394, %395 : vector<2x128xf32>
    %cst_125 = arith.constant 0.000000e+00 : f32
    %397 = vector.broadcast %cst_125 : f32 to vector<2x128xf32>
    %398 = arith.subf %397, %396 : vector<2x128xf32>
    %399 = math.exp %398 : vector<2x128xf32>
    %cst_126 = arith.constant 1.000000e+00 : f32
    %400 = vector.broadcast %cst_126 : f32 to vector<2x128xf32>
    %401 = arith.addf %400, %399 : vector<2x128xf32>
    %cst_127 = arith.constant 1.000000e+00 : f32
    %402 = vector.broadcast %cst_127 : f32 to vector<2x128xf32>
    %403 = arith.divf %402, %401 : vector<2x128xf32>
    %404 = math.tanh %396 : vector<2x128xf32>
    %405 = vector.extract_strided_slice %403 {offsets = [0, 0], sizes = [2, 32], strides = [1, 1]} : vector<2x128xf32> to vector<2x32xf32>
    %406 = vector.extract_strided_slice %403 {offsets = [0, 32], sizes = [2, 32], strides = [1, 1]} : vector<2x128xf32> to vector<2x32xf32>
    %407 = vector.extract_strided_slice %404 {offsets = [0, 64], sizes = [2, 32], strides = [1, 1]} : vector<2x128xf32> to vector<2x32xf32>
    %408 = vector.extract_strided_slice %403 {offsets = [0, 96], sizes = [2, 32], strides = [1, 1]} : vector<2x128xf32> to vector<2x32xf32>
    %409 = arith.mulf %406, %386 : vector<2x32xf32>
    %410 = arith.mulf %405, %407 : vector<2x32xf32>
    %411 = arith.addf %409, %410 : vector<2x32xf32>
    %412 = math.tanh %411 : vector<2x32xf32>
    %413 = arith.mulf %408, %412 : vector<2x32xf32>
    %414 = arith.index_cast %392 : i32 to index
    %c0_128 = arith.constant 0 : index
    %415 = vector.load %arg5[%414, %c0_128] : memref<16x32xf32, #tpu.memory_space<vmem>>, vector<2x32xf32>
    tpu.vector_store %arg5[%414, %c0_128], %413 {strides = array<i32>} : memref<16x32xf32, #tpu.memory_space<vmem>>, vector<2x32xf32>,
    %c3_i32_129 = arith.constant 3 : i32
    %c2_i32_130 = arith.constant 2 : i32
    %416 = arith.muli %c3_i32_129, %c2_i32_130 : i32
    %417 = tpu.assume_multiple %416, 2 : i32
    %418 = arith.index_cast %417 : i32 to index
    %c0_131 = arith.constant 0 : index
    %419 = vector.load %arg4[%418, %c0_131] : memref<16x128xf32, #tpu.memory_space<vmem>>, vector<2x128xf32>
    %cst_132 = arith.constant dense<0.000000e+00> : vector<2x128xf32>
    %420 = tpu.matmul %413, %6, %cst_132 {dimension_numbers = #tpu.dot_dimension_numbers<[1], [0], [0], [1], [0, 0, 1, 1], [], []>} : vector<2x32xf32>, vector<32x128xf32>, vector<2x128xf32> -> vector<2x128xf32>
    %421 = arith.addf %419, %420 : vector<2x128xf32>
    %cst_133 = arith.constant 0.000000e+00 : f32
    %422 = vector.broadcast %cst_133 : f32 to vector<2x128xf32>
    %423 = arith.subf %422, %421 : vector<2x128xf32>
    %424 = math.exp %423 : vector<2x128xf32>
    %cst_134 = arith.constant 1.000000e+00 : f32
    %425 = vector.broadcast %cst_134 : f32 to vector<2x128xf32>
    %426 = arith.addf %425, %424 : vector<2x128xf32>
    %cst_135 = arith.constant 1.000000e+00 : f32
    %427 = vector.broadcast %cst_135 : f32 to vector<2x128xf32>
    %428 = arith.divf %427, %426 : vector<2x128xf32>
    %429 = math.tanh %421 : vector<2x128xf32>
    %430 = vector.extract_strided_slice %428 {offsets = [0, 0], sizes = [2, 32], strides = [1, 1]} : vector<2x128xf32> to vector<2x32xf32>
    %431 = vector.extract_strided_slice %428 {offsets = [0, 32], sizes = [2, 32], strides = [1, 1]} : vector<2x128xf32> to vector<2x32xf32>
    %432 = vector.extract_strided_slice %429 {offsets = [0, 64], sizes = [2, 32], strides = [1, 1]} : vector<2x128xf32> to vector<2x32xf32>
    %433 = vector.extract_strided_slice %428 {offsets = [0, 96], sizes = [2, 32], strides = [1, 1]} : vector<2x128xf32> to vector<2x32xf32>
    %434 = arith.mulf %431, %411 : vector<2x32xf32>
    %435 = arith.mulf %430, %432 : vector<2x32xf32>
    %436 = arith.addf %434, %435 : vector<2x32xf32>
    %437 = math.tanh %436 : vector<2x32xf32>
    %438 = arith.mulf %433, %437 : vector<2x32xf32>
    %439 = arith.index_cast %417 : i32 to index
    %c0_136 = arith.constant 0 : index
    %440 = vector.load %arg5[%439, %c0_136] : memref<16x32xf32, #tpu.memory_space<vmem>>, vector<2x32xf32>
    tpu.vector_store %arg5[%439, %c0_136], %438 {strides = array<i32>} : memref<16x32xf32, #tpu.memory_space<vmem>>, vector<2x32xf32>,
    %c4_i32_137 = arith.constant 4 : i32
    %c2_i32_138 = arith.constant 2 : i32
    %441 = arith.muli %c4_i32_137, %c2_i32_138 : i32
    %442 = tpu.assume_multiple %441, 2 : i32
    %443 = arith.index_cast %442 : i32 to index
    %c0_139 = arith.constant 0 : index
    %444 = vector.load %arg4[%443, %c0_139] : memref<16x128xf32, #tpu.memory_space<vmem>>, vector<2x128xf32>
    %cst_140 = arith.constant dense<0.000000e+00> : vector<2x128xf32>
    %445 = tpu.matmul %438, %6, %cst_140 {dimension_numbers = #tpu.dot_dimension_numbers<[1], [0], [0], [1], [0, 0, 1, 1], [], []>} : vector<2x32xf32>, vector<32x128xf32>, vector<2x128xf32> -> vector<2x128xf32>
    %446 = arith.addf %444, %445 : vector<2x128xf32>
    %cst_141 = arith.constant 0.000000e+00 : f32
    %447 = vector.broadcast %cst_141 : f32 to vector<2x128xf32>
    %448 = arith.subf %447, %446 : vector<2x128xf32>
    %449 = math.exp %448 : vector<2x128xf32>
    %cst_142 = arith.constant 1.000000e+00 : f32
    %450 = vector.broadcast %cst_142 : f32 to vector<2x128xf32>
    %451 = arith.addf %450, %449 : vector<2x128xf32>
    %cst_143 = arith.constant 1.000000e+00 : f32
    %452 = vector.broadcast %cst_143 : f32 to vector<2x128xf32>
    %453 = arith.divf %452, %451 : vector<2x128xf32>
    %454 = math.tanh %446 : vector<2x128xf32>
    %455 = vector.extract_strided_slice %453 {offsets = [0, 0], sizes = [2, 32], strides = [1, 1]} : vector<2x128xf32> to vector<2x32xf32>
    %456 = vector.extract_strided_slice %453 {offsets = [0, 32], sizes = [2, 32], strides = [1, 1]} : vector<2x128xf32> to vector<2x32xf32>
    %457 = vector.extract_strided_slice %454 {offsets = [0, 64], sizes = [2, 32], strides = [1, 1]} : vector<2x128xf32> to vector<2x32xf32>
    %458 = vector.extract_strided_slice %453 {offsets = [0, 96], sizes = [2, 32], strides = [1, 1]} : vector<2x128xf32> to vector<2x32xf32>
    %459 = arith.mulf %456, %436 : vector<2x32xf32>
    %460 = arith.mulf %455, %457 : vector<2x32xf32>
    %461 = arith.addf %459, %460 : vector<2x32xf32>
    %462 = math.tanh %461 : vector<2x32xf32>
    %463 = arith.mulf %458, %462 : vector<2x32xf32>
    %464 = arith.index_cast %442 : i32 to index
    %c0_144 = arith.constant 0 : index
    %465 = vector.load %arg5[%464, %c0_144] : memref<16x32xf32, #tpu.memory_space<vmem>>, vector<2x32xf32>
    tpu.vector_store %arg5[%464, %c0_144], %463 {strides = array<i32>} : memref<16x32xf32, #tpu.memory_space<vmem>>, vector<2x32xf32>,
    %c5_i32_145 = arith.constant 5 : i32
    %c2_i32_146 = arith.constant 2 : i32
    %466 = arith.muli %c5_i32_145, %c2_i32_146 : i32
    %467 = tpu.assume_multiple %466, 2 : i32
    %468 = arith.index_cast %467 : i32 to index
    %c0_147 = arith.constant 0 : index
    %469 = vector.load %arg4[%468, %c0_147] : memref<16x128xf32, #tpu.memory_space<vmem>>, vector<2x128xf32>
    %cst_148 = arith.constant dense<0.000000e+00> : vector<2x128xf32>
    %470 = tpu.matmul %463, %6, %cst_148 {dimension_numbers = #tpu.dot_dimension_numbers<[1], [0], [0], [1], [0, 0, 1, 1], [], []>} : vector<2x32xf32>, vector<32x128xf32>, vector<2x128xf32> -> vector<2x128xf32>
    %471 = arith.addf %469, %470 : vector<2x128xf32>
    %cst_149 = arith.constant 0.000000e+00 : f32
    %472 = vector.broadcast %cst_149 : f32 to vector<2x128xf32>
    %473 = arith.subf %472, %471 : vector<2x128xf32>
    %474 = math.exp %473 : vector<2x128xf32>
    %cst_150 = arith.constant 1.000000e+00 : f32
    %475 = vector.broadcast %cst_150 : f32 to vector<2x128xf32>
    %476 = arith.addf %475, %474 : vector<2x128xf32>
    %cst_151 = arith.constant 1.000000e+00 : f32
    %477 = vector.broadcast %cst_151 : f32 to vector<2x128xf32>
    %478 = arith.divf %477, %476 : vector<2x128xf32>
    %479 = math.tanh %471 : vector<2x128xf32>
    %480 = vector.extract_strided_slice %478 {offsets = [0, 0], sizes = [2, 32], strides = [1, 1]} : vector<2x128xf32> to vector<2x32xf32>
    %481 = vector.extract_strided_slice %478 {offsets = [0, 32], sizes = [2, 32], strides = [1, 1]} : vector<2x128xf32> to vector<2x32xf32>
    %482 = vector.extract_strided_slice %479 {offsets = [0, 64], sizes = [2, 32], strides = [1, 1]} : vector<2x128xf32> to vector<2x32xf32>
    %483 = vector.extract_strided_slice %478 {offsets = [0, 96], sizes = [2, 32], strides = [1, 1]} : vector<2x128xf32> to vector<2x32xf32>
    %484 = arith.mulf %481, %461 : vector<2x32xf32>
    %485 = arith.mulf %480, %482 : vector<2x32xf32>
    %486 = arith.addf %484, %485 : vector<2x32xf32>
    %487 = math.tanh %486 : vector<2x32xf32>
    %488 = arith.mulf %483, %487 : vector<2x32xf32>
    %489 = arith.index_cast %467 : i32 to index
    %c0_152 = arith.constant 0 : index
    %490 = vector.load %arg5[%489, %c0_152] : memref<16x32xf32, #tpu.memory_space<vmem>>, vector<2x32xf32>
    tpu.vector_store %arg5[%489, %c0_152], %488 {strides = array<i32>} : memref<16x32xf32, #tpu.memory_space<vmem>>, vector<2x32xf32>,
    %c6_i32_153 = arith.constant 6 : i32
    %c2_i32_154 = arith.constant 2 : i32
    %491 = arith.muli %c6_i32_153, %c2_i32_154 : i32
    %492 = tpu.assume_multiple %491, 2 : i32
    %493 = arith.index_cast %492 : i32 to index
    %c0_155 = arith.constant 0 : index
    %494 = vector.load %arg4[%493, %c0_155] : memref<16x128xf32, #tpu.memory_space<vmem>>, vector<2x128xf32>
    %cst_156 = arith.constant dense<0.000000e+00> : vector<2x128xf32>
    %495 = tpu.matmul %488, %6, %cst_156 {dimension_numbers = #tpu.dot_dimension_numbers<[1], [0], [0], [1], [0, 0, 1, 1], [], []>} : vector<2x32xf32>, vector<32x128xf32>, vector<2x128xf32> -> vector<2x128xf32>
    %496 = arith.addf %494, %495 : vector<2x128xf32>
    %cst_157 = arith.constant 0.000000e+00 : f32
    %497 = vector.broadcast %cst_157 : f32 to vector<2x128xf32>
    %498 = arith.subf %497, %496 : vector<2x128xf32>
    %499 = math.exp %498 : vector<2x128xf32>
    %cst_158 = arith.constant 1.000000e+00 : f32
    %500 = vector.broadcast %cst_158 : f32 to vector<2x128xf32>
    %501 = arith.addf %500, %499 : vector<2x128xf32>
    %cst_159 = arith.constant 1.000000e+00 : f32
    %502 = vector.broadcast %cst_159 : f32 to vector<2x128xf32>
    %503 = arith.divf %502, %501 : vector<2x128xf32>
    %504 = math.tanh %496 : vector<2x128xf32>
    %505 = vector.extract_strided_slice %503 {offsets = [0, 0], sizes = [2, 32], strides = [1, 1]} : vector<2x128xf32> to vector<2x32xf32>
    %506 = vector.extract_strided_slice %503 {offsets = [0, 32], sizes = [2, 32], strides = [1, 1]} : vector<2x128xf32> to vector<2x32xf32>
    %507 = vector.extract_strided_slice %504 {offsets = [0, 64], sizes = [2, 32], strides = [1, 1]} : vector<2x128xf32> to vector<2x32xf32>
    %508 = vector.extract_strided_slice %503 {offsets = [0, 96], sizes = [2, 32], strides = [1, 1]} : vector<2x128xf32> to vector<2x32xf32>
    %509 = arith.mulf %506, %486 : vector<2x32xf32>
    %510 = arith.mulf %505, %507 : vector<2x32xf32>
    %511 = arith.addf %509, %510 : vector<2x32xf32>
    %512 = math.tanh %511 : vector<2x32xf32>
    %513 = arith.mulf %508, %512 : vector<2x32xf32>
    %514 = arith.index_cast %492 : i32 to index
    %c0_160 = arith.constant 0 : index
    %515 = vector.load %arg5[%514, %c0_160] : memref<16x32xf32, #tpu.memory_space<vmem>>, vector<2x32xf32>
    tpu.vector_store %arg5[%514, %c0_160], %513 {strides = array<i32>} : memref<16x32xf32, #tpu.memory_space<vmem>>, vector<2x32xf32>,
    %c7_i32_161 = arith.constant 7 : i32
    %c2_i32_162 = arith.constant 2 : i32
    %516 = arith.muli %c7_i32_161, %c2_i32_162 : i32
    %517 = tpu.assume_multiple %516, 2 : i32
    %518 = arith.index_cast %517 : i32 to index
    %c0_163 = arith.constant 0 : index
    %519 = vector.load %arg4[%518, %c0_163] : memref<16x128xf32, #tpu.memory_space<vmem>>, vector<2x128xf32>
    %cst_164 = arith.constant dense<0.000000e+00> : vector<2x128xf32>
    %520 = tpu.matmul %513, %6, %cst_164 {dimension_numbers = #tpu.dot_dimension_numbers<[1], [0], [0], [1], [0, 0, 1, 1], [], []>} : vector<2x32xf32>, vector<32x128xf32>, vector<2x128xf32> -> vector<2x128xf32>
    %521 = arith.addf %519, %520 : vector<2x128xf32>
    %cst_165 = arith.constant 0.000000e+00 : f32
    %522 = vector.broadcast %cst_165 : f32 to vector<2x128xf32>
    %523 = arith.subf %522, %521 : vector<2x128xf32>
    %524 = math.exp %523 : vector<2x128xf32>
    %cst_166 = arith.constant 1.000000e+00 : f32
    %525 = vector.broadcast %cst_166 : f32 to vector<2x128xf32>
    %526 = arith.addf %525, %524 : vector<2x128xf32>
    %cst_167 = arith.constant 1.000000e+00 : f32
    %527 = vector.broadcast %cst_167 : f32 to vector<2x128xf32>
    %528 = arith.divf %527, %526 : vector<2x128xf32>
    %529 = math.tanh %521 : vector<2x128xf32>
    %530 = vector.extract_strided_slice %528 {offsets = [0, 0], sizes = [2, 32], strides = [1, 1]} : vector<2x128xf32> to vector<2x32xf32>
    %531 = vector.extract_strided_slice %528 {offsets = [0, 32], sizes = [2, 32], strides = [1, 1]} : vector<2x128xf32> to vector<2x32xf32>
    %532 = vector.extract_strided_slice %529 {offsets = [0, 64], sizes = [2, 32], strides = [1, 1]} : vector<2x128xf32> to vector<2x32xf32>
    %533 = vector.extract_strided_slice %528 {offsets = [0, 96], sizes = [2, 32], strides = [1, 1]} : vector<2x128xf32> to vector<2x32xf32>
    %534 = arith.mulf %531, %511 : vector<2x32xf32>
    %535 = arith.mulf %530, %532 : vector<2x32xf32>
    %536 = arith.addf %534, %535 : vector<2x32xf32>
    %537 = math.tanh %536 : vector<2x32xf32>
    %538 = arith.mulf %533, %537 : vector<2x32xf32>
    %539 = arith.index_cast %517 : i32 to index
    %c0_168 = arith.constant 0 : index
    %540 = vector.load %arg5[%539, %c0_168] : memref<16x32xf32, #tpu.memory_space<vmem>>, vector<2x32xf32>
    tpu.vector_store %arg5[%539, %c0_168], %538 {strides = array<i32>} : memref<16x32xf32, #tpu.memory_space<vmem>>, vector<2x32xf32>,
    %c8_i32_169 = arith.constant 8 : i32
    %c0_170 = arith.constant 0 : index
    %c0_171 = arith.constant 0 : index
    %541 = vector.load %arg5[%c0_170, %c0_171] : memref<16x32xf32, #tpu.memory_space<vmem>>, vector<16x32xf32>
    %542 = vector.extract_strided_slice %541 {offsets = [0, 0], sizes = [16, 16], strides = [1, 1]} : vector<16x32xf32> to vector<16x16xf32>
    %543 = vector.extract_strided_slice %541 {offsets = [14, 16], sizes = [2, 16], strides = [1, 1]} : vector<16x32xf32> to vector<2x16xf32>
    %544 = vector.extract_strided_slice %541 {offsets = [12, 16], sizes = [2, 16], strides = [1, 1]} : vector<16x32xf32> to vector<2x16xf32>
    %545 = vector.extract_strided_slice %541 {offsets = [10, 16], sizes = [2, 16], strides = [1, 1]} : vector<16x32xf32> to vector<2x16xf32>
    %546 = vector.extract_strided_slice %541 {offsets = [8, 16], sizes = [2, 16], strides = [1, 1]} : vector<16x32xf32> to vector<2x16xf32>
    %547 = vector.extract_strided_slice %541 {offsets = [6, 16], sizes = [2, 16], strides = [1, 1]} : vector<16x32xf32> to vector<2x16xf32>
    %548 = vector.extract_strided_slice %541 {offsets = [4, 16], sizes = [2, 16], strides = [1, 1]} : vector<16x32xf32> to vector<2x16xf32>
    %549 = vector.extract_strided_slice %541 {offsets = [2, 16], sizes = [2, 16], strides = [1, 1]} : vector<16x32xf32> to vector<2x16xf32>
    %550 = vector.extract_strided_slice %541 {offsets = [0, 16], sizes = [2, 16], strides = [1, 1]} : vector<16x32xf32> to vector<2x16xf32>
    %551 = tpu.concatenate %543, %544, %545, %546, %547, %548, %549, %550 in 0 : vector<2x16xf32>, vector<2x16xf32>, vector<2x16xf32>, vector<2x16xf32>, vector<2x16xf32>, vector<2x16xf32>, vector<2x16xf32>, vector<2x16xf32> -> vector<16x16xf32>
    %552 = tpu.concatenate %542, %551 in 1 : vector<16x16xf32>, vector<16x16xf32> -> vector<16x32xf32>
    %cst_172 = arith.constant dense<0.000000e+00> : vector<16x64xf32>
    %553 = tpu.matmul %552, %8, %cst_172 {dimension_numbers = #tpu.dot_dimension_numbers<[1], [0], [0], [1], [0, 0, 1, 1], [], []>} : vector<16x32xf32>, vector<32x64xf32>, vector<16x64xf32> -> vector<16x64xf32>
    %554 = vector.broadcast %9 : vector<1x64xf32> to vector<16x64xf32>
    %555 = arith.addf %553, %554 : vector<16x64xf32>
    %cst_173 = arith.constant 0.000000e+00 : f32
    %556 = vector.broadcast %cst_173 : f32 to vector<16x64xf32>
    %557 = arith.maximumf %555, %556 : vector<16x64xf32>
    %558 = vector.broadcast %10 : vector<1x64xf32> to vector<16x64xf32>
    %559 = arith.mulf %557, %558 : vector<16x64xf32>
    %cst_174 = arith.constant dense<0.000000e+00> : vector<16xf32>
    %560 = vector.multi_reduction <add>, %559, %cst_174 [1] : vector<16x64xf32> to vector<16xf32>
    %561 = vector.shape_cast %560 : vector<16xf32> to vector<16x1xf32>
    %562 = vector.broadcast %13 : vector<1x1xf32> to vector<16x1xf32>
    %563 = arith.addf %561, %562 : vector<16x1xf32>
    %564 = vector.extract_strided_slice %563 {offsets = [0, 0], sizes = [2, 1], strides = [1, 1]} : vector<16x1xf32> to vector<2x1xf32>
    %565 = vector.extract_strided_slice %563 {offsets = [2, 0], sizes = [2, 1], strides = [1, 1]} : vector<16x1xf32> to vector<2x1xf32>
    %566 = arith.maximumf %564, %565 : vector<2x1xf32>
    %567 = vector.extract_strided_slice %563 {offsets = [4, 0], sizes = [2, 1], strides = [1, 1]} : vector<16x1xf32> to vector<2x1xf32>
    %568 = arith.maximumf %566, %567 : vector<2x1xf32>
    %569 = vector.extract_strided_slice %563 {offsets = [6, 0], sizes = [2, 1], strides = [1, 1]} : vector<16x1xf32> to vector<2x1xf32>
    %570 = arith.maximumf %568, %569 : vector<2x1xf32>
    %571 = vector.extract_strided_slice %563 {offsets = [8, 0], sizes = [2, 1], strides = [1, 1]} : vector<16x1xf32> to vector<2x1xf32>
    %572 = arith.maximumf %570, %571 : vector<2x1xf32>
    %573 = vector.extract_strided_slice %563 {offsets = [10, 0], sizes = [2, 1], strides = [1, 1]} : vector<16x1xf32> to vector<2x1xf32>
    %574 = arith.maximumf %572, %573 : vector<2x1xf32>
    %575 = vector.extract_strided_slice %563 {offsets = [12, 0], sizes = [2, 1], strides = [1, 1]} : vector<16x1xf32> to vector<2x1xf32>
    %576 = arith.maximumf %574, %575 : vector<2x1xf32>
    %577 = vector.extract_strided_slice %563 {offsets = [14, 0], sizes = [2, 1], strides = [1, 1]} : vector<16x1xf32> to vector<2x1xf32>
    %578 = arith.maximumf %576, %577 : vector<2x1xf32>
    %cst_175 = arith.constant 0.000000e+00 : f32
    %579 = vector.broadcast %cst_175 : f32 to vector<2x32xf32>
    %cst_176 = arith.constant 0.000000e+00 : f32
    %580 = vector.broadcast %cst_176 : f32 to vector<2x1xf32>
    %581 = vector.extract_strided_slice %563 {offsets = [0, 0], sizes = [2, 1], strides = [1, 1]} : vector<16x1xf32> to vector<2x1xf32>
    %582 = arith.subf %581, %578 : vector<2x1xf32>
    %583 = math.exp %582 : vector<2x1xf32>
    %584 = arith.addf %580, %583 : vector<2x1xf32>
    %585 = vector.extract_strided_slice %552 {offsets = [0, 0], sizes = [2, 32], strides = [1, 1]} : vector<16x32xf32> to vector<2x32xf32>
    %586 = vector.broadcast %583 : vector<2x1xf32> to vector<2x32xf32>
    %587 = arith.mulf %586, %585 : vector<2x32xf32>
    %588 = arith.addf %579, %587 : vector<2x32xf32>
    %589 = vector.extract_strided_slice %563 {offsets = [2, 0], sizes = [2, 1], strides = [1, 1]} : vector<16x1xf32> to vector<2x1xf32>
    %590 = arith.subf %589, %578 : vector<2x1xf32>
    %591 = math.exp %590 : vector<2x1xf32>
    %592 = arith.addf %584, %591 : vector<2x1xf32>
    %593 = vector.extract_strided_slice %552 {offsets = [2, 0], sizes = [2, 32], strides = [1, 1]} : vector<16x32xf32> to vector<2x32xf32>
    %594 = vector.broadcast %591 : vector<2x1xf32> to vector<2x32xf32>
    %595 = arith.mulf %594, %593 : vector<2x32xf32>
    %596 = arith.addf %588, %595 : vector<2x32xf32>
    %597 = vector.extract_strided_slice %563 {offsets = [4, 0], sizes = [2, 1], strides = [1, 1]} : vector<16x1xf32> to vector<2x1xf32>
    %598 = arith.subf %597, %578 : vector<2x1xf32>
    %599 = math.exp %598 : vector<2x1xf32>
    %600 = arith.addf %592, %599 : vector<2x1xf32>
    %601 = vector.extract_strided_slice %552 {offsets = [4, 0], sizes = [2, 32], strides = [1, 1]} : vector<16x32xf32> to vector<2x32xf32>
    %602 = vector.broadcast %599 : vector<2x1xf32> to vector<2x32xf32>
    %603 = arith.mulf %602, %601 : vector<2x32xf32>
    %604 = arith.addf %596, %603 : vector<2x32xf32>
    %605 = vector.extract_strided_slice %563 {offsets = [6, 0], sizes = [2, 1], strides = [1, 1]} : vector<16x1xf32> to vector<2x1xf32>
    %606 = arith.subf %605, %578 : vector<2x1xf32>
    %607 = math.exp %606 : vector<2x1xf32>
    %608 = arith.addf %600, %607 : vector<2x1xf32>
    %609 = vector.extract_strided_slice %552 {offsets = [6, 0], sizes = [2, 32], strides = [1, 1]} : vector<16x32xf32> to vector<2x32xf32>
    %610 = vector.broadcast %607 : vector<2x1xf32> to vector<2x32xf32>
    %611 = arith.mulf %610, %609 : vector<2x32xf32>
    %612 = arith.addf %604, %611 : vector<2x32xf32>
    %613 = vector.extract_strided_slice %563 {offsets = [8, 0], sizes = [2, 1], strides = [1, 1]} : vector<16x1xf32> to vector<2x1xf32>
    %614 = arith.subf %613, %578 : vector<2x1xf32>
    %615 = math.exp %614 : vector<2x1xf32>
    %616 = arith.addf %608, %615 : vector<2x1xf32>
    %617 = vector.extract_strided_slice %552 {offsets = [8, 0], sizes = [2, 32], strides = [1, 1]} : vector<16x32xf32> to vector<2x32xf32>
    %618 = vector.broadcast %615 : vector<2x1xf32> to vector<2x32xf32>
    %619 = arith.mulf %618, %617 : vector<2x32xf32>
    %620 = arith.addf %612, %619 : vector<2x32xf32>
    %621 = vector.extract_strided_slice %563 {offsets = [10, 0], sizes = [2, 1], strides = [1, 1]} : vector<16x1xf32> to vector<2x1xf32>
    %622 = arith.subf %621, %578 : vector<2x1xf32>
    %623 = math.exp %622 : vector<2x1xf32>
    %624 = arith.addf %616, %623 : vector<2x1xf32>
    %625 = vector.extract_strided_slice %552 {offsets = [10, 0], sizes = [2, 32], strides = [1, 1]} : vector<16x32xf32> to vector<2x32xf32>
    %626 = vector.broadcast %623 : vector<2x1xf32> to vector<2x32xf32>
    %627 = arith.mulf %626, %625 : vector<2x32xf32>
    %628 = arith.addf %620, %627 : vector<2x32xf32>
    %629 = vector.extract_strided_slice %563 {offsets = [12, 0], sizes = [2, 1], strides = [1, 1]} : vector<16x1xf32> to vector<2x1xf32>
    %630 = arith.subf %629, %578 : vector<2x1xf32>
    %631 = math.exp %630 : vector<2x1xf32>
    %632 = arith.addf %624, %631 : vector<2x1xf32>
    %633 = vector.extract_strided_slice %552 {offsets = [12, 0], sizes = [2, 32], strides = [1, 1]} : vector<16x32xf32> to vector<2x32xf32>
    %634 = vector.broadcast %631 : vector<2x1xf32> to vector<2x32xf32>
    %635 = arith.mulf %634, %633 : vector<2x32xf32>
    %636 = arith.addf %628, %635 : vector<2x32xf32>
    %637 = vector.extract_strided_slice %563 {offsets = [14, 0], sizes = [2, 1], strides = [1, 1]} : vector<16x1xf32> to vector<2x1xf32>
    %638 = arith.subf %637, %578 : vector<2x1xf32>
    %639 = math.exp %638 : vector<2x1xf32>
    %640 = arith.addf %632, %639 : vector<2x1xf32>
    %641 = vector.extract_strided_slice %552 {offsets = [14, 0], sizes = [2, 32], strides = [1, 1]} : vector<16x32xf32> to vector<2x32xf32>
    %642 = vector.broadcast %639 : vector<2x1xf32> to vector<2x32xf32>
    %643 = arith.mulf %642, %641 : vector<2x32xf32>
    %644 = arith.addf %636, %643 : vector<2x32xf32>
    %645 = vector.broadcast %640 : vector<2x1xf32> to vector<2x32xf32>
    %646 = arith.divf %644, %645 : vector<2x32xf32>
    %647 = vector.broadcast %11 : vector<1x32xf32> to vector<2x32xf32>
    %648 = arith.mulf %646, %647 : vector<2x32xf32>
    %cst_177 = arith.constant dense<0.000000e+00> : vector<2xf32>
    %649 = vector.multi_reduction <add>, %648, %cst_177 [1] : vector<2x32xf32> to vector<2xf32>
    %650 = vector.shape_cast %649 : vector<2xf32> to vector<2x1xf32>
    %651 = vector.broadcast %14 : vector<1x1xf32> to vector<2x1xf32>
    %652 = arith.addf %650, %651 : vector<2x1xf32>
    %cst_178 = arith.constant 0.000000e+00 : f32
    %653 = vector.broadcast %cst_178 : f32 to vector<2x1xf32>
    %654 = arith.subf %653, %652 : vector<2x1xf32>
    %655 = math.exp %654 : vector<2x1xf32>
    %cst_179 = arith.constant 1.000000e+00 : f32
    %656 = vector.broadcast %cst_179 : f32 to vector<2x1xf32>
    %657 = arith.addf %656, %655 : vector<2x1xf32>
    %cst_180 = arith.constant 1.000000e+00 : f32
    %658 = vector.broadcast %cst_180 : f32 to vector<2x1xf32>
    %659 = arith.divf %658, %657 : vector<2x1xf32>
    %c0_181 = arith.constant 0 : index
    %c0_182 = arith.constant 0 : index
    %660 = vector.load %arg2[%c0_181, %c0_182] : memref<2x1xf32, #tpu.memory_space<vmem>>, vector<2x1xf32>
    tpu.vector_store %arg2[%c0_181, %c0_182], %659 {strides = array<i32>} : memref<2x1xf32, #tpu.memory_space<vmem>>, vector<2x1xf32>,
    return
  }
}

</mosaic_0001>

<llo_original>
// kernel: xlsr_metric_predictor_full.1
$region0: #{xlsr_metric_predictor_full.1}
  #allocation0 [shape = 'u32[]', space=smem, size = 0x4, offset = 0x4, fixed_abs, tag = 'smem constant byte address 0x4 - core index']
  #allocation1 [shape = 'u32[144,128]{1,0:T(1,128)}', space=vmem, size = 0x12000, scoped, tag = 'internal scratch']
  #allocation2 [shape = 'f32[16,128]{1,0:T(8,128)}', space=vmem, size = 0x2000, scoped, tag = 'scratch operand']
  #allocation3 [shape = 'f32[16,32]{1,0:T(8,128)}', space=vmem, size = 0x2000, scoped, tag = 'scratch operand']
  %s0 = inlined_call_operand.vmem [shape: f32[16,16], index: 0, kind: input, shape index: {}]
  %s1 = inlined_call_operand.hbm [shape: f32[232,128], index: 1, kind: input, shape index: {}]
  %s2 = inlined_call_operand.vmem [shape: f32[2,1], index: 2, kind: output, shape index: {0}]
  %s3 = inlined_call_operand.vmem [shape: f32[16,32], index: 3, kind: output, shape index: {1}]
  %4 = xla_tuple %s2, %s3
  %s5 = sld [smem:[#allocation0]]
  $region30: #{xlsr_metric_predictor_full.1} parent=0
    _
  %s7 = ssub.s32 1, %s5
  %s8 = scalar_select 0, %s7, %s5
  $region1: #{xlsr_metric_predictor_full.1} parent=0
    #allocation4 [shape = 'u8[118784]{0}', space=vmem, size = 0x1d000, scoped, tag = 'input window, operand 1, single buffered']
    #allocation5 [shape = 's32[1]{0}', space=sflag, size = 0x4, scoped, tag = 'scoped memory for xlsr_metric_predictor_full.1']
    %9 = vsyncpa [#allocation5], 0
    // Predicated region
    $region2: #{xlsr_metric_predictor_full.1} parent=1 // pred_check
      _
    $region3: #{xlsr_metric_predictor_full.1} parent=1 // pred_check_branch
      %11 = sbr.rel (0) target = $region5
    $region4: #{xlsr_metric_predictor_full.1} parent=1 // pred_region
      _
    $region5: #{xlsr_metric_predictor_full.1} parent=1 // pred_fallthru
      _
    // Predicated region
    $region6: #{xlsr_metric_predictor_full.1} parent=1 // pred_check
      _
    $region7: #{xlsr_metric_predictor_full.1} parent=1 // pred_check_branch
      %13 = sbr.rel (0) target = $region9
    $region8: #{xlsr_metric_predictor_full.1} parent=1 // pred_region
      %s15 = ssub.s32 3712, 3712
      %16 = vsyncadd [#allocation5], %s15
      %s17 = sshll.u32 [#allocation4], 4
      %s18 = int_to_ptr.vmem [resolvable:$true] %s17
      %23 = dma.hbm_to_vmem [thread:$0]  %s1, 3712, %s18, [#allocation5], 128, 128, 8
    $region9: #{xlsr_metric_predictor_full.1} parent=1 // pred_fallthru
      _
    // Predicated region
    $region10: #{xlsr_metric_predictor_full.1} parent=1 // pred_check
      _
    $region11: #{xlsr_metric_predictor_full.1} parent=1 // pred_check_branch
      %25 = sbr.rel (0) target = $region13
    $region12: #{xlsr_metric_predictor_full.1} parent=1 // pred_region
      %26 = dma.done [#allocation5], 3712
    $region13: #{xlsr_metric_predictor_full.1} parent=1 // pred_fallthru
      _
    %v27 = vld [vmem:[#allocation4] sm:$0xff]
    %v28 = vld [vmem:[#allocation4 + $0x8] sm:$0xff]
    %v29 = vld [vmem:[#allocation4 + $0x10] sm:$0x1]
    %v30 = vld [vmem:[#allocation4 + $0x18] sm:$0xff]
    %v31 = vld [vmem:[#allocation4 + $0x20] sm:$0xff]
    %v32 = vld [vmem:[#allocation4 + $0x28] sm:$0xff]
    %v33 = vld [vmem:[#allocation4 + $0x30] sm:$0xff]
    %v34 = vld [vmem:[#allocation4 + $0x38] sm:$0xff]
    %v35 = vld [vmem:[#allocation4 + $0x40] sm:$0xff]
    %v36 = vld [vmem:[#allocation4 + $0x48] sm:$0xff]
    %v37 = vld [vmem:[#allocation4 + $0x50] sm:$0xff]
    %v38 = vld [vmem:[#allocation4 + $0x58] sm:$0x1]
    %v39 = vld [vmem:[#allocation4 + $0x60] sm:$0xff]
    %v40 = vld [vmem:[#allocation4 + $0x68] sm:$0xff]
    %v41 = vld [vmem:[#allocation4 + $0x70] sm:$0xff]
    %v42 = vld [vmem:[#allocation4 + $0x78] sm:$0xff]
    %v43 = vld [vmem:[#allocation4 + $0x80] sm:$0xff]
    %v44 = vld [vmem:[#allocation4 + $0x88] sm:$0xff]
    %v45 = vld [vmem:[#allocation4 + $0x90] sm:$0xff]
    %v46 = vld [vmem:[#allocation4 + $0x98] sm:$0xff]
    %v47 = vld [vmem:[#allocation4 + $0xa0] sm:$0x1]
    %v48 = vld [vmem:[#allocation4 + $0xa8] sm:$0xff]
    %v49 = vld [vmem:[#allocation4 + $0xb0] sm:$0xff]
    %v50 = vld [vmem:[#allocation4 + $0xb8] sm:$0xff]
    %v51 = vld [vmem:[#allocation4 + $0xc0] sm:$0xff]
    %v52 = vld [vmem:[#allocation4 + $0xc8] sm:$0x1]
    %v53 = vld [vmem:[#allocation4 + $0xd0] sm:$0x1]
    %v54 = vld [vmem:[#allocation4 + $0xd8] sm:$0x1]
    %v55 = vld [vmem:[#allocation4 + $0xe0] sm:$0x1]
    %v56 = vlaneseq
    %v57 = vand.u32 %v56, 127
    %v58 = vand.u32 %v57, 16
    %vm59 = vcmp.eq.s32.totalorder %v58, 0
    %v60 = vld [vmem:[%s0] sm:$0xff]
    %v61 = vld [vmem:[%s0 + $0x8] sm:$0xff]
    %v62 = vlaneseq
    %v63 = vshrl.u32 %v62, 7
    %v64 = vsub.s32 0, %v63
    %v65 = vrot.slane %v29, %v64
    %vm66 = vcmask 130048
    %v68 = vsel %vm66, %v60, 0
    %v71 = vsel %vm66, %v61, 0
    %73 = vmatprep.subr.mxu0 0.0
    %74 = vmatpush1.msra.mxu0 %v27
    %75 = vmatprep.subr.mxu0 0.0
    %76 = vmatpush1.msra.mxu0 %v28
    %77 = vmatprep.subr.mxu0 0.0
    %78 = vmatpush1.msra.mxu0 0.0
    %79 = vmatprep.subr.mxu0 0.0
    %80 = vmatpush1.msra.mxu0 0.0
    %81 = vmatprep.subr.mxu0 0.0
    %82 = vmatpush1.msra.mxu0 0.0
    %83 = vmatprep.subr.mxu0 0.0
    %84 = vmatpush1.msra.mxu0 0.0
    %85 = vmatprep.subr.mxu0 0.0
    %86 = vmatpush1.msra.mxu0 0.0
    %87 = vmatprep.subr.mxu0 0.0
    %88 = vmatpush1.msra.mxu0 0.0
    %89 = vmatprep.subr.mxu0 0.0
    %90 = vmatpush1.msra.mxu0 0.0
    %91 = vmatprep.subr.mxu0 0.0
    %92 = vmatpush1.msra.mxu0 0.0
    %93 = vmatprep.subr.mxu0 0.0
    %94 = vmatpush1.msra.mxu0 0.0
    %95 = vmatprep.subr.mxu0 0.0
    %96 = vmatpush1.msra.mxu0 0.0
    %97 = vmatprep.subr.mxu0 0.0
    %98 = vmatpush1.msra.mxu0 0.0
    %99 = vmatprep.subr.mxu0 0.0
    %100 = vmatpush1.msra.mxu0 0.0
    %101 = vmatprep.subr.mxu0 0.0
    %102 = vmatpush1.msra.mxu0 0.0
    %103 = vmatprep.subr.mxu0 0.0
    %104 = vmatpush1.msra.mxu0 0.0
    %105 = vmatprep.subr.mxu0 0.0
    %106 = vmatpush1.msra.mxu0 0.0
    %107 = vmatprep.subr.mxu0 0.0
    %108 = vmatpush1.msra.mxu0 0.0
    %109 = vmatprep.subr.mxu0 0.0
    %110 = vmatpush1.msra.mxu0 0.0
    %111 = vmatprep.subr.mxu0 0.0
    %112 = vmatpush1.msra.mxu0 0.0
    %113 = vmatprep.subr.mxu0 0.0
    %114 = vmatpush1.msra.mxu0 0.0
    %115 = vmatprep.subr.mxu0 0.0
    %116 = vmatpush1.msra.mxu0 0.0
    %117 = vmatprep.subr.mxu0 0.0
    %118 = vmatpush1.msra.mxu0 0.0
    %119 = vmatprep.subr.mxu0 0.0
    %120 = vmatpush1.msra.mxu0 0.0
    %121 = vmatprep.subr.mxu0 0.0
    %122 = vmatpush1.msra.mxu0 0.0
    %123 = vmatprep.subr.mxu0 0.0
    %124 = vmatpush1.msra.mxu0 0.0
    %125 = vmatprep.subr.mxu0 0.0
    %126 = vmatpush1.msra.mxu0 0.0
    %127 = vmatprep.subr.mxu0 0.0
    %128 = vmatpush1.msra.mxu0 0.0
    %129 = vmatprep.subr.mxu0 0.0
    %130 = vmatpush1.msra.mxu0 0.0
    %131 = vmatprep.subr.mxu0 0.0
    %132 = vmatpush1.msra.mxu0 0.0
    %133 = vmatprep.subr.mxu0 0.0
    %134 = vmatpush1.msra.mxu0 0.0
    %135 = vmatprep.subr.mxu0 0.0
    %136 = vmatpush1.msra.mxu0 0.0
    %137 = vmatprep.mubr.f32.mxu0 0.0
    %138 = vmatmul.mubr.f32.gmra.mrb[0].mxu0 %v68
    %v139 = vpop.f32.mrb[0].mxu0
    %v140 = vadd.f32 %v65, %v139
    %v141 = vpop.f32.mrb[0].mxu0
    %142 = vmatprep.mubr.f32.mxu0 0.0
    %143 = vmatmul.mubr.f32.gmra.mrb[0].mxu0 %v71
    %v144 = vpop.f32.mrb[0].mxu0
    %v145 = vadd.f32 %v65, %v144
    %v146 = vpop.f32.mrb[0].mxu0
    %147 = vdwg.mxu0
    %vm148 = vcmask 261120
    %149 = vst.msk [vmem:[%s3] sm:$0xff] %vm148, %v140
    %150 = vst.msk [vmem:[%s3 + $0x8] sm:$0xff] %vm148, %v145
    %v151 = vlaneseq
    %v152 = vshrl.u32 %v151, 7
    %v153 = vsub.s32 0, %v152
    %v154 = vrot.slane %v38, %v153
    %v156 = vsel %vm148, %v140, 0
    %v159 = vsel %vm148, %v145, 0
    %161 = vmatprep.subr.mxu0 0.0
    %162 = vmatpush1.msra.mxu0 %v30
    %163 = vmatprep.subr.mxu0 0.0
    %164 = vmatpush1.msra.mxu0 %v31
    %165 = vmatprep.subr.mxu0 0.0
    %166 = vmatpush1.msra.mxu0 %v32
    %167 = vmatprep.subr.mxu0 0.0
    %168 = vmatpush1.msra.mxu0 %v33
    %169 = vmatprep.subr.mxu0 0.0
    %170 = vmatpush1.msra.mxu0 0.0
    %171 = vmatprep.subr.mxu0 0.0
    %172 = vmatpush1.msra.mxu0 0.0
    %173 = vmatprep.subr.mxu0 0.0
    %174 = vmatpush1.msra.mxu0 0.0
    %175 = vmatprep.subr.mxu0 0.0
    %176 = vmatpush1.msra.mxu0 0.0
    %177 = vmatprep.subr.mxu0 0.0
    %178 = vmatpush1.msra.mxu0 0.0
    %179 = vmatprep.subr.mxu0 0.0
    %180 = vmatpush1.msra.mxu0 0.0
    %181 = vmatprep.subr.mxu0 0.0
    %182 = vmatpush1.msra.mxu0 0.0
    %183 = vmatprep.subr.mxu0 0.0
    %184 = vmatpush1.msra.mxu0 0.0
    %185 = vmatprep.subr.mxu0 0.0
    %186 = vmatpush1.msra.mxu0 0.0
    %187 = vmatprep.subr.mxu0 0.0
    %188 = vmatpush1.msra.mxu0 0.0
    %189 = vmatprep.subr.mxu0 0.0
    %190 = vmatpush1.msra.mxu0 0.0
    %191 = vmatprep.subr.mxu0 0.0
    %192 = vmatpush1.msra.mxu0 0.0
    %193 = vmatprep.subr.mxu0 0.0
    %194 = vmatpush1.msra.mxu0 0.0
    %195 = vmatprep.subr.mxu0 0.0
    %196 = vmatpush1.msra.mxu0 0.0
    %197 = vmatprep.subr.mxu0 0.0
    %198 = vmatpush1.msra.mxu0 0.0
    %199 = vmatprep.subr.mxu0 0.0
    %200 = vmatpush1.msra.mxu0 0.0
    %201 = vmatprep.subr.mxu0 0.0
    %202 = vmatpush1.msra.mxu0 0.0
    %203 = vmatprep.subr.mxu0 0.0
    %204 = vmatpush1.msra.mxu0 0.0
    %205 = vmatprep.subr.mxu0 0.0
    %206 = vmatpush1.msra.mxu0 0.0
    %207 = vmatprep.subr.mxu0 0.0
    %208 = vmatpush1.msra.mxu0 0.0
    %209 = vmatprep.subr.mxu0 0.0
    %210 = vmatpush1.msra.mxu0 0.0
    %211 = vmatprep.subr.mxu0 0.0
    %212 = vmatpush1.msra.mxu0 0.0
    %213 = vmatprep.subr.mxu0 0.0
    %214 = vmatpush1.msra.mxu0 0.0
    %215 = vmatprep.subr.mxu0 0.0
    %216 = vmatpush1.msra.mxu0 0.0
    %217 = vmatprep.subr.mxu0 0.0
    %218 = vmatpush1.msra.mxu0 0.0
    %219 = vmatprep.subr.mxu0 0.0
    %220 = vmatpush1.msra.mxu0 0.0
    %221 = vmatprep.subr.mxu0 0.0
    %222 = vmatpush1.msra.mxu0 0.0
    %223 = vmatprep.subr.mxu0 0.0
    %224 = vmatpush1.msra.mxu0 0.0
    %225 = vmatprep.mubr.f32.mxu0 0.0
    %226 = vmatmul.mubr.f32.gmra.mrb[0].mxu0 %v156
    %v227 = vpop.f32.mrb[0].mxu0
    %v228 = vadd.f32 %v154, %v227
    %v229 = vpop.f32.mrb[0].mxu0
    %230 = vmatprep.mubr.f32.mxu0 0.0
    %231 = vmatmul.mubr.f32.gmra.mrb[0].mxu0 %v159
    %v232 = vpop.f32.mrb[0].mxu0
    %v233 = vadd.f32 %v154, %v232
    %v234 = vpop.f32.mrb[0].mxu0
    %235 = vdwg.mxu0
    %v236 = vsel %vm59, 1, 0
    %vm237 = vcmp.eq.s32.totalorder %v236, 1
    %v239 = vrot.slane %v233, 6
    %v241 = vsel %vm237, %v228, %v239
    %242 = vst [vmem:[#allocation2] sm:$0x3] %v241
    %v243 = vrot.slane %v233, 2
    %v245 = vsel %vm237, %v228, %v243
    %246 = vst [vmem:[#allocation2] sm:$0xc] %v245
    %247 = vst [vmem:[#allocation2] sm:$0x30] %v241
    %248 = vst [vmem:[#allocation2] sm:$0xc0] %v245
    %v250 = vrot.slane %v228, 6
    %v252 = vsel %vm237, %v233, %v250
    %253 = vst [vmem:[#allocation2 + $0x8] sm:$0x3] %v252
    %v254 = vrot.slane %v228, 2
    %v256 = vsel %vm237, %v233, %v254
    %257 = vst [vmem:[#allocation2 + $0x8] sm:$0xc] %v256
    %258 = vst [vmem:[#allocation2 + $0x8] sm:$0x30] %v252
    %259 = vst [vmem:[#allocation2 + $0x8] sm:$0xc0] %v256
    %v260 = vld [vmem:[#allocation2] sm:$0x3]
    %v262 = vsel %vm148, 0.0, 0
    %264 = vmatprep.subr.mxu0 0.0
    %265 = vmatpush1.msra.mxu0 %v34
    %266 = vmatprep.subr.mxu0 0.0
    %267 = vmatpush1.msra.mxu0 %v35
    %268 = vmatprep.subr.mxu0 0.0
    %269 = vmatpush1.msra.mxu0 %v36
    %270 = vmatprep.subr.mxu0 0.0
    %271 = vmatpush1.msra.mxu0 %v37
    %272 = vmatprep.subr.mxu0 0.0
    %273 = vmatpush1.msra.mxu0 0.0
    %274 = vmatprep.subr.mxu0 0.0
    %275 = vmatpush1.msra.mxu0 0.0
    %276 = vmatprep.subr.mxu0 0.0
    %277 = vmatpush1.msra.mxu0 0.0
    %278 = vmatprep.subr.mxu0 0.0
    %279 = vmatpush1.msra.mxu0 0.0
    %280 = vmatprep.subr.mxu0 0.0
    %281 = vmatpush1.msra.mxu0 0.0
    %282 = vmatprep.subr.mxu0 0.0
    %283 = vmatpush1.msra.mxu0 0.0
    %284 = vmatprep.subr.mxu0 0.0
    %285 = vmatpush1.msra.mxu0 0.0
    %286 = vmatprep.subr.mxu0 0.0
    %287 = vmatpush1.msra.mxu0 0.0
    %288 = vmatprep.subr.mxu0 0.0
    %289 = vmatpush1.msra.mxu0 0.0
    %290 = vmatprep.subr.mxu0 0.0
    %291 = vmatpush1.msra.mxu0 0.0
    %292 = vmatprep.subr.mxu0 0.0
    %293 = vmatpush1.msra.mxu0 0.0
    %294 = vmatprep.subr.mxu0 0.0
    %295 = vmatpush1.msra.mxu0 0.0
    %296 = vmatprep.subr.mxu0 0.0
    %297 = vmatpush1.msra.mxu0 0.0
    %298 = vmatprep.subr.mxu0 0.0
    %299 = vmatpush1.msra.mxu0 0.0
    %300 = vmatprep.subr.mxu0 0.0
    %301 = vmatpush1.msra.mxu0 0.0
    %302 = vmatprep.subr.mxu0 0.0
    %303 = vmatpush1.msra.mxu0 0.0
    %304 = vmatprep.subr.mxu0 0.0
    %305 = vmatpush1.msra.mxu0 0.0
    %306 = vmatprep.subr.mxu0 0.0
    %307 = vmatpush1.msra.mxu0 0.0
    %308 = vmatprep.subr.mxu0 0.0
    %309 = vmatpush1.msra.mxu0 0.0
    %310 = vmatprep.subr.mxu0 0.0
    %311 = vmatpush1.msra.mxu0 0.0
    %312 = vmatprep.subr.mxu0 0.0
    %313 = vmatpush1.msra.mxu0 0.0
    %314 = vmatprep.subr.mxu0 0.0
    %315 = vmatpush1.msra.mxu0 0.0
    %316 = vmatprep.subr.mxu0 0.0
    %317 = vmatpush1.msra.mxu0 0.0
    %318 = vmatprep.subr.mxu0 0.0
    %319 = vmatpush1.msra.mxu0 0.0
    %320 = vmatprep.subr.mxu0 0.0
    %321 = vmatpush1.msra.mxu0 0.0
    %322 = vmatprep.subr.mxu0 0.0
    %323 = vmatpush1.msra.mxu0 0.0
    %324 = vmatprep.subr.mxu0 0.0
    %325 = vmatpush1.msra.mxu0 0.0
    %326 = vmatprep.subr.mxu0 0.0
    %327 = vmatpush1.msra.mxu0 0.0
    %328 = vmatprep.mubr.f32.mxu0 0.0
    %329 = vmatmul.mubr.f32.gmra.mrb[0].mxu0 %v262
    %v330 = vpop.f32.mrb[0].mxu0
    %v331 = vadd.f32 0.0, %v330
    %v332 = vpop.f32.mrb[0].mxu0
    %333 = vdwg.mxu0
    %v334 = vadd.f32 %v260, %v331
    %v335 = vsub.f32 0.0, %v334
    %v336 = vmul.f32 %v335, 1.442695
    %v337 = vpow.pop %v336
    %v338 = vadd.f32 %v337, 1.0
    %v339 = vrcp.pop %v338
    %v340 = vmul.f32 1.0, %v339
    %v341 = vtanh.pop %v334
    %v342 = vmul.f32 %v340, 0.0
    %344 = vrot.lane.b32.xlu0 %v341, 64
    %v345 = vpop.permute.xlu0 %344
    %v347 = vmul.f32 %v340, %v345
    %349 = vrot.lane.b32.xlu0 %v347, 32
    %v350 = vpop.permute.xlu0 %349
    %v352 = vadd.f32 %v342, %v350
    %v353 = vtanh.pop %v352
    %355 = vrot.lane.b32.xlu0 %v353, 64
    %v356 = vpop.permute.xlu0 %355
    %v358 = vmul.f32 %v340, %v356
    %360 = vrot.lane.b32.xlu0 %v358, 32
    %v361 = vpop.permute.xlu0 %360
    %vm363 = vcmask 254976
    %364 = vst.msk [vmem:[#allocation3] sm:$0x3] %vm363, %v361
    %s365 = scalar_lea.vmem [#allocation2], 2
    %v366 = vld [vmem:[%s365] sm:$0x3]
    %v367 = vsel %vm148, %v361, 0
    %369 = vmatprep.subr.mxu0 0.0
    %370 = vmatpush1.msra.mxu0 %v34
    %371 = vmatprep.subr.mxu0 0.0
    %372 = vmatpush1.msra.mxu0 %v35
    %373 = vmatprep.subr.mxu0 0.0
    %374 = vmatpush1.msra.mxu0 %v36
    %375 = vmatprep.subr.mxu0 0.0
    %376 = vmatpush1.msra.mxu0 %v37
    %377 = vmatprep.subr.mxu0 0.0
    %378 = vmatpush1.msra.mxu0 0.0
    %379 = vmatprep.subr.mxu0 0.0
    %380 = vmatpush1.msra.mxu0 0.0
    %381 = vmatprep.subr.mxu0 0.0
    %382 = vmatpush1.msra.mxu0 0.0
    %383 = vmatprep.subr.mxu0 0.0
    %384 = vmatpush1.msra.mxu0 0.0
    %385 = vmatprep.subr.mxu0 0.0
    %386 = vmatpush1.msra.mxu0 0.0
    %387 = vmatprep.subr.mxu0 0.0
    %388 = vmatpush1.msra.mxu0 0.0
    %389 = vmatprep.subr.mxu0 0.0
    %390 = vmatpush1.msra.mxu0 0.0
    %391 = vmatprep.subr.mxu0 0.0
    %392 = vmatpush1.msra.mxu0 0.0
    %393 = vmatprep.subr.mxu0 0.0
    %394 = vmatpush1.msra.mxu0 0.0
    %395 = vmatprep.subr.mxu0 0.0
    %396 = vmatpush1.msra.mxu0 0.0
    %397 = vmatprep.subr.mxu0 0.0
    %398 = vmatpush1.msra.mxu0 0.0
    %399 = vmatprep.subr.mxu0 0.0
    %400 = vmatpush1.msra.mxu0 0.0
    %401 = vmatprep.subr.mxu0 0.0
    %402 = vmatpush1.msra.mxu0 0.0
    %403 = vmatprep.subr.mxu0 0.0
    %404 = vmatpush1.msra.mxu0 0.0
    %405 = vmatprep.subr.mxu0 0.0
    %406 = vmatpush1.msra.mxu0 0.0
    %407 = vmatprep.subr.mxu0 0.0
    %408 = vmatpush1.msra.mxu0 0.0
    %409 = vmatprep.subr.mxu0 0.0
    %410 = vmatpush1.msra.mxu0 0.0
    %411 = vmatprep.subr.mxu0 0.0
    %412 = vmatpush1.msra.mxu0 0.0
    %413 = vmatprep.subr.mxu0 0.0
    %414 = vmatpush1.msra.mxu0 0.0
    %415 = vmatprep.subr.mxu0 0.0
    %416 = vmatpush1.msra.mxu0 0.0
    %417 = vmatprep.subr.mxu0 0.0
    %418 = vmatpush1.msra.mxu0 0.0
    %419 = vmatprep.subr.mxu0 0.0
    %420 = vmatpush1.msra.mxu0 0.0
    %421 = vmatprep.subr.mxu0 0.0
    %422 = vmatpush1.msra.mxu0 0.0
    %423 = vmatprep.subr.mxu0 0.0
    %424 = vmatpush1.msra.mxu0 0.0
    %425 = vmatprep.subr.mxu0 0.0
    %426 = vmatpush1.msra.mxu0 0.0
    %427 = vmatprep.subr.mxu0 0.0
    %428 = vmatpush1.msra.mxu0 0.0
    %429 = vmatprep.subr.mxu0 0.0
    %430 = vmatpush1.msra.mxu0 0.0
    %431 = vmatprep.subr.mxu0 0.0
    %432 = vmatpush1.msra.mxu0 0.0
    %433 = vmatprep.mubr.f32.mxu0 0.0
    %434 = vmatmul.mubr.f32.gmra.mrb[0].mxu0 %v367
    %v435 = vpop.f32.mrb[0].mxu0
    %v436 = vadd.f32 0.0, %v435
    %v437 = vpop.f32.mrb[0].mxu0
    %438 = vdwg.mxu0
    %v439 = vadd.f32 %v366, %v436
    %v440 = vsub.f32 0.0, %v439
    %v441 = vmul.f32 %v440, 1.442695
    %v442 = vpow.pop %v441
    %v443 = vadd.f32 %v442, 1.0
    %v444 = vrcp.pop %v443
    %v445 = vmul.f32 1.0, %v444
    %v446 = vtanh.pop %v439
    %v447 = vmul.f32 %v445, %v352
    %449 = vrot.lane.b32.xlu0 %v446, 64
    %v450 = vpop.permute.xlu0 %449
    %v452 = vmul.f32 %v445, %v450
    %454 = vrot.lane.b32.xlu0 %v452, 32
    %v455 = vpop.permute.xlu0 %454
    %v457 = vadd.f32 %v447, %v455
    %v458 = vtanh.pop %v457
    %460 = vrot.lane.b32.xlu0 %v458, 64
    %v461 = vpop.permute.xlu0 %460
    %v463 = vmul.f32 %v445, %v461
    %465 = vrot.lane.b32.xlu0 %v463, 32
    %v466 = vpop.permute.xlu0 %465
    %s468 = scalar_lea.vmem [#allocation3], 2
    %469 = vst.msk [vmem:[%s468] sm:$0x3] %vm363, %v466
    %s470 = scalar_lea.vmem [#allocation2], 4
    %v471 = vld [vmem:[%s470] sm:$0x3]
    %v472 = vsel %vm148, %v466, 0
    %474 = vmatprep.subr.mxu0 0.0
    %475 = vmatpush1.msra.mxu0 %v34
    %476 = vmatprep.subr.mxu0 0.0
    %477 = vmatpush1.msra.mxu0 %v35
    %478 = vmatprep.subr.mxu0 0.0
    %479 = vmatpush1.msra.mxu0 %v36
    %480 = vmatprep.subr.mxu0 0.0
    %481 = vmatpush1.msra.mxu0 %v37
    %482 = vmatprep.subr.mxu0 0.0
    %483 = vmatpush1.msra.mxu0 0.0
    %484 = vmatprep.subr.mxu0 0.0
    %485 = vmatpush1.msra.mxu0 0.0
    %486 = vmatprep.subr.mxu0 0.0
    %487 = vmatpush1.msra.mxu0 0.0
    %488 = vmatprep.subr.mxu0 0.0
    %489 = vmatpush1.msra.mxu0 0.0
    %490 = vmatprep.subr.mxu0 0.0
    %491 = vmatpush1.msra.mxu0 0.0
    %492 = vmatprep.subr.mxu0 0.0
    %493 = vmatpush1.msra.mxu0 0.0
    %494 = vmatprep.subr.mxu0 0.0
    %495 = vmatpush1.msra.mxu0 0.0
    %496 = vmatprep.subr.mxu0 0.0
    %497 = vmatpush1.msra.mxu0 0.0
    %498 = vmatprep.subr.mxu0 0.0
    %499 = vmatpush1.msra.mxu0 0.0
    %500 = vmatprep.subr.mxu0 0.0
    %501 = vmatpush1.msra.mxu0 0.0
    %502 = vmatprep.subr.mxu0 0.0
    %503 = vmatpush1.msra.mxu0 0.0
    %504 = vmatprep.subr.mxu0 0.0
    %505 = vmatpush1.msra.mxu0 0.0
    %506 = vmatprep.subr.mxu0 0.0
    %507 = vmatpush1.msra.mxu0 0.0
    %508 = vmatprep.subr.mxu0 0.0
    %509 = vmatpush1.msra.mxu0 0.0
    %510 = vmatprep.subr.mxu0 0.0
    %511 = vmatpush1.msra.mxu0 0.0
    %512 = vmatprep.subr.mxu0 0.0
    %513 = vmatpush1.msra.mxu0 0.0
    %514 = vmatprep.subr.mxu0 0.0
    %515 = vmatpush1.msra.mxu0 0.0
    %516 = vmatprep.subr.mxu0 0.0
    %517 = vmatpush1.msra.mxu0 0.0
    %518 = vmatprep.subr.mxu0 0.0
    %519 = vmatpush1.msra.mxu0 0.0
    %520 = vmatprep.subr.mxu0 0.0
    %521 = vmatpush1.msra.mxu0 0.0
    %522 = vmatprep.subr.mxu0 0.0
    %523 = vmatpush1.msra.mxu0 0.0
    %524 = vmatprep.subr.mxu0 0.0
    %525 = vmatpush1.msra.mxu0 0.0
    %526 = vmatprep.subr.mxu0 0.0
    %527 = vmatpush1.msra.mxu0 0.0
    %528 = vmatprep.subr.mxu0 0.0
    %529 = vmatpush1.msra.mxu0 0.0
    %530 = vmatprep.subr.mxu0 0.0
    %531 = vmatpush1.msra.mxu0 0.0
    %532 = vmatprep.subr.mxu0 0.0
    %533 = vmatpush1.msra.mxu0 0.0
    %534 = vmatprep.subr.mxu0 0.0
    %535 = vmatpush1.msra.mxu0 0.0
    %536 = vmatprep.subr.mxu0 0.0
    %537 = vmatpush1.msra.mxu0 0.0
    %538 = vmatprep.mubr.f32.mxu0 0.0
    %539 = vmatmul.mubr.f32.gmra.mrb[0].mxu0 %v472
    %v540 = vpop.f32.mrb[0].mxu0
    %v541 = vadd.f32 0.0, %v540
    %v542 = vpop.f32.mrb[0].mxu0
    %543 = vdwg.mxu0
    %v544 = vadd.f32 %v471, %v541
    %v545 = vsub.f32 0.0, %v544
    %v546 = vmul.f32 %v545, 1.442695
    %v547 = vpow.pop %v546
    %v548 = vadd.f32 %v547, 1.0
    %v549 = vrcp.pop %v548
    %v550 = vmul.f32 1.0, %v549
    %v551 = vtanh.pop %v544
    %v552 = vmul.f32 %v550, %v457
    %554 = vrot.lane.b32.xlu0 %v551, 64
    %v555 = vpop.permute.xlu0 %554
    %v557 = vmul.f32 %v550, %v555
    %559 = vrot.lane.b32.xlu0 %v557, 32
    %v560 = vpop.permute.xlu0 %559
    %v562 = vadd.f32 %v552, %v560
    %v563 = vtanh.pop %v562
    %565 = vrot.lane.b32.xlu0 %v563, 64
    %v566 = vpop.permute.xlu0 %565
    %v568 = vmul.f32 %v550, %v566
    %570 = vrot.lane.b32.xlu0 %v568, 32
    %v571 = vpop.permute.xlu0 %570
    %s573 = scalar_lea.vmem [#allocation3], 4
    %574 = vst.msk [vmem:[%s573] sm:$0x3] %vm363, %v571
    %s575 = scalar_lea.vmem [#allocation2], 6
    %v576 = vld [vmem:[%s575] sm:$0x3]
    %v577 = vsel %vm148, %v571, 0
    %579 = vmatprep.subr.mxu0 0.0
    %580 = vmatpush1.msra.mxu0 %v34
    %581 = vmatprep.subr.mxu0 0.0
    %582 = vmatpush1.msra.mxu0 %v35
    %583 = vmatprep.subr.mxu0 0.0
    %584 = vmatpush1.msra.mxu0 %v36
    %585 = vmatprep.subr.mxu0 0.0
    %586 = vmatpush1.msra.mxu0 %v37
    %587 = vmatprep.subr.mxu0 0.0
    %588 = vmatpush1.msra.mxu0 0.0
    %589 = vmatprep.subr.mxu0 0.0
    %590 = vmatpush1.msra.mxu0 0.0
    %591 = vmatprep.subr.mxu0 0.0
    %592 = vmatpush1.msra.mxu0 0.0
    %593 = vmatprep.subr.mxu0 0.0
    %594 = vmatpush1.msra.mxu0 0.0
    %595 = vmatprep.subr.mxu0 0.0
    %596 = vmatpush1.msra.mxu0 0.0
    %597 = vmatprep.subr.mxu0 0.0
    %598 = vmatpush1.msra.mxu0 0.0
    %599 = vmatprep.subr.mxu0 0.0
    %600 = vmatpush1.msra.mxu0 0.0
    %601 = vmatprep.subr.mxu0 0.0
    %602 = vmatpush1.msra.mxu0 0.0
    %603 = vmatprep.subr.mxu0 0.0
    %604 = vmatpush1.msra.mxu0 0.0
    %605 = vmatprep.subr.mxu0 0.0
    %606 = vmatpush1.msra.mxu0 0.0
    %607 = vmatprep.subr.mxu0 0.0
    %608 = vmatpush1.msra.mxu0 0.0
    %609 = vmatprep.subr.mxu0 0.0
    %610 = vmatpush1.msra.mxu0 0.0
    %611 = vmatprep.subr.mxu0 0.0
    %612 = vmatpush1.msra.mxu0 0.0
    %613 = vmatprep.subr.mxu0 0.0
    %614 = vmatpush1.msra.mxu0 0.0
    %615 = vmatprep.subr.mxu0 0.0
    %616 = vmatpush1.msra.mxu0 0.0
    %617 = vmatprep.subr.mxu0 0.0
    %618 = vmatpush1.msra.mxu0 0.0
    %619 = vmatprep.subr.mxu0 0.0
    %620 = vmatpush1.msra.mxu0 0.0
    %621 = vmatprep.subr.mxu0 0.0
    %622 = vmatpush1.msra.mxu0 0.0
    %623 = vmatprep.subr.mxu0 0.0
    %624 = vmatpush1.msra.mxu0 0.0
    %625 = vmatprep.subr.mxu0 0.0
    %626 = vmatpush1.msra.mxu0 0.0
    %627 = vmatprep.subr.mxu0 0.0
    %628 = vmatpush1.msra.mxu0 0.0
    %629 = vmatprep.subr.mxu0 0.0
    %630 = vmatpush1.msra.mxu0 0.0
    %631 = vmatprep.subr.mxu0 0.0
    %632 = vmatpush1.msra.mxu0 0.0
    %633 = vmatprep.subr.mxu0 0.0
    %634 = vmatpush1.msra.mxu0 0.0
    %635 = vmatprep.subr.mxu0 0.0
    %636 = vmatpush1.msra.mxu0 0.0
    %637 = vmatprep.subr.mxu0 0.0
    %638 = vmatpush1.msra.mxu0 0.0
    %639 = vmatprep.subr.mxu0 0.0
    %640 = vmatpush1.msra.mxu0 0.0
    %641 = vmatprep.subr.mxu0 0.0
    %642 = vmatpush1.msra.mxu0 0.0
    %643 = vmatprep.mubr.f32.mxu0 0.0
    %644 = vmatmul.mubr.f32.gmra.mrb[0].mxu0 %v577
    %v645 = vpop.f32.mrb[0].mxu0
    %v646 = vadd.f32 0.0, %v645
    %v647 = vpop.f32.mrb[0].mxu0
    %648 = vdwg.mxu0
    %v649 = vadd.f32 %v576, %v646
    %v650 = vsub.f32 0.0, %v649
    %v651 = vmul.f32 %v650, 1.442695
    %v652 = vpow.pop %v651
    %v653 = vadd.f32 %v652, 1.0
    %v654 = vrcp.pop %v653
    %v655 = vmul.f32 1.0, %v654
    %v656 = vtanh.pop %v649
    %v657 = vmul.f32 %v655, %v562
    %659 = vrot.lane.b32.xlu0 %v656, 64
    %v660 = vpop.permute.xlu0 %659
    %v662 = vmul.f32 %v655, %v660
    %664 = vrot.lane.b32.xlu0 %v662, 32
    %v665 = vpop.permute.xlu0 %664
    %v667 = vadd.f32 %v657, %v665
    %v668 = vtanh.pop %v667
    %670 = vrot.lane.b32.xlu0 %v668, 64
    %v671 = vpop.permute.xlu0 %670
    %v673 = vmul.f32 %v655, %v671
    %675 = vrot.lane.b32.xlu0 %v673, 32
    %v676 = vpop.permute.xlu0 %675
    %s678 = scalar_lea.vmem [#allocation3], 6
    %679 = vst.msk [vmem:[%s678] sm:$0x3] %vm363, %v676
    %s680 = scalar_lea.vmem [#allocation2], 8
    %v681 = vld [vmem:[%s680] sm:$0x3]
    %v682 = vsel %vm148, %v676, 0
    %684 = vmatprep.subr.mxu0 0.0
    %685 = vmatpush1.msra.mxu0 %v34
    %686 = vmatprep.subr.mxu0 0.0
    %687 = vmatpush1.msra.mxu0 %v35
    %688 = vmatprep.subr.mxu0 0.0
    %689 = vmatpush1.msra.mxu0 %v36
    %690 = vmatprep.subr.mxu0 0.0
    %691 = vmatpush1.msra.mxu0 %v37
    %692 = vmatprep.subr.mxu0 0.0
    %693 = vmatpush1.msra.mxu0 0.0
    %694 = vmatprep.subr.mxu0 0.0
    %695 = vmatpush1.msra.mxu0 0.0
    %696 = vmatprep.subr.mxu0 0.0
    %697 = vmatpush1.msra.mxu0 0.0
    %698 = vmatprep.subr.mxu0 0.0
    %699 = vmatpush1.msra.mxu0 0.0
    %700 = vmatprep.subr.mxu0 0.0
    %701 = vmatpush1.msra.mxu0 0.0
    %702 = vmatprep.subr.mxu0 0.0
    %703 = vmatpush1.msra.mxu0 0.0
    %704 = vmatprep.subr.mxu0 0.0
    %705 = vmatpush1.msra.mxu0 0.0
    %706 = vmatprep.subr.mxu0 0.0
    %707 = vmatpush1.msra.mxu0 0.0
    %708 = vmatprep.subr.mxu0 0.0
    %709 = vmatpush1.msra.mxu0 0.0
    %710 = vmatprep.subr.mxu0 0.0
    %711 = vmatpush1.msra.mxu0 0.0
    %712 = vmatprep.subr.mxu0 0.0
    %713 = vmatpush1.msra.mxu0 0.0
    %714 = vmatprep.subr.mxu0 0.0
    %715 = vmatpush1.msra.mxu0 0.0
    %716 = vmatprep.subr.mxu0 0.0
    %717 = vmatpush1.msra.mxu0 0.0
    %718 = vmatprep.subr.mxu0 0.0
    %719 = vmatpush1.msra.mxu0 0.0
    %720 = vmatprep.subr.mxu0 0.0
    %721 = vmatpush1.msra.mxu0 0.0
    %722 = vmatprep.subr.mxu0 0.0
    %723 = vmatpush1.msra.mxu0 0.0
    %724 = vmatprep.subr.mxu0 0.0
    %725 = vmatpush1.msra.mxu0 0.0
    %726 = vmatprep.subr.mxu0 0.0
    %727 = vmatpush1.msra.mxu0 0.0
    %728 = vmatprep.subr.mxu0 0.0
    %729 = vmatpush1.msra.mxu0 0.0
    %730 = vmatprep.subr.mxu0 0.0
    %731 = vmatpush1.msra.mxu0 0.0
    %732 = vmatprep.subr.mxu0 0.0
    %733 = vmatpush1.msra.mxu0 0.0
    %734 = vmatprep.subr.mxu0 0.0
    %735 = vmatpush1.msra.mxu0 0.0
    %736 = vmatprep.subr.mxu0 0.0
    %737 = vmatpush1.msra.mxu0 0.0
    %738 = vmatprep.subr.mxu0 0.0
    %739 = vmatpush1.msra.mxu0 0.0
    %740 = vmatprep.subr.mxu0 0.0
    %741 = vmatpush1.msra.mxu0 0.0
    %742 = vmatprep.subr.mxu0 0.0
    %743 = vmatpush1.msra.mxu0 0.0
    %744 = vmatprep.subr.mxu0 0.0
    %745 = vmatpush1.msra.mxu0 0.0
    %746 = vmatprep.subr.mxu0 0.0
    %747 = vmatpush1.msra.mxu0 0.0
    %748 = vmatprep.mubr.f32.mxu0 0.0
    %749 = vmatmul.mubr.f32.gmra.mrb[0].mxu0 %v682
    %v750 = vpop.f32.mrb[0].mxu0
    %v751 = vadd.f32 0.0, %v750
    %v752 = vpop.f32.mrb[0].mxu0
    %753 = vdwg.mxu0
    %v754 = vadd.f32 %v681, %v751
    %v755 = vsub.f32 0.0, %v754
    %v756 = vmul.f32 %v755, 1.442695
    %v757 = vpow.pop %v756
    %v758 = vadd.f32 %v757, 1.0
    %v759 = vrcp.pop %v758
    %v760 = vmul.f32 1.0, %v759
    %v761 = vtanh.pop %v754
    %v762 = vmul.f32 %v760, %v667
    %764 = vrot.lane.b32.xlu0 %v761, 64
    %v765 = vpop.permute.xlu0 %764
    %v767 = vmul.f32 %v760, %v765
    %769 = vrot.lane.b32.xlu0 %v767, 32
    %v770 = vpop.permute.xlu0 %769
    %v772 = vadd.f32 %v762, %v770
    %v773 = vtanh.pop %v772
    %775 = vrot.lane.b32.xlu0 %v773, 64
    %v776 = vpop.permute.xlu0 %775
    %v778 = vmul.f32 %v760, %v776
    %780 = vrot.lane.b32.xlu0 %v778, 32
    %v781 = vpop.permute.xlu0 %780
    %s783 = scalar_lea.vmem [#allocation3], 8
    %784 = vst.msk [vmem:[%s783] sm:$0x3] %vm363, %v781
    %s785 = scalar_lea.vmem [#allocation2], 10
    %v786 = vld [vmem:[%s785] sm:$0x3]
    %v787 = vsel %vm148, %v781, 0
    %789 = vmatprep.subr.mxu0 0.0
    %790 = vmatpush1.msra.mxu0 %v34
    %791 = vmatprep.subr.mxu0 0.0
    %792 = vmatpush1.msra.mxu0 %v35
    %793 = vmatprep.subr.mxu0 0.0
    %794 = vmatpush1.msra.mxu0 %v36
    %795 = vmatprep.subr.mxu0 0.0
    %796 = vmatpush1.msra.mxu0 %v37
    %797 = vmatprep.subr.mxu0 0.0
    %798 = vmatpush1.msra.mxu0 0.0
    %799 = vmatprep.subr.mxu0 0.0
    %800 = vmatpush1.msra.mxu0 0.0
    %801 = vmatprep.subr.mxu0 0.0
    %802 = vmatpush1.msra.mxu0 0.0
    %803 = vmatprep.subr.mxu0 0.0
    %804 = vmatpush1.msra.mxu0 0.0
    %805 = vmatprep.subr.mxu0 0.0
    %806 = vmatpush1.msra.mxu0 0.0
    %807 = vmatprep.subr.mxu0 0.0
    %808 = vmatpush1.msra.mxu0 0.0
    %809 = vmatprep.subr.mxu0 0.0
    %810 = vmatpush1.msra.mxu0 0.0
    %811 = vmatprep.subr.mxu0 0.0
    %812 = vmatpush1.msra.mxu0 0.0
    %813 = vmatprep.subr.mxu0 0.0
    %814 = vmatpush1.msra.mxu0 0.0
    %815 = vmatprep.subr.mxu0 0.0
    %816 = vmatpush1.msra.mxu0 0.0
    %817 = vmatprep.subr.mxu0 0.0
    %818 = vmatpush1.msra.mxu0 0.0
    %819 = vmatprep.subr.mxu0 0.0
    %820 = vmatpush1.msra.mxu0 0.0
    %821 = vmatprep.subr.mxu0 0.0
    %822 = vmatpush1.msra.mxu0 0.0
    %823 = vmatprep.subr.mxu0 0.0
    %824 = vmatpush1.msra.mxu0 0.0
    %825 = vmatprep.subr.mxu0 0.0
    %826 = vmatpush1.msra.mxu0 0.0
    %827 = vmatprep.subr.mxu0 0.0
    %828 = vmatpush1.msra.mxu0 0.0
    %829 = vmatprep.subr.mxu0 0.0
    %830 = vmatpush1.msra.mxu0 0.0
    %831 = vmatprep.subr.mxu0 0.0
    %832 = vmatpush1.msra.mxu0 0.0
    %833 = vmatprep.subr.mxu0 0.0
    %834 = vmatpush1.msra.mxu0 0.0
    %835 = vmatprep.subr.mxu0 0.0
    %836 = vmatpush1.msra.mxu0 0.0
    %837 = vmatprep.subr.mxu0 0.0
    %838 = vmatpush1.msra.mxu0 0.0
    %839 = vmatprep.subr.mxu0 0.0
    %840 = vmatpush1.msra.mxu0 0.0
    %841 = vmatprep.subr.mxu0 0.0
    %842 = vmatpush1.msra.mxu0 0.0
    %843 = vmatprep.subr.mxu0 0.0
    %844 = vmatpush1.msra.mxu0 0.0
    %845 = vmatprep.subr.mxu0 0.0
    %846 = vmatpush1.msra.mxu0 0.0
    %847 = vmatprep.subr.mxu0 0.0
    %848 = vmatpush1.msra.mxu0 0.0
    %849 = vmatprep.subr.mxu0 0.0
    %850 = vmatpush1.msra.mxu0 0.0
    %851 = vmatprep.subr.mxu0 0.0
    %852 = vmatpush1.msra.mxu0 0.0
    %853 = vmatprep.mubr.f32.mxu0 0.0
    %854 = vmatmul.mubr.f32.gmra.mrb[0].mxu0 %v787
    %v855 = vpop.f32.mrb[0].mxu0
    %v856 = vadd.f32 0.0, %v855
    %v857 = vpop.f32.mrb[0].mxu0
    %858 = vdwg.mxu0
    %v859 = vadd.f32 %v786, %v856
    %v860 = vsub.f32 0.0, %v859
    %v861 = vmul.f32 %v860, 1.442695
    %v862 = vpow.pop %v861
    %v863 = vadd.f32 %v862, 1.0
    %v864 = vrcp.pop %v863
    %v865 = vmul.f32 1.0, %v864
    %v866 = vtanh.pop %v859
    %v867 = vmul.f32 %v865, %v772
    %869 = vrot.lane.b32.xlu0 %v866, 64
    %v870 = vpop.permute.xlu0 %869
    %v872 = vmul.f32 %v865, %v870
    %874 = vrot.lane.b32.xlu0 %v872, 32
    %v875 = vpop.permute.xlu0 %874
    %v877 = vadd.f32 %v867, %v875
    %v878 = vtanh.pop %v877
    %880 = vrot.lane.b32.xlu0 %v878, 64
    %v881 = vpop.permute.xlu0 %880
    %v883 = vmul.f32 %v865, %v881
    %885 = vrot.lane.b32.xlu0 %v883, 32
    %v886 = vpop.permute.xlu0 %885
    %s888 = scalar_lea.vmem [#allocation3], 10
    %889 = vst.msk [vmem:[%s888] sm:$0x3] %vm363, %v886
    %s890 = scalar_lea.vmem [#allocation2], 12
    %v891 = vld [vmem:[%s890] sm:$0x3]
    %v892 = vsel %vm148, %v886, 0
    %894 = vmatprep.subr.mxu0 0.0
    %895 = vmatpush1.msra.mxu0 %v34
    %896 = vmatprep.subr.mxu0 0.0
    %897 = vmatpush1.msra.mxu0 %v35
    %898 = vmatprep.subr.mxu0 0.0
    %899 = vmatpush1.msra.mxu0 %v36
    %900 = vmatprep.subr.mxu0 0.0
    %901 = vmatpush1.msra.mxu0 %v37
    %902 = vmatprep.subr.mxu0 0.0
    %903 = vmatpush1.msra.mxu0 0.0
    %904 = vmatprep.subr.mxu0 0.0
    %905 = vmatpush1.msra.mxu0 0.0
    %906 = vmatprep.subr.mxu0 0.0
    %907 = vmatpush1.msra.mxu0 0.0
    %908 = vmatprep.subr.mxu0 0.0
    %909 = vmatpush1.msra.mxu0 0.0
    %910 = vmatprep.subr.mxu0 0.0
    %911 = vmatpush1.msra.mxu0 0.0
    %912 = vmatprep.subr.mxu0 0.0
    %913 = vmatpush1.msra.mxu0 0.0
    %914 = vmatprep.subr.mxu0 0.0
    %915 = vmatpush1.msra.mxu0 0.0
    %916 = vmatprep.subr.mxu0 0.0
    %917 = vmatpush1.msra.mxu0 0.0
    %918 = vmatprep.subr.mxu0 0.0
    %919 = vmatpush1.msra.mxu0 0.0
    %920 = vmatprep.subr.mxu0 0.0
    %921 = vmatpush1.msra.mxu0 0.0
    %922 = vmatprep.subr.mxu0 0.0
    %923 = vmatpush1.msra.mxu0 0.0
    %924 = vmatprep.subr.mxu0 0.0
    %925 = vmatpush1.msra.mxu0 0.0
    %926 = vmatprep.subr.mxu0 0.0
    %927 = vmatpush1.msra.mxu0 0.0
    %928 = vmatprep.subr.mxu0 0.0
    %929 = vmatpush1.msra.mxu0 0.0
    %930 = vmatprep.subr.mxu0 0.0
    %931 = vmatpush1.msra.mxu0 0.0
    %932 = vmatprep.subr.mxu0 0.0
    %933 = vmatpush1.msra.mxu0 0.0
    %934 = vmatprep.subr.mxu0 0.0
    %935 = vmatpush1.msra.mxu0 0.0
    %936 = vmatprep.subr.mxu0 0.0
    %937 = vmatpush1.msra.mxu0 0.0
    %938 = vmatprep.subr.mxu0 0.0
    %939 = vmatpush1.msra.mxu0 0.0
    %940 = vmatprep.subr.mxu0 0.0
    %941 = vmatpush1.msra.mxu0 0.0
    %942 = vmatprep.subr.mxu0 0.0
    %943 = vmatpush1.msra.mxu0 0.0
    %944 = vmatprep.subr.mxu0 0.0
    %945 = vmatpush1.msra.mxu0 0.0
    %946 = vmatprep.subr.mxu0 0.0
    %947 = vmatpush1.msra.mxu0 0.0
    %948 = vmatprep.subr.mxu0 0.0
    %949 = vmatpush1.msra.mxu0 0.0
    %950 = vmatprep.subr.mxu0 0.0
    %951 = vmatpush1.msra.mxu0 0.0
    %952 = vmatprep.subr.mxu0 0.0
    %953 = vmatpush1.msra.mxu0 0.0
    %954 = vmatprep.subr.mxu0 0.0
    %955 = vmatpush1.msra.mxu0 0.0
    %956 = vmatprep.subr.mxu0 0.0
    %957 = vmatpush1.msra.mxu0 0.0
    %958 = vmatprep.mubr.f32.mxu0 0.0
    %959 = vmatmul.mubr.f32.gmra.mrb[0].mxu0 %v892
    %v960 = vpop.f32.mrb[0].mxu0
    %v961 = vadd.f32 0.0, %v960
    %v962 = vpop.f32.mrb[0].mxu0
    %963 = vdwg.mxu0
    %v964 = vadd.f32 %v891, %v961
    %v965 = vsub.f32 0.0, %v964
    %v966 = vmul.f32 %v965, 1.442695
    %v967 = vpow.pop %v966
    %v968 = vadd.f32 %v967, 1.0
    %v969 = vrcp.pop %v968
    %v970 = vmul.f32 1.0, %v969
    %v971 = vtanh.pop %v964
    %v972 = vmul.f32 %v970, %v877
    %974 = vrot.lane.b32.xlu0 %v971, 64
    %v975 = vpop.permute.xlu0 %974
    %v977 = vmul.f32 %v970, %v975
    %979 = vrot.lane.b32.xlu0 %v977, 32
    %v980 = vpop.permute.xlu0 %979
    %v982 = vadd.f32 %v972, %v980
    %v983 = vtanh.pop %v982
    %985 = vrot.lane.b32.xlu0 %v983, 64
    %v986 = vpop.permute.xlu0 %985
    %v988 = vmul.f32 %v970, %v986
    %990 = vrot.lane.b32.xlu0 %v988, 32
    %v991 = vpop.permute.xlu0 %990
    %s993 = scalar_lea.vmem [#allocation3], 12
    %994 = vst.msk [vmem:[%s993] sm:$0x3] %vm363, %v991
    %s995 = scalar_lea.vmem [#allocation2], 14
    %v996 = vld [vmem:[%s995] sm:$0x3]
    %v997 = vsel %vm148, %v991, 0
    %999 = vmatprep.subr.mxu0 0.0
    %1000 = vmatpush1.msra.mxu0 %v34
    %1001 = vmatprep.subr.mxu0 0.0
    %1002 = vmatpush1.msra.mxu0 %v35
    %1003 = vmatprep.subr.mxu0 0.0
    %1004 = vmatpush1.msra.mxu0 %v36
    %1005 = vmatprep.subr.mxu0 0.0
    %1006 = vmatpush1.msra.mxu0 %v37
    %1007 = vmatprep.subr.mxu0 0.0
    %1008 = vmatpush1.msra.mxu0 0.0
    %1009 = vmatprep.subr.mxu0 0.0
    %1010 = vmatpush1.msra.mxu0 0.0
    %1011 = vmatprep.subr.mxu0 0.0
    %1012 = vmatpush1.msra.mxu0 0.0
    %1013 = vmatprep.subr.mxu0 0.0
    %1014 = vmatpush1.msra.mxu0 0.0
    %1015 = vmatprep.subr.mxu0 0.0
    %1016 = vmatpush1.msra.mxu0 0.0
    %1017 = vmatprep.subr.mxu0 0.0
    %1018 = vmatpush1.msra.mxu0 0.0
    %1019 = vmatprep.subr.mxu0 0.0
    %1020 = vmatpush1.msra.mxu0 0.0
    %1021 = vmatprep.subr.mxu0 0.0
    %1022 = vmatpush1.msra.mxu0 0.0
    %1023 = vmatprep.subr.mxu0 0.0
    %1024 = vmatpush1.msra.mxu0 0.0
    %1025 = vmatprep.subr.mxu0 0.0
    %1026 = vmatpush1.msra.mxu0 0.0
    %1027 = vmatprep.subr.mxu0 0.0
    %1028 = vmatpush1.msra.mxu0 0.0
    %1029 = vmatprep.subr.mxu0 0.0
    %1030 = vmatpush1.msra.mxu0 0.0
    %1031 = vmatprep.subr.mxu0 0.0
    %1032 = vmatpush1.msra.mxu0 0.0
    %1033 = vmatprep.subr.mxu0 0.0
    %1034 = vmatpush1.msra.mxu0 0.0
    %1035 = vmatprep.subr.mxu0 0.0
    %1036 = vmatpush1.msra.mxu0 0.0
    %1037 = vmatprep.subr.mxu0 0.0
    %1038 = vmatpush1.msra.mxu0 0.0
    %1039 = vmatprep.subr.mxu0 0.0
    %1040 = vmatpush1.msra.mxu0 0.0
    %1041 = vmatprep.subr.mxu0 0.0
    %1042 = vmatpush1.msra.mxu0 0.0
    %1043 = vmatprep.subr.mxu0 0.0
    %1044 = vmatpush1.msra.mxu0 0.0
    %1045 = vmatprep.subr.mxu0 0.0
    %1046 = vmatpush1.msra.mxu0 0.0
    %1047 = vmatprep.subr.mxu0 0.0
    %1048 = vmatpush1.msra.mxu0 0.0
    %1049 = vmatprep.subr.mxu0 0.0
    %1050 = vmatpush1.msra.mxu0 0.0
    %1051 = vmatprep.subr.mxu0 0.0
    %1052 = vmatpush1.msra.mxu0 0.0
    %1053 = vmatprep.subr.mxu0 0.0
    %1054 = vmatpush1.msra.mxu0 0.0
    %1055 = vmatprep.subr.mxu0 0.0
    %1056 = vmatpush1.msra.mxu0 0.0
    %1057 = vmatprep.subr.mxu0 0.0
    %1058 = vmatpush1.msra.mxu0 0.0
    %1059 = vmatprep.subr.mxu0 0.0
    %1060 = vmatpush1.msra.mxu0 0.0
    %1061 = vmatprep.subr.mxu0 0.0
    %1062 = vmatpush1.msra.mxu0 0.0
    %1063 = vmatprep.mubr.f32.mxu0 0.0
    %1064 = vmatmul.mubr.f32.gmra.mrb[0].mxu0 %v997
    %v1065 = vpop.f32.mrb[0].mxu0
    %v1066 = vadd.f32 0.0, %v1065
    %v1067 = vpop.f32.mrb[0].mxu0
    %1068 = vdwg.mxu0
    %v1069 = vadd.f32 %v996, %v1066
    %v1070 = vsub.f32 0.0, %v1069
    %v1071 = vmul.f32 %v1070, 1.442695
    %v1072 = vpow.pop %v1071
    %v1073 = vadd.f32 %v1072, 1.0
    %v1074 = vrcp.pop %v1073
    %v1075 = vmul.f32 1.0, %v1074
    %v1076 = vtanh.pop %v1069
    %v1077 = vmul.f32 %v1075, %v982
    %1079 = vrot.lane.b32.xlu0 %v1076, 64
    %v1080 = vpop.permute.xlu0 %1079
    %v1082 = vmul.f32 %v1075, %v1080
    %1084 = vrot.lane.b32.xlu0 %v1082, 32
    %v1085 = vpop.permute.xlu0 %1084
    %v1087 = vadd.f32 %v1077, %v1085
    %v1088 = vtanh.pop %v1087
    %1090 = vrot.lane.b32.xlu0 %v1088, 64
    %v1091 = vpop.permute.xlu0 %1090
    %v1093 = vmul.f32 %v1075, %v1091
    %1095 = vrot.lane.b32.xlu0 %v1093, 32
    %v1096 = vpop.permute.xlu0 %1095
    %s1098 = scalar_lea.vmem [#allocation3], 14
    %1099 = vst.msk [vmem:[%s1098] sm:$0x3] %vm363, %v1096
    %v1100 = vld [vmem:[#allocation3] sm:$0xff]
    %v1101 = vld [vmem:[#allocation3 + $0x8] sm:$0xff]
    %v1103 = vrot.slane %v1101, 6
    %v1105 = vrot.slane %v1101, 2
    %v1108 = vrot.slane %v1100, 6
    %v1110 = vrot.slane %v1100, 2
    %vm1112 = vcmask 1041408
    %v1113 = vsel %vm1112, %v1103, %v1105
    %vm1114 = vcmask 1043456
    %v1115 = vsel %vm1114, %v1113, %v1103
    %vm1116 = vcmask 1045504
    %v1117 = vsel %vm1116, %v1115, %v1105
    %v1118 = vsel %vm1112, %v1108, %v1110
    %v1119 = vsel %vm1114, %v1118, %v1108
    %v1120 = vsel %vm1116, %v1119, %v1110
    %v1121 = vsel %vm66, %v1100, %v1117
    %v1122 = vsel %vm66, %v1101, %v1120
    %v1123 = vlaneseq
    %v1124 = vshrl.u32 %v1123, 7
    %v1125 = vsub.s32 0, %v1124
    %v1126 = vrot.slane %v47, %v1125
    %v1128 = vsel %vm148, %v1121, 0
    %v1131 = vsel %vm148, %v1122, 0
    %1133 = vmatprep.subr.mxu0 0.0
    %1134 = vmatpush1.msra.mxu0 %v39
    %1135 = vmatprep.subr.mxu0 0.0
    %1136 = vmatpush1.msra.mxu0 %v40
    %1137 = vmatprep.subr.mxu0 0.0
    %1138 = vmatpush1.msra.mxu0 %v41
    %1139 = vmatprep.subr.mxu0 0.0
    %1140 = vmatpush1.msra.mxu0 %v42
    %1141 = vmatprep.subr.mxu0 0.0
    %1142 = vmatpush1.msra.mxu0 0.0
    %1143 = vmatprep.subr.mxu0 0.0
    %1144 = vmatpush1.msra.mxu0 0.0
    %1145 = vmatprep.subr.mxu0 0.0
    %1146 = vmatpush1.msra.mxu0 0.0
    %1147 = vmatprep.subr.mxu0 0.0
    %1148 = vmatpush1.msra.mxu0 0.0
    %1149 = vmatprep.subr.mxu0 0.0
    %1150 = vmatpush1.msra.mxu0 0.0
    %1151 = vmatprep.subr.mxu0 0.0
    %1152 = vmatpush1.msra.mxu0 0.0
    %1153 = vmatprep.subr.mxu0 0.0
    %1154 = vmatpush1.msra.mxu0 0.0
    %1155 = vmatprep.subr.mxu0 0.0
    %1156 = vmatpush1.msra.mxu0 0.0
    %1157 = vmatprep.subr.mxu0 0.0
    %1158 = vmatpush1.msra.mxu0 0.0
    %1159 = vmatprep.subr.mxu0 0.0
    %1160 = vmatpush1.msra.mxu0 0.0
    %1161 = vmatprep.subr.mxu0 0.0
    %1162 = vmatpush1.msra.mxu0 0.0
    %1163 = vmatprep.subr.mxu0 0.0
    %1164 = vmatpush1.msra.mxu0 0.0
    %1165 = vmatprep.subr.mxu0 0.0
    %1166 = vmatpush1.msra.mxu0 0.0
    %1167 = vmatprep.subr.mxu0 0.0
    %1168 = vmatpush1.msra.mxu0 0.0
    %1169 = vmatprep.subr.mxu0 0.0
    %1170 = vmatpush1.msra.mxu0 0.0
    %1171 = vmatprep.subr.mxu0 0.0
    %1172 = vmatpush1.msra.mxu0 0.0
    %1173 = vmatprep.subr.mxu0 0.0
    %1174 = vmatpush1.msra.mxu0 0.0
    %1175 = vmatprep.subr.mxu0 0.0
    %1176 = vmatpush1.msra.mxu0 0.0
    %1177 = vmatprep.subr.mxu0 0.0
    %1178 = vmatpush1.msra.mxu0 0.0
    %1179 = vmatprep.subr.mxu0 0.0
    %1180 = vmatpush1.msra.mxu0 0.0
    %1181 = vmatprep.subr.mxu0 0.0
    %1182 = vmatpush1.msra.mxu0 0.0
    %1183 = vmatprep.subr.mxu0 0.0
    %1184 = vmatpush1.msra.mxu0 0.0
    %1185 = vmatprep.subr.mxu0 0.0
    %1186 = vmatpush1.msra.mxu0 0.0
    %1187 = vmatprep.subr.mxu0 0.0
    %1188 = vmatpush1.msra.mxu0 0.0
    %1189 = vmatprep.subr.mxu0 0.0
    %1190 = vmatpush1.msra.mxu0 0.0
    %1191 = vmatprep.subr.mxu0 0.0
    %1192 = vmatpush1.msra.mxu0 0.0
    %1193 = vmatprep.subr.mxu0 0.0
    %1194 = vmatpush1.msra.mxu0 0.0
    %1195 = vmatprep.subr.mxu0 0.0
    %1196 = vmatpush1.msra.mxu0 0.0
    %1197 = vmatprep.mubr.f32.mxu0 0.0
    %1198 = vmatmul.mubr.f32.gmra.mrb[0].mxu0 %v1128
    %v1199 = vpop.f32.mrb[0].mxu0
    %v1200 = vadd.f32 %v1126, %v1199
    %v1201 = vpop.f32.mrb[0].mxu0
    %1202 = vmatprep.mubr.f32.mxu0 0.0
    %1203 = vmatmul.mubr.f32.gmra.mrb[0].mxu0 %v1131
    %v1204 = vpop.f32.mrb[0].mxu0
    %v1205 = vadd.f32 %v1126, %v1204
    %v1206 = vpop.f32.mrb[0].mxu0
    %1207 = vdwg.mxu0
    %v1209 = vrot.slane %v1205, 6
    %v1211 = vsel %vm237, %v1200, %v1209
    %1212 = vst [vmem:[#allocation2] sm:$0x3] %v1211
    %v1213 = vrot.slane %v1205, 2
    %v1215 = vsel %vm237, %v1200, %v1213
    %1216 = vst [vmem:[#allocation2] sm:$0xc] %v1215
    %1217 = vst [vmem:[#allocation2] sm:$0x30] %v1211
    %1218 = vst [vmem:[#allocation2] sm:$0xc0] %v1215
    %v1220 = vrot.slane %v1200, 6
    %v1222 = vsel %vm237, %v1205, %v1220
    %1223 = vst [vmem:[#allocation2 + $0x8] sm:$0x3] %v1222
    %v1224 = vrot.slane %v1200, 2
    %v1226 = vsel %vm237, %v1205, %v1224
    %1227 = vst [vmem:[#allocation2 + $0x8] sm:$0xc] %v1226
    %1228 = vst [vmem:[#allocation2 + $0x8] sm:$0x30] %v1222
    %1229 = vst [vmem:[#allocation2 + $0x8] sm:$0xc0] %v1226
    %v1230 = vld [vmem:[#allocation2] sm:$0x3]
    %1231 = vmatprep.subr.mxu0 0.0
    %1232 = vmatpush1.msra.mxu0 %v43
    %1233 = vmatprep.subr.mxu0 0.0
    %1234 = vmatpush1.msra.mxu0 %v44
    %1235 = vmatprep.subr.mxu0 0.0
    %1236 = vmatpush1.msra.mxu0 %v45
    %1237 = vmatprep.subr.mxu0 0.0
    %1238 = vmatpush1.msra.mxu0 %v46
    %1239 = vmatprep.subr.mxu0 0.0
    %1240 = vmatpush1.msra.mxu0 0.0
    %1241 = vmatprep.subr.mxu0 0.0
    %1242 = vmatpush1.msra.mxu0 0.0
    %1243 = vmatprep.subr.mxu0 0.0
    %1244 = vmatpush1.msra.mxu0 0.0
    %1245 = vmatprep.subr.mxu0 0.0
    %1246 = vmatpush1.msra.mxu0 0.0
    %1247 = vmatprep.subr.mxu0 0.0
    %1248 = vmatpush1.msra.mxu0 0.0
    %1249 = vmatprep.subr.mxu0 0.0
    %1250 = vmatpush1.msra.mxu0 0.0
    %1251 = vmatprep.subr.mxu0 0.0
    %1252 = vmatpush1.msra.mxu0 0.0
    %1253 = vmatprep.subr.mxu0 0.0
    %1254 = vmatpush1.msra.mxu0 0.0
    %1255 = vmatprep.subr.mxu0 0.0
    %1256 = vmatpush1.msra.mxu0 0.0
    %1257 = vmatprep.subr.mxu0 0.0
    %1258 = vmatpush1.msra.mxu0 0.0
    %1259 = vmatprep.subr.mxu0 0.0
    %1260 = vmatpush1.msra.mxu0 0.0
    %1261 = vmatprep.subr.mxu0 0.0
    %1262 = vmatpush1.msra.mxu0 0.0
    %1263 = vmatprep.subr.mxu0 0.0
    %1264 = vmatpush1.msra.mxu0 0.0
    %1265 = vmatprep.subr.mxu0 0.0
    %1266 = vmatpush1.msra.mxu0 0.0
    %1267 = vmatprep.subr.mxu0 0.0
    %1268 = vmatpush1.msra.mxu0 0.0
    %1269 = vmatprep.subr.mxu0 0.0
    %1270 = vmatpush1.msra.mxu0 0.0
    %1271 = vmatprep.subr.mxu0 0.0
    %1272 = vmatpush1.msra.mxu0 0.0
    %1273 = vmatprep.subr.mxu0 0.0
    %1274 = vmatpush1.msra.mxu0 0.0
    %1275 = vmatprep.subr.mxu0 0.0
    %1276 = vmatpush1.msra.mxu0 0.0
    %1277 = vmatprep.subr.mxu0 0.0
    %1278 = vmatpush1.msra.mxu0 0.0
    %1279 = vmatprep.subr.mxu0 0.0
    %1280 = vmatpush1.msra.mxu0 0.0
    %1281 = vmatprep.subr.mxu0 0.0
    %1282 = vmatpush1.msra.mxu0 0.0
    %1283 = vmatprep.subr.mxu0 0.0
    %1284 = vmatpush1.msra.mxu0 0.0
    %1285 = vmatprep.subr.mxu0 0.0
    %1286 = vmatpush1.msra.mxu0 0.0
    %1287 = vmatprep.subr.mxu0 0.0
    %1288 = vmatpush1.msra.mxu0 0.0
    %1289 = vmatprep.subr.mxu0 0.0
    %1290 = vmatpush1.msra.mxu0 0.0
    %1291 = vmatprep.subr.mxu0 0.0
    %1292 = vmatpush1.msra.mxu0 0.0
    %1293 = vmatprep.subr.mxu0 0.0
    %1294 = vmatpush1.msra.mxu0 0.0
    %1295 = vmatprep.mubr.f32.mxu0 0.0
    %1296 = vmatmul.mubr.f32.gmra.mrb[0].mxu0 %v262
    %v1297 = vpop.f32.mrb[0].mxu0
    %v1298 = vadd.f32 0.0, %v1297
    %v1299 = vpop.f32.mrb[0].mxu0
    %1300 = vdwg.mxu0
    %v1301 = vadd.f32 %v1230, %v1298
    %v1302 = vsub.f32 0.0, %v1301
    %v1303 = vmul.f32 %v1302, 1.442695
    %v1304 = vpow.pop %v1303
    %v1305 = vadd.f32 %v1304, 1.0
    %v1306 = vrcp.pop %v1305
    %v1307 = vmul.f32 1.0, %v1306
    %v1308 = vtanh.pop %v1301
    %v1309 = vmul.f32 %v1307, 0.0
    %1311 = vrot.lane.b32.xlu0 %v1308, 64
    %v1312 = vpop.permute.xlu0 %1311
    %v1314 = vmul.f32 %v1307, %v1312
    %1316 = vrot.lane.b32.xlu0 %v1314, 32
    %v1317 = vpop.permute.xlu0 %1316
    %v1319 = vadd.f32 %v1309, %v1317
    %v1320 = vtanh.pop %v1319
    %1322 = vrot.lane.b32.xlu0 %v1320, 64
    %v1323 = vpop.permute.xlu0 %1322
    %v1325 = vmul.f32 %v1307, %v1323
    %1327 = vrot.lane.b32.xlu0 %v1325, 32
    %v1328 = vpop.permute.xlu0 %1327
    %1330 = vst.msk [vmem:[#allocation3] sm:$0x3] %vm363, %v1328
    %v1331 = vld [vmem:[%s365] sm:$0x3]
    %v1332 = vsel %vm148, %v1328, 0
    %1334 = vmatprep.subr.mxu0 0.0
    %1335 = vmatpush1.msra.mxu0 %v43
    %1336 = vmatprep.subr.mxu0 0.0
    %1337 = vmatpush1.msra.mxu0 %v44
    %1338 = vmatprep.subr.mxu0 0.0
    %1339 = vmatpush1.msra.mxu0 %v45
    %1340 = vmatprep.subr.mxu0 0.0
    %1341 = vmatpush1.msra.mxu0 %v46
    %1342 = vmatprep.subr.mxu0 0.0
    %1343 = vmatpush1.msra.mxu0 0.0
    %1344 = vmatprep.subr.mxu0 0.0
    %1345 = vmatpush1.msra.mxu0 0.0
    %1346 = vmatprep.subr.mxu0 0.0
    %1347 = vmatpush1.msra.mxu0 0.0
    %1348 = vmatprep.subr.mxu0 0.0
    %1349 = vmatpush1.msra.mxu0 0.0
    %1350 = vmatprep.subr.mxu0 0.0
    %1351 = vmatpush1.msra.mxu0 0.0
    %1352 = vmatprep.subr.mxu0 0.0
    %1353 = vmatpush1.msra.mxu0 0.0
    %1354 = vmatprep.subr.mxu0 0.0
    %1355 = vmatpush1.msra.mxu0 0.0
    %1356 = vmatprep.subr.mxu0 0.0
    %1357 = vmatpush1.msra.mxu0 0.0
    %1358 = vmatprep.subr.mxu0 0.0
    %1359 = vmatpush1.msra.mxu0 0.0
    %1360 = vmatprep.subr.mxu0 0.0
    %1361 = vmatpush1.msra.mxu0 0.0
    %1362 = vmatprep.subr.mxu0 0.0
    %1363 = vmatpush1.msra.mxu0 0.0
    %1364 = vmatprep.subr.mxu0 0.0
    %1365 = vmatpush1.msra.mxu0 0.0
    %1366 = vmatprep.subr.mxu0 0.0
    %1367 = vmatpush1.msra.mxu0 0.0
    %1368 = vmatprep.subr.mxu0 0.0
    %1369 = vmatpush1.msra.mxu0 0.0
    %1370 = vmatprep.subr.mxu0 0.0
    %1371 = vmatpush1.msra.mxu0 0.0
    %1372 = vmatprep.subr.mxu0 0.0
    %1373 = vmatpush1.msra.mxu0 0.0
    %1374 = vmatprep.subr.mxu0 0.0
    %1375 = vmatpush1.msra.mxu0 0.0
    %1376 = vmatprep.subr.mxu0 0.0
    %1377 = vmatpush1.msra.mxu0 0.0
    %1378 = vmatprep.subr.mxu0 0.0
    %1379 = vmatpush1.msra.mxu0 0.0
    %1380 = vmatprep.subr.mxu0 0.0
    %1381 = vmatpush1.msra.mxu0 0.0
    %1382 = vmatprep.subr.mxu0 0.0
    %1383 = vmatpush1.msra.mxu0 0.0
    %1384 = vmatprep.subr.mxu0 0.0
    %1385 = vmatpush1.msra.mxu0 0.0
    %1386 = vmatprep.subr.mxu0 0.0
    %1387 = vmatpush1.msra.mxu0 0.0
    %1388 = vmatprep.subr.mxu0 0.0
    %1389 = vmatpush1.msra.mxu0 0.0
    %1390 = vmatprep.subr.mxu0 0.0
    %1391 = vmatpush1.msra.mxu0 0.0
    %1392 = vmatprep.subr.mxu0 0.0
    %1393 = vmatpush1.msra.mxu0 0.0
    %1394 = vmatprep.subr.mxu0 0.0
    %1395 = vmatpush1.msra.mxu0 0.0
    %1396 = vmatprep.subr.mxu0 0.0
    %1397 = vmatpush1.msra.mxu0 0.0
    %1398 = vmatprep.mubr.f32.mxu0 0.0
    %1399 = vmatmul.mubr.f32.gmra.mrb[0].mxu0 %v1332
    %v1400 = vpop.f32.mrb[0].mxu0
    %v1401 = vadd.f32 0.0, %v1400
    %v1402 = vpop.f32.mrb[0].mxu0
    %1403 = vdwg.mxu0
    %v1404 = vadd.f32 %v1331, %v1401
    %v1405 = vsub.f32 0.0, %v1404
    %v1406 = vmul.f32 %v1405, 1.442695
    %v1407 = vpow.pop %v1406
    %v1408 = vadd.f32 %v1407, 1.0
    %v1409 = vrcp.pop %v1408
    %v1410 = vmul.f32 1.0, %v1409
    %v1411 = vtanh.pop %v1404
    %v1412 = vmul.f32 %v1410, %v1319
    %1414 = vrot.lane.b32.xlu0 %v1411, 64
    %v1415 = vpop.permute.xlu0 %1414
    %v1417 = vmul.f32 %v1410, %v1415
    %1419 = vrot.lane.b32.xlu0 %v1417, 32
    %v1420 = vpop.permute.xlu0 %1419
    %v1422 = vadd.f32 %v1412, %v1420
    %v1423 = vtanh.pop %v1422
    %1425 = vrot.lane.b32.xlu0 %v1423, 64
    %v1426 = vpop.permute.xlu0 %1425
    %v1428 = vmul.f32 %v1410, %v1426
    %1430 = vrot.lane.b32.xlu0 %v1428, 32
    %v1431 = vpop.permute.xlu0 %1430
    %1433 = vst.msk [vmem:[%s468] sm:$0x3] %vm363, %v1431
    %v1434 = vld [vmem:[%s470] sm:$0x3]
    %v1435 = vsel %vm148, %v1431, 0
    %1437 = vmatprep.subr.mxu0 0.0
    %1438 = vmatpush1.msra.mxu0 %v43
    %1439 = vmatprep.subr.mxu0 0.0
    %1440 = vmatpush1.msra.mxu0 %v44
    %1441 = vmatprep.subr.mxu0 0.0
    %1442 = vmatpush1.msra.mxu0 %v45
    %1443 = vmatprep.subr.mxu0 0.0
    %1444 = vmatpush1.msra.mxu0 %v46
    %1445 = vmatprep.subr.mxu0 0.0
    %1446 = vmatpush1.msra.mxu0 0.0
    %1447 = vmatprep.subr.mxu0 0.0
    %1448 = vmatpush1.msra.mxu0 0.0
    %1449 = vmatprep.subr.mxu0 0.0
    %1450 = vmatpush1.msra.mxu0 0.0
    %1451 = vmatprep.subr.mxu0 0.0
    %1452 = vmatpush1.msra.mxu0 0.0
    %1453 = vmatprep.subr.mxu0 0.0
    %1454 = vmatpush1.msra.mxu0 0.0
    %1455 = vmatprep.subr.mxu0 0.0
    %1456 = vmatpush1.msra.mxu0 0.0
    %1457 = vmatprep.subr.mxu0 0.0
    %1458 = vmatpush1.msra.mxu0 0.0
    %1459 = vmatprep.subr.mxu0 0.0
    %1460 = vmatpush1.msra.mxu0 0.0
    %1461 = vmatprep.subr.mxu0 0.0
    %1462 = vmatpush1.msra.mxu0 0.0
    %1463 = vmatprep.subr.mxu0 0.0
    %1464 = vmatpush1.msra.mxu0 0.0
    %1465 = vmatprep.subr.mxu0 0.0
    %1466 = vmatpush1.msra.mxu0 0.0
    %1467 = vmatprep.subr.mxu0 0.0
    %1468 = vmatpush1.msra.mxu0 0.0
    %1469 = vmatprep.subr.mxu0 0.0
    %1470 = vmatpush1.msra.mxu0 0.0
    %1471 = vmatprep.subr.mxu0 0.0
    %1472 = vmatpush1.msra.mxu0 0.0
    %1473 = vmatprep.subr.mxu0 0.0
    %1474 = vmatpush1.msra.mxu0 0.0
    %1475 = vmatprep.subr.mxu0 0.0
    %1476 = vmatpush1.msra.mxu0 0.0
    %1477 = vmatprep.subr.mxu0 0.0
    %1478 = vmatpush1.msra.mxu0 0.0
    %1479 = vmatprep.subr.mxu0 0.0
    %1480 = vmatpush1.msra.mxu0 0.0
    %1481 = vmatprep.subr.mxu0 0.0
    %1482 = vmatpush1.msra.mxu0 0.0
    %1483 = vmatprep.subr.mxu0 0.0
    %1484 = vmatpush1.msra.mxu0 0.0
    %1485 = vmatprep.subr.mxu0 0.0
    %1486 = vmatpush1.msra.mxu0 0.0
    %1487 = vmatprep.subr.mxu0 0.0
    %1488 = vmatpush1.msra.mxu0 0.0
    %1489 = vmatprep.subr.mxu0 0.0
    %1490 = vmatpush1.msra.mxu0 0.0
    %1491 = vmatprep.subr.mxu0 0.0
    %1492 = vmatpush1.msra.mxu0 0.0
    %1493 = vmatprep.subr.mxu0 0.0
    %1494 = vmatpush1.msra.mxu0 0.0
    %1495 = vmatprep.subr.mxu0 0.0
    %1496 = vmatpush1.msra.mxu0 0.0
    %1497 = vmatprep.subr.mxu0 0.0
    %1498 = vmatpush1.msra.mxu0 0.0
    %1499 = vmatprep.subr.mxu0 0.0
    %1500 = vmatpush1.msra.mxu0 0.0
    %1501 = vmatprep.mubr.f32.mxu0 0.0
    %1502 = vmatmul.mubr.f32.gmra.mrb[0].mxu0 %v1435
    %v1503 = vpop.f32.mrb[0].mxu0
    %v1504 = vadd.f32 0.0, %v1503
    %v1505 = vpop.f32.mrb[0].mxu0
    %1506 = vdwg.mxu0
    %v1507 = vadd.f32 %v1434, %v1504
    %v1508 = vsub.f32 0.0, %v1507
    %v1509 = vmul.f32 %v1508, 1.442695
    %v1510 = vpow.pop %v1509
    %v1511 = vadd.f32 %v1510, 1.0
    %v1512 = vrcp.pop %v1511
    %v1513 = vmul.f32 1.0, %v1512
    %v1514 = vtanh.pop %v1507
    %v1515 = vmul.f32 %v1513, %v1422
    %1517 = vrot.lane.b32.xlu0 %v1514, 64
    %v1518 = vpop.permute.xlu0 %1517
    %v1520 = vmul.f32 %v1513, %v1518
    %1522 = vrot.lane.b32.xlu0 %v1520, 32
    %v1523 = vpop.permute.xlu0 %1522
    %v1525 = vadd.f32 %v1515, %v1523
    %v1526 = vtanh.pop %v1525
    %1528 = vrot.lane.b32.xlu0 %v1526, 64
    %v1529 = vpop.permute.xlu0 %1528
    %v1531 = vmul.f32 %v1513, %v1529
    %1533 = vrot.lane.b32.xlu0 %v1531, 32
    %v1534 = vpop.permute.xlu0 %1533
    %1536 = vst.msk [vmem:[%s573] sm:$0x3] %vm363, %v1534
    %v1537 = vld [vmem:[%s575] sm:$0x3]
    %v1538 = vsel %vm148, %v1534, 0
    %1540 = vmatprep.subr.mxu0 0.0
    %1541 = vmatpush1.msra.mxu0 %v43
    %1542 = vmatprep.subr.mxu0 0.0
    %1543 = vmatpush1.msra.mxu0 %v44
    %1544 = vmatprep.subr.mxu0 0.0
    %1545 = vmatpush1.msra.mxu0 %v45
    %1546 = vmatprep.subr.mxu0 0.0
    %1547 = vmatpush1.msra.mxu0 %v46
    %1548 = vmatprep.subr.mxu0 0.0
    %1549 = vmatpush1.msra.mxu0 0.0
    %1550 = vmatprep.subr.mxu0 0.0
    %1551 = vmatpush1.msra.mxu0 0.0
    %1552 = vmatprep.subr.mxu0 0.0
    %1553 = vmatpush1.msra.mxu0 0.0
    %1554 = vmatprep.subr.mxu0 0.0
    %1555 = vmatpush1.msra.mxu0 0.0
    %1556 = vmatprep.subr.mxu0 0.0
    %1557 = vmatpush1.msra.mxu0 0.0
    %1558 = vmatprep.subr.mxu0 0.0
    %1559 = vmatpush1.msra.mxu0 0.0
    %1560 = vmatprep.subr.mxu0 0.0
    %1561 = vmatpush1.msra.mxu0 0.0
    %1562 = vmatprep.subr.mxu0 0.0
    %1563 = vmatpush1.msra.mxu0 0.0
    %1564 = vmatprep.subr.mxu0 0.0
    %1565 = vmatpush1.msra.mxu0 0.0
    %1566 = vmatprep.subr.mxu0 0.0
    %1567 = vmatpush1.msra.mxu0 0.0
    %1568 = vmatprep.subr.mxu0 0.0
    %1569 = vmatpush1.msra.mxu0 0.0
    %1570 = vmatprep.subr.mxu0 0.0
    %1571 = vmatpush1.msra.mxu0 0.0
    %1572 = vmatprep.subr.mxu0 0.0
    %1573 = vmatpush1.msra.mxu0 0.0
    %1574 = vmatprep.subr.mxu0 0.0
    %1575 = vmatpush1.msra.mxu0 0.0
    %1576 = vmatprep.subr.mxu0 0.0
    %1577 = vmatpush1.msra.mxu0 0.0
    %1578 = vmatprep.subr.mxu0 0.0
    %1579 = vmatpush1.msra.mxu0 0.0
    %1580 = vmatprep.subr.mxu0 0.0
    %1581 = vmatpush1.msra.mxu0 0.0
    %1582 = vmatprep.subr.mxu0 0.0
    %1583 = vmatpush1.msra.mxu0 0.0
    %1584 = vmatprep.subr.mxu0 0.0
    %1585 = vmatpush1.msra.mxu0 0.0
    %1586 = vmatprep.subr.mxu0 0.0
    %1587 = vmatpush1.msra.mxu0 0.0
    %1588 = vmatprep.subr.mxu0 0.0
    %1589 = vmatpush1.msra.mxu0 0.0
    %1590 = vmatprep.subr.mxu0 0.0
    %1591 = vmatpush1.msra.mxu0 0.0
    %1592 = vmatprep.subr.mxu0 0.0
    %1593 = vmatpush1.msra.mxu0 0.0
    %1594 = vmatprep.subr.mxu0 0.0
    %1595 = vmatpush1.msra.mxu0 0.0
    %1596 = vmatprep.subr.mxu0 0.0
    %1597 = vmatpush1.msra.mxu0 0.0
    %1598 = vmatprep.subr.mxu0 0.0
    %1599 = vmatpush1.msra.mxu0 0.0
    %1600 = vmatprep.subr.mxu0 0.0
    %1601 = vmatpush1.msra.mxu0 0.0
    %1602 = vmatprep.subr.mxu0 0.0
    %1603 = vmatpush1.msra.mxu0 0.0
    %1604 = vmatprep.mubr.f32.mxu0 0.0
    %1605 = vmatmul.mubr.f32.gmra.mrb[0].mxu0 %v1538
    %v1606 = vpop.f32.mrb[0].mxu0
    %v1607 = vadd.f32 0.0, %v1606
    %v1608 = vpop.f32.mrb[0].mxu0
    %1609 = vdwg.mxu0
    %v1610 = vadd.f32 %v1537, %v1607
    %v1611 = vsub.f32 0.0, %v1610
    %v1612 = vmul.f32 %v1611, 1.442695
    %v1613 = vpow.pop %v1612
    %v1614 = vadd.f32 %v1613, 1.0
    %v1615 = vrcp.pop %v1614
    %v1616 = vmul.f32 1.0, %v1615
    %v1617 = vtanh.pop %v1610
    %v1618 = vmul.f32 %v1616, %v1525
    %1620 = vrot.lane.b32.xlu0 %v1617, 64
    %v1621 = vpop.permute.xlu0 %1620
    %v1623 = vmul.f32 %v1616, %v1621
    %1625 = vrot.lane.b32.xlu0 %v1623, 32
    %v1626 = vpop.permute.xlu0 %1625
    %v1628 = vadd.f32 %v1618, %v1626
    %v1629 = vtanh.pop %v1628
    %1631 = vrot.lane.b32.xlu0 %v1629, 64
    %v1632 = vpop.permute.xlu0 %1631
    %v1634 = vmul.f32 %v1616, %v1632
    %1636 = vrot.lane.b32.xlu0 %v1634, 32
    %v1637 = vpop.permute.xlu0 %1636
    %1639 = vst.msk [vmem:[%s678] sm:$0x3] %vm363, %v1637
    %v1640 = vld [vmem:[%s680] sm:$0x3]
    %v1641 = vsel %vm148, %v1637, 0
    %1643 = vmatprep.subr.mxu0 0.0
    %1644 = vmatpush1.msra.mxu0 %v43
    %1645 = vmatprep.subr.mxu0 0.0
    %1646 = vmatpush1.msra.mxu0 %v44
    %1647 = vmatprep.subr.mxu0 0.0
    %1648 = vmatpush1.msra.mxu0 %v45
    %1649 = vmatprep.subr.mxu0 0.0
    %1650 = vmatpush1.msra.mxu0 %v46
    %1651 = vmatprep.subr.mxu0 0.0
    %1652 = vmatpush1.msra.mxu0 0.0
    %1653 = vmatprep.subr.mxu0 0.0
    %1654 = vmatpush1.msra.mxu0 0.0
    %1655 = vmatprep.subr.mxu0 0.0
    %1656 = vmatpush1.msra.mxu0 0.0
    %1657 = vmatprep.subr.mxu0 0.0
    %1658 = vmatpush1.msra.mxu0 0.0
    %1659 = vmatprep.subr.mxu0 0.0
    %1660 = vmatpush1.msra.mxu0 0.0
    %1661 = vmatprep.subr.mxu0 0.0
    %1662 = vmatpush1.msra.mxu0 0.0
    %1663 = vmatprep.subr.mxu0 0.0
    %1664 = vmatpush1.msra.mxu0 0.0
    %1665 = vmatprep.subr.mxu0 0.0
    %1666 = vmatpush1.msra.mxu0 0.0
    %1667 = vmatprep.subr.mxu0 0.0
    %1668 = vmatpush1.msra.mxu0 0.0
    %1669 = vmatprep.subr.mxu0 0.0
    %1670 = vmatpush1.msra.mxu0 0.0
    %1671 = vmatprep.subr.mxu0 0.0
    %1672 = vmatpush1.msra.mxu0 0.0
    %1673 = vmatprep.subr.mxu0 0.0
    %1674 = vmatpush1.msra.mxu0 0.0
    %1675 = vmatprep.subr.mxu0 0.0
    %1676 = vmatpush1.msra.mxu0 0.0
    %1677 = vmatprep.subr.mxu0 0.0
    %1678 = vmatpush1.msra.mxu0 0.0
    %1679 = vmatprep.subr.mxu0 0.0
    %1680 = vmatpush1.msra.mxu0 0.0
    %1681 = vmatprep.subr.mxu0 0.0
    %1682 = vmatpush1.msra.mxu0 0.0
    %1683 = vmatprep.subr.mxu0 0.0
    %1684 = vmatpush1.msra.mxu0 0.0
    %1685 = vmatprep.subr.mxu0 0.0
    %1686 = vmatpush1.msra.mxu0 0.0
    %1687 = vmatprep.subr.mxu0 0.0
    %1688 = vmatpush1.msra.mxu0 0.0
    %1689 = vmatprep.subr.mxu0 0.0
    %1690 = vmatpush1.msra.mxu0 0.0
    %1691 = vmatprep.subr.mxu0 0.0
    %1692 = vmatpush1.msra.mxu0 0.0
    %1693 = vmatprep.subr.mxu0 0.0
    %1694 = vmatpush1.msra.mxu0 0.0
    %1695 = vmatprep.subr.mxu0 0.0
    %1696 = vmatpush1.msra.mxu0 0.0
    %1697 = vmatprep.subr.mxu0 0.0
    %1698 = vmatpush1.msra.mxu0 0.0
    %1699 = vmatprep.subr.mxu0 0.0
    %1700 = vmatpush1.msra.mxu0 0.0
    %1701 = vmatprep.subr.mxu0 0.0
    %1702 = vmatpush1.msra.mxu0 0.0
    %1703 = vmatprep.subr.mxu0 0.0
    %1704 = vmatpush1.msra.mxu0 0.0
    %1705 = vmatprep.subr.mxu0 0.0
    %1706 = vmatpush1.msra.mxu0 0.0
    %1707 = vmatprep.mubr.f32.mxu0 0.0
    %1708 = vmatmul.mubr.f32.gmra.mrb[0].mxu0 %v1641
    %v1709 = vpop.f32.mrb[0].mxu0
    %v1710 = vadd.f32 0.0, %v1709
    %v1711 = vpop.f32.mrb[0].mxu0
    %1712 = vdwg.mxu0
    %v1713 = vadd.f32 %v1640, %v1710
    %v1714 = vsub.f32 0.0, %v1713
    %v1715 = vmul.f32 %v1714, 1.442695
    %v1716 = vpow.pop %v1715
    %v1717 = vadd.f32 %v1716, 1.0
    %v1718 = vrcp.pop %v1717
    %v1719 = vmul.f32 1.0, %v1718
    %v1720 = vtanh.pop %v1713
    %v1721 = vmul.f32 %v1719, %v1628
    %1723 = vrot.lane.b32.xlu0 %v1720, 64
    %v1724 = vpop.permute.xlu0 %1723
    %v1726 = vmul.f32 %v1719, %v1724
    %1728 = vrot.lane.b32.xlu0 %v1726, 32
    %v1729 = vpop.permute.xlu0 %1728
    %v1731 = vadd.f32 %v1721, %v1729
    %v1732 = vtanh.pop %v1731
    %1734 = vrot.lane.b32.xlu0 %v1732, 64
    %v1735 = vpop.permute.xlu0 %1734
    %v1737 = vmul.f32 %v1719, %v1735
    %1739 = vrot.lane.b32.xlu0 %v1737, 32
    %v1740 = vpop.permute.xlu0 %1739
    %1742 = vst.msk [vmem:[%s783] sm:$0x3] %vm363, %v1740
    %v1743 = vld [vmem:[%s785] sm:$0x3]
    %v1744 = vsel %vm148, %v1740, 0
    %1746 = vmatprep.subr.mxu0 0.0
    %1747 = vmatpush1.msra.mxu0 %v43
    %1748 = vmatprep.subr.mxu0 0.0
    %1749 = vmatpush1.msra.mxu0 %v44
    %1750 = vmatprep.subr.mxu0 0.0
    %1751 = vmatpush1.msra.mxu0 %v45
    %1752 = vmatprep.subr.mxu0 0.0
    %1753 = vmatpush1.msra.mxu0 %v46
    %1754 = vmatprep.subr.mxu0 0.0
    %1755 = vmatpush1.msra.mxu0 0.0
    %1756 = vmatprep.subr.mxu0 0.0
    %1757 = vmatpush1.msra.mxu0 0.0
    %1758 = vmatprep.subr.mxu0 0.0
    %1759 = vmatpush1.msra.mxu0 0.0
    %1760 = vmatprep.subr.mxu0 0.0
    %1761 = vmatpush1.msra.mxu0 0.0
    %1762 = vmatprep.subr.mxu0 0.0
    %1763 = vmatpush1.msra.mxu0 0.0
    %1764 = vmatprep.subr.mxu0 0.0
    %1765 = vmatpush1.msra.mxu0 0.0
    %1766 = vmatprep.subr.mxu0 0.0
    %1767 = vmatpush1.msra.mxu0 0.0
    %1768 = vmatprep.subr.mxu0 0.0
    %1769 = vmatpush1.msra.mxu0 0.0
    %1770 = vmatprep.subr.mxu0 0.0
    %1771 = vmatpush1.msra.mxu0 0.0
    %1772 = vmatprep.subr.mxu0 0.0
    %1773 = vmatpush1.msra.mxu0 0.0
    %1774 = vmatprep.subr.mxu0 0.0
    %1775 = vmatpush1.msra.mxu0 0.0
    %1776 = vmatprep.subr.mxu0 0.0
    %1777 = vmatpush1.msra.mxu0 0.0
    %1778 = vmatprep.subr.mxu0 0.0
    %1779 = vmatpush1.msra.mxu0 0.0
    %1780 = vmatprep.subr.mxu0 0.0
    %1781 = vmatpush1.msra.mxu0 0.0
    %1782 = vmatprep.subr.mxu0 0.0
    %1783 = vmatpush1.msra.mxu0 0.0
    %1784 = vmatprep.subr.mxu0 0.0
    %1785 = vmatpush1.msra.mxu0 0.0
    %1786 = vmatprep.subr.mxu0 0.0
    %1787 = vmatpush1.msra.mxu0 0.0
    %1788 = vmatprep.subr.mxu0 0.0
    %1789 = vmatpush1.msra.mxu0 0.0
    %1790 = vmatprep.subr.mxu0 0.0
    %1791 = vmatpush1.msra.mxu0 0.0
    %1792 = vmatprep.subr.mxu0 0.0
    %1793 = vmatpush1.msra.mxu0 0.0
    %1794 = vmatprep.subr.mxu0 0.0
    %1795 = vmatpush1.msra.mxu0 0.0
    %1796 = vmatprep.subr.mxu0 0.0
    %1797 = vmatpush1.msra.mxu0 0.0
    %1798 = vmatprep.subr.mxu0 0.0
    %1799 = vmatpush1.msra.mxu0 0.0
    %1800 = vmatprep.subr.mxu0 0.0
    %1801 = vmatpush1.msra.mxu0 0.0
    %1802 = vmatprep.subr.mxu0 0.0
    %1803 = vmatpush1.msra.mxu0 0.0
    %1804 = vmatprep.subr.mxu0 0.0
    %1805 = vmatpush1.msra.mxu0 0.0
    %1806 = vmatprep.subr.mxu0 0.0
    %1807 = vmatpush1.msra.mxu0 0.0
    %1808 = vmatprep.subr.mxu0 0.0
    %1809 = vmatpush1.msra.mxu0 0.0
    %1810 = vmatprep.mubr.f32.mxu0 0.0
    %1811 = vmatmul.mubr.f32.gmra.mrb[0].mxu0 %v1744
    %v1812 = vpop.f32.mrb[0].mxu0
    %v1813 = vadd.f32 0.0, %v1812
    %v1814 = vpop.f32.mrb[0].mxu0
    %1815 = vdwg.mxu0
    %v1816 = vadd.f32 %v1743, %v1813
    %v1817 = vsub.f32 0.0, %v1816
    %v1818 = vmul.f32 %v1817, 1.442695
    %v1819 = vpow.pop %v1818
    %v1820 = vadd.f32 %v1819, 1.0
    %v1821 = vrcp.pop %v1820
    %v1822 = vmul.f32 1.0, %v1821
    %v1823 = vtanh.pop %v1816
    %v1824 = vmul.f32 %v1822, %v1731
    %1826 = vrot.lane.b32.xlu0 %v1823, 64
    %v1827 = vpop.permute.xlu0 %1826
    %v1829 = vmul.f32 %v1822, %v1827
    %1831 = vrot.lane.b32.xlu0 %v1829, 32
    %v1832 = vpop.permute.xlu0 %1831
    %v1834 = vadd.f32 %v1824, %v1832
    %v1835 = vtanh.pop %v1834
    %1837 = vrot.lane.b32.xlu0 %v1835, 64
    %v1838 = vpop.permute.xlu0 %1837
    %v1840 = vmul.f32 %v1822, %v1838
    %1842 = vrot.lane.b32.xlu0 %v1840, 32
    %v1843 = vpop.permute.xlu0 %1842
    %1845 = vst.msk [vmem:[%s888] sm:$0x3] %vm363, %v1843
    %v1846 = vld [vmem:[%s890] sm:$0x3]
    %v1847 = vsel %vm148, %v1843, 0
    %1849 = vmatprep.subr.mxu0 0.0
    %1850 = vmatpush1.msra.mxu0 %v43
    %1851 = vmatprep.subr.mxu0 0.0
    %1852 = vmatpush1.msra.mxu0 %v44
    %1853 = vmatprep.subr.mxu0 0.0
    %1854 = vmatpush1.msra.mxu0 %v45
    %1855 = vmatprep.subr.mxu0 0.0
    %1856 = vmatpush1.msra.mxu0 %v46
    %1857 = vmatprep.subr.mxu0 0.0
    %1858 = vmatpush1.msra.mxu0 0.0
    %1859 = vmatprep.subr.mxu0 0.0
    %1860 = vmatpush1.msra.mxu0 0.0
    %1861 = vmatprep.subr.mxu0 0.0
    %1862 = vmatpush1.msra.mxu0 0.0
    %1863 = vmatprep.subr.mxu0 0.0
    %1864 = vmatpush1.msra.mxu0 0.0
    %1865 = vmatprep.subr.mxu0 0.0
    %1866 = vmatpush1.msra.mxu0 0.0
    %1867 = vmatprep.subr.mxu0 0.0
    %1868 = vmatpush1.msra.mxu0 0.0
    %1869 = vmatprep.subr.mxu0 0.0
    %1870 = vmatpush1.msra.mxu0 0.0
    %1871 = vmatprep.subr.mxu0 0.0
    %1872 = vmatpush1.msra.mxu0 0.0
    %1873 = vmatprep.subr.mxu0 0.0
    %1874 = vmatpush1.msra.mxu0 0.0
    %1875 = vmatprep.subr.mxu0 0.0
    %1876 = vmatpush1.msra.mxu0 0.0
    %1877 = vmatprep.subr.mxu0 0.0
    %1878 = vmatpush1.msra.mxu0 0.0
    %1879 = vmatprep.subr.mxu0 0.0
    %1880 = vmatpush1.msra.mxu0 0.0
    %1881 = vmatprep.subr.mxu0 0.0
    %1882 = vmatpush1.msra.mxu0 0.0
    %1883 = vmatprep.subr.mxu0 0.0
    %1884 = vmatpush1.msra.mxu0 0.0
    %1885 = vmatprep.subr.mxu0 0.0
    %1886 = vmatpush1.msra.mxu0 0.0
    %1887 = vmatprep.subr.mxu0 0.0
    %1888 = vmatpush1.msra.mxu0 0.0
    %1889 = vmatprep.subr.mxu0 0.0
    %1890 = vmatpush1.msra.mxu0 0.0
    %1891 = vmatprep.subr.mxu0 0.0
    %1892 = vmatpush1.msra.mxu0 0.0
    %1893 = vmatprep.subr.mxu0 0.0
    %1894 = vmatpush1.msra.mxu0 0.0
    %1895 = vmatprep.subr.mxu0 0.0
    %1896 = vmatpush1.msra.mxu0 0.0
    %1897 = vmatprep.subr.mxu0 0.0
    %1898 = vmatpush1.msra.mxu0 0.0
    %1899 = vmatprep.subr.mxu0 0.0
    %1900 = vmatpush1.msra.mxu0 0.0
    %1901 = vmatprep.subr.mxu0 0.0
    %1902 = vmatpush1.msra.mxu0 0.0
    %1903 = vmatprep.subr.mxu0 0.0
    %1904 = vmatpush1.msra.mxu0 0.0
    %1905 = vmatprep.subr.mxu0 0.0
    %1906 = vmatpush1.msra.mxu0 0.0
    %1907 = vmatprep.subr.mxu0 0.0
    %1908 = vmatpush1.msra.mxu0 0.0
    %1909 = vmatprep.subr.mxu0 0.0
    %1910 = vmatpush1.msra.mxu0 0.0
    %1911 = vmatprep.subr.mxu0 0.0
    %1912 = vmatpush1.msra.mxu0 0.0
    %1913 = vmatprep.mubr.f32.mxu0 0.0
    %1914 = vmatmul.mubr.f32.gmra.mrb[0].mxu0 %v1847
    %v1915 = vpop.f32.mrb[0].mxu0
    %v1916 = vadd.f32 0.0, %v1915
    %v1917 = vpop.f32.mrb[0].mxu0
    %1918 = vdwg.mxu0
    %v1919 = vadd.f32 %v1846, %v1916
    %v1920 = vsub.f32 0.0, %v1919
    %v1921 = vmul.f32 %v1920, 1.442695
    %v1922 = vpow.pop %v1921
    %v1923 = vadd.f32 %v1922, 1.0
    %v1924 = vrcp.pop %v1923
    %v1925 = vmul.f32 1.0, %v1924
    %v1926 = vtanh.pop %v1919
    %v1927 = vmul.f32 %v1925, %v1834
    %1929 = vrot.lane.b32.xlu0 %v1926, 64
    %v1930 = vpop.permute.xlu0 %1929
    %v1932 = vmul.f32 %v1925, %v1930
    %1934 = vrot.lane.b32.xlu0 %v1932, 32
    %v1935 = vpop.permute.xlu0 %1934
    %v1937 = vadd.f32 %v1927, %v1935
    %v1938 = vtanh.pop %v1937
    %1940 = vrot.lane.b32.xlu0 %v1938, 64
    %v1941 = vpop.permute.xlu0 %1940
    %v1943 = vmul.f32 %v1925, %v1941
    %1945 = vrot.lane.b32.xlu0 %v1943, 32
    %v1946 = vpop.permute.xlu0 %1945
    %1948 = vst.msk [vmem:[%s993] sm:$0x3] %vm363, %v1946
    %v1949 = vld [vmem:[%s995] sm:$0x3]
    %v1950 = vsel %vm148, %v1946, 0
    %1952 = vmatprep.subr.mxu0 0.0
    %1953 = vmatpush1.msra.mxu0 %v43
    %1954 = vmatprep.subr.mxu0 0.0
    %1955 = vmatpush1.msra.mxu0 %v44
    %1956 = vmatprep.subr.mxu0 0.0
    %1957 = vmatpush1.msra.mxu0 %v45
    %1958 = vmatprep.subr.mxu0 0.0
    %1959 = vmatpush1.msra.mxu0 %v46
    %1960 = vmatprep.subr.mxu0 0.0
    %1961 = vmatpush1.msra.mxu0 0.0
    %1962 = vmatprep.subr.mxu0 0.0
    %1963 = vmatpush1.msra.mxu0 0.0
    %1964 = vmatprep.subr.mxu0 0.0
    %1965 = vmatpush1.msra.mxu0 0.0
    %1966 = vmatprep.subr.mxu0 0.0
    %1967 = vmatpush1.msra.mxu0 0.0
    %1968 = vmatprep.subr.mxu0 0.0
    %1969 = vmatpush1.msra.mxu0 0.0
    %1970 = vmatprep.subr.mxu0 0.0
    %1971 = vmatpush1.msra.mxu0 0.0
    %1972 = vmatprep.subr.mxu0 0.0
    %1973 = vmatpush1.msra.mxu0 0.0
    %1974 = vmatprep.subr.mxu0 0.0
    %1975 = vmatpush1.msra.mxu0 0.0
    %1976 = vmatprep.subr.mxu0 0.0
    %1977 = vmatpush1.msra.mxu0 0.0
    %1978 = vmatprep.subr.mxu0 0.0
    %1979 = vmatpush1.msra.mxu0 0.0
    %1980 = vmatprep.subr.mxu0 0.0
    %1981 = vmatpush1.msra.mxu0 0.0
    %1982 = vmatprep.subr.mxu0 0.0
    %1983 = vmatpush1.msra.mxu0 0.0
    %1984 = vmatprep.subr.mxu0 0.0
    %1985 = vmatpush1.msra.mxu0 0.0
    %1986 = vmatprep.subr.mxu0 0.0
    %1987 = vmatpush1.msra.mxu0 0.0
    %1988 = vmatprep.subr.mxu0 0.0
    %1989 = vmatpush1.msra.mxu0 0.0
    %1990 = vmatprep.subr.mxu0 0.0
    %1991 = vmatpush1.msra.mxu0 0.0
    %1992 = vmatprep.subr.mxu0 0.0
    %1993 = vmatpush1.msra.mxu0 0.0
    %1994 = vmatprep.subr.mxu0 0.0
    %1995 = vmatpush1.msra.mxu0 0.0
    %1996 = vmatprep.subr.mxu0 0.0
    %1997 = vmatpush1.msra.mxu0 0.0
    %1998 = vmatprep.subr.mxu0 0.0
    %1999 = vmatpush1.msra.mxu0 0.0
    %2000 = vmatprep.subr.mxu0 0.0
    %2001 = vmatpush1.msra.mxu0 0.0
    %2002 = vmatprep.subr.mxu0 0.0
    %2003 = vmatpush1.msra.mxu0 0.0
    %2004 = vmatprep.subr.mxu0 0.0
    %2005 = vmatpush1.msra.mxu0 0.0
    %2006 = vmatprep.subr.mxu0 0.0
    %2007 = vmatpush1.msra.mxu0 0.0
    %2008 = vmatprep.subr.mxu0 0.0
    %2009 = vmatpush1.msra.mxu0 0.0
    %2010 = vmatprep.subr.mxu0 0.0
    %2011 = vmatpush1.msra.mxu0 0.0
    %2012 = vmatprep.subr.mxu0 0.0
    %2013 = vmatpush1.msra.mxu0 0.0
    %2014 = vmatprep.subr.mxu0 0.0
    %2015 = vmatpush1.msra.mxu0 0.0
    %2016 = vmatprep.mubr.f32.mxu0 0.0
    %2017 = vmatmul.mubr.f32.gmra.mrb[0].mxu0 %v1950
    %v2018 = vpop.f32.mrb[0].mxu0
    %v2019 = vadd.f32 0.0, %v2018
    %v2020 = vpop.f32.mrb[0].mxu0
    %2021 = vdwg.mxu0
    %v2022 = vadd.f32 %v1949, %v2019
    %v2023 = vsub.f32 0.0, %v2022
    %v2024 = vmul.f32 %v2023, 1.442695
    %v2025 = vpow.pop %v2024
    %v2026 = vadd.f32 %v2025, 1.0
    %v2027 = vrcp.pop %v2026
    %v2028 = vmul.f32 1.0, %v2027
    %v2029 = vtanh.pop %v2022
    %v2030 = vmul.f32 %v2028, %v1937
    %2032 = vrot.lane.b32.xlu0 %v2029, 64
    %v2033 = vpop.permute.xlu0 %2032
    %v2035 = vmul.f32 %v2028, %v2033
    %2037 = vrot.lane.b32.xlu0 %v2035, 32
    %v2038 = vpop.permute.xlu0 %2037
    %v2040 = vadd.f32 %v2030, %v2038
    %v2041 = vtanh.pop %v2040
    %2043 = vrot.lane.b32.xlu0 %v2041, 64
    %v2044 = vpop.permute.xlu0 %2043
    %v2046 = vmul.f32 %v2028, %v2044
    %2048 = vrot.lane.b32.xlu0 %v2046, 32
    %v2049 = vpop.permute.xlu0 %2048
    %2051 = vst.msk [vmem:[%s1098] sm:$0x3] %vm363, %v2049
    %v2052 = vld [vmem:[#allocation3] sm:$0xff]
    %v2053 = vld [vmem:[#allocation3 + $0x8] sm:$0xff]
    %v2055 = vrot.slane %v2053, 6
    %v2057 = vrot.slane %v2053, 2
    %v2060 = vrot.slane %v2052, 6
    %v2062 = vrot.slane %v2052, 2
    %v2064 = vsel %vm1112, %v2055, %v2057
    %v2065 = vsel %vm1114, %v2064, %v2055
    %v2066 = vsel %vm1116, %v2065, %v2057
    %v2067 = vsel %vm1112, %v2060, %v2062
    %v2068 = vsel %vm1114, %v2067, %v2060
    %v2069 = vsel %vm1116, %v2068, %v2062
    %v2070 = vsel %vm66, %v2052, %v2066
    %v2071 = vsel %vm66, %v2053, %v2069
    %v2072 = vlaneseq
    %v2073 = vshrl.u32 %v2072, 7
    %v2074 = vsub.s32 0, %v2073
    %v2075 = vrot.slane %v52, %v2074
    %v2077 = vsel %vm148, %v2070, 0
    %v2080 = vsel %vm148, %v2071, 0
    %2082 = vmatprep.subr.mxu0 0.0
    %2083 = vmatpush1.msra.mxu0 %v48
    %2084 = vmatprep.subr.mxu0 0.0
    %2085 = vmatpush1.msra.mxu0 %v49
    %2086 = vmatprep.subr.mxu0 0.0
    %2087 = vmatpush1.msra.mxu0 %v50
    %2088 = vmatprep.subr.mxu0 0.0
    %2089 = vmatpush1.msra.mxu0 %v51
    %2090 = vmatprep.subr.mxu0 0.0
    %2091 = vmatpush1.msra.mxu0 0.0
    %2092 = vmatprep.subr.mxu0 0.0
    %2093 = vmatpush1.msra.mxu0 0.0
    %2094 = vmatprep.subr.mxu0 0.0
    %2095 = vmatpush1.msra.mxu0 0.0
    %2096 = vmatprep.subr.mxu0 0.0
    %2097 = vmatpush1.msra.mxu0 0.0
    %2098 = vmatprep.subr.mxu0 0.0
    %2099 = vmatpush1.msra.mxu0 0.0
    %2100 = vmatprep.subr.mxu0 0.0
    %2101 = vmatpush1.msra.mxu0 0.0
    %2102 = vmatprep.subr.mxu0 0.0
    %2103 = vmatpush1.msra.mxu0 0.0
    %2104 = vmatprep.subr.mxu0 0.0
    %2105 = vmatpush1.msra.mxu0 0.0
    %2106 = vmatprep.subr.mxu0 0.0
    %2107 = vmatpush1.msra.mxu0 0.0
    %2108 = vmatprep.subr.mxu0 0.0
    %2109 = vmatpush1.msra.mxu0 0.0
    %2110 = vmatprep.subr.mxu0 0.0
    %2111 = vmatpush1.msra.mxu0 0.0
    %2112 = vmatprep.subr.mxu0 0.0
    %2113 = vmatpush1.msra.mxu0 0.0
    %2114 = vmatprep.subr.mxu0 0.0
    %2115 = vmatpush1.msra.mxu0 0.0
    %2116 = vmatprep.subr.mxu0 0.0
    %2117 = vmatpush1.msra.mxu0 0.0
    %2118 = vmatprep.subr.mxu0 0.0
    %2119 = vmatpush1.msra.mxu0 0.0
    %2120 = vmatprep.subr.mxu0 0.0
    %2121 = vmatpush1.msra.mxu0 0.0
    %2122 = vmatprep.subr.mxu0 0.0
    %2123 = vmatpush1.msra.mxu0 0.0
    %2124 = vmatprep.subr.mxu0 0.0
    %2125 = vmatpush1.msra.mxu0 0.0
    %2126 = vmatprep.subr.mxu0 0.0
    %2127 = vmatpush1.msra.mxu0 0.0
    %2128 = vmatprep.subr.mxu0 0.0
    %2129 = vmatpush1.msra.mxu0 0.0
    %2130 = vmatprep.subr.mxu0 0.0
    %2131 = vmatpush1.msra.mxu0 0.0
    %2132 = vmatprep.subr.mxu0 0.0
    %2133 = vmatpush1.msra.mxu0 0.0
    %2134 = vmatprep.subr.mxu0 0.0
    %2135 = vmatpush1.msra.mxu0 0.0
    %2136 = vmatprep.subr.mxu0 0.0
    %2137 = vmatpush1.msra.mxu0 0.0
    %2138 = vmatprep.subr.mxu0 0.0
    %2139 = vmatpush1.msra.mxu0 0.0
    %2140 = vmatprep.subr.mxu0 0.0
    %2141 = vmatpush1.msra.mxu0 0.0
    %2142 = vmatprep.subr.mxu0 0.0
    %2143 = vmatpush1.msra.mxu0 0.0
    %2144 = vmatprep.subr.mxu0 0.0
    %2145 = vmatpush1.msra.mxu0 0.0
    %2146 = vmatprep.mubr.f32.mxu0 0.0
    %2147 = vmatmul.mubr.f32.gmra.mrb[0].mxu0 %v2077
    %v2148 = vpop.f32.mrb[0].mxu0
    %v2149 = vadd.f32 %v2075, %v2148
    %v2150 = vpop.f32.mrb[0].mxu0
    %2151 = vmatprep.mubr.f32.mxu0 0.0
    %2152 = vmatmul.mubr.f32.gmra.mrb[0].mxu0 %v2080
    %v2153 = vpop.f32.mrb[0].mxu0
    %v2154 = vadd.f32 %v2075, %v2153
    %v2155 = vpop.f32.mrb[0].mxu0
    %2156 = vdwg.mxu0
    %v2157 = vmax.f32 %v2149, 0.0
    %v2158 = vmax.f32 %v2154, 0.0
    %v2159 = vlaneseq
    %v2160 = vshrl.u32 %v2159, 7
    %v2161 = vsub.s32 0, %v2160
    %v2162 = vrot.slane %v53, %v2161
    %v2163 = vmul.f32 %v2157, %v2162
    %v2164 = vmul.f32 %v2158, %v2162
    %vm2165 = vcmask 523264
    %v2166 = vsel %vm2165, %v2163, 0.0
    %2167 = vadd.xlane.f32.xlu0 %v2166
    %v2168 = vpop.xlane.xlu0 %2167
    %v2169 = vsel %vm2165, %v2164, 0.0
    %2170 = vadd.xlane.f32.xlu0 %v2169
    %v2171 = vpop.xlane.xlu0 %2170
    %v2172 = vlaneseq
    %v2173 = vshrl.u32 %v2172, 7
    %v2174 = vsub.s32 0, %v2173
    %v2175 = vrot.slane %v55, %v2174
    %v2176 = vadd.f32 %v2168, %v2175
    %v2177 = vadd.f32 %v2171, %v2175
    %v2179 = vrot.slane %v2176, 2
    %v2181 = vmax.f32 %v2176, %v2179
    %v2182 = vrot.slane %v2176, 4
    %v2184 = vmax.f32 %v2181, %v2182
    %v2185 = vrot.slane %v2176, 6
    %v2187 = vmax.f32 %v2184, %v2185
    %v2188 = vmax.f32 %v2187, %v2177
    %v2190 = vrot.slane %v2177, 2
    %v2192 = vmax.f32 %v2188, %v2190
    %v2193 = vrot.slane %v2177, 4
    %v2195 = vmax.f32 %v2192, %v2193
    %v2196 = vrot.slane %v2177, 6
    %v2198 = vmax.f32 %v2195, %v2196
    %v2199 = vsub.f32 %v2176, %v2198
    %v2200 = vmul.f32 %v2199, 1.442695
    %v2201 = vpow.pop %v2200
    %v2202 = vadd.f32 %v2201, 0.0
    %2204 = vset.pattern.permute.xlu0 0
    %2205 = vperm.xlu0 %2204, %v2201
    %v2206 = vpop.permute.xlu0 %2205
    %v2208 = vmul.f32 %v2206, %v2070
    %v2209 = vadd.f32 %v2208, 0.0
    %v2211 = vrot.slane %v2198, 6
    %v2213 = vsub.f32 %v2176, %v2211
    %v2214 = vmul.f32 %v2213, 1.442695
    %v2215 = vpow.pop %v2214
    %v2217 = vrot.slane %v2215, 2
    %v2219 = vadd.f32 %v2202, %v2217
    %2220 = vset.pattern.permute.xlu0 0
    %2221 = vperm.xlu0 %2220, %v2215
    %v2222 = vpop.permute.xlu0 %2221
    %v2224 = vmul.f32 %v2222, %v2070
    %v2226 = vrot.slane %v2224, 2
    %v2228 = vadd.f32 %v2209, %v2226
    %v2229 = vrot.slane %v2198, 4
    %v2231 = vsub.f32 %v2176, %v2229
    %v2232 = vmul.f32 %v2231, 1.442695
    %v2233 = vpow.pop %v2232
    %v2235 = vrot.slane %v2233, 4
    %v2237 = vadd.f32 %v2219, %v2235
    %2238 = vset.pattern.permute.xlu0 0
    %2239 = vperm.xlu0 %2238, %v2233
    %v2240 = vpop.permute.xlu0 %2239
    %v2242 = vmul.f32 %v2240, %v2070
    %v2244 = vrot.slane %v2242, 4
    %v2246 = vadd.f32 %v2228, %v2244
    %v2247 = vrot.slane %v2198, 2
    %v2249 = vsub.f32 %v2176, %v2247
    %v2250 = vmul.f32 %v2249, 1.442695
    %v2251 = vpow.pop %v2250
    %v2253 = vrot.slane %v2251, 6
    %v2255 = vadd.f32 %v2237, %v2253
    %2256 = vset.pattern.permute.xlu0 0
    %2257 = vperm.xlu0 %2256, %v2251
    %v2258 = vpop.permute.xlu0 %2257
    %v2260 = vmul.f32 %v2258, %v2070
    %v2262 = vrot.slane %v2260, 6
    %v2264 = vadd.f32 %v2246, %v2262
    %v2265 = vsub.f32 %v2177, %v2198
    %v2266 = vmul.f32 %v2265, 1.442695
    %v2267 = vpow.pop %v2266
    %v2268 = vadd.f32 %v2255, %v2267
    %2270 = vset.pattern.permute.xlu0 0
    %2271 = vperm.xlu0 %2270, %v2267
    %v2272 = vpop.permute.xlu0 %2271
    %v2274 = vmul.f32 %v2272, %v2071
    %v2275 = vadd.f32 %v2264, %v2274
    %v2276 = vsub.f32 %v2177, %v2211
    %v2277 = vmul.f32 %v2276, 1.442695
    %v2278 = vpow.pop %v2277
    %v2280 = vrot.slane %v2278, 2
    %v2282 = vadd.f32 %v2268, %v2280
    %2283 = vset.pattern.permute.xlu0 0
    %2284 = vperm.xlu0 %2283, %v2278
    %v2285 = vpop.permute.xlu0 %2284
    %v2287 = vmul.f32 %v2285, %v2071
    %v2289 = vrot.slane %v2287, 2
    %v2291 = vadd.f32 %v2275, %v2289
    %v2292 = vsub.f32 %v2177, %v2229
    %v2293 = vmul.f32 %v2292, 1.442695
    %v2294 = vpow.pop %v2293
    %v2296 = vrot.slane %v2294, 4
    %v2298 = vadd.f32 %v2282, %v2296
    %2299 = vset.pattern.permute.xlu0 0
    %2300 = vperm.xlu0 %2299, %v2294
    %v2301 = vpop.permute.xlu0 %2300
    %v2303 = vmul.f32 %v2301, %v2071
    %v2305 = vrot.slane %v2303, 4
    %v2307 = vadd.f32 %v2291, %v2305
    %v2308 = vsub.f32 %v2177, %v2247
    %v2309 = vmul.f32 %v2308, 1.442695
    %v2310 = vpow.pop %v2309
    %v2312 = vrot.slane %v2310, 6
    %v2314 = vadd.f32 %v2298, %v2312
    %2315 = vset.pattern.permute.xlu0 0
    %2316 = vperm.xlu0 %2315, %v2310
    %v2317 = vpop.permute.xlu0 %2316
    %v2319 = vmul.f32 %v2317, %v2071
    %v2321 = vrot.slane %v2319, 6
    %v2323 = vadd.f32 %v2307, %v2321
    %2325 = vset.pattern.permute.xlu0 0
    %2326 = vperm.xlu0 %2325, %v2314
    %v2327 = vpop.permute.xlu0 %2326
    %v2329 = vrcp.pop %v2327
    %v2330 = vmul.f32 %v2323, %v2329
    %v2331 = vlaneseq
    %v2332 = vshrl.u32 %v2331, 7
    %v2333 = vsub.s32 0, %v2332
    %v2334 = vrot.slane %v54, %v2333
    %v2335 = vmul.f32 %v2330, %v2334
    %v2336 = vsel %vm363, %v2335, 0.0
    %2337 = vadd.xlane.f32.xlu0 %v2336
    %v2338 = vpop.xlane.xlu0 %2337
    %v2339 = vadd.f32 %v2338, %v2175
    %v2340 = vsub.f32 0.0, %v2339
    %v2341 = vmul.f32 %v2340, 1.442695
    %v2342 = vpow.pop %v2341
    %v2343 = vadd.f32 %v2342, 1.0
    %v2344 = vrcp.pop %v2343
    %v2345 = vmul.f32 1.0, %v2344
    %2347 = vrot.lane.b32.xlu0 %v2345, 127
    %v2348 = vpop.permute.xlu0 %2347
    %vm2350 = vcmask 1024
    %2351 = vst.msk [vmem:[%s2] sm:$0x3] %vm2350, %v2348
    // Predicated region
    $region14: #{xlsr_metric_predictor_full.1} parent=1 // pred_check
      _
    $region15: #{xlsr_metric_predictor_full.1} parent=1 // pred_check_branch
      %2353 = sbr.rel (0) target = $region17
    $region16: #{xlsr_metric_predictor_full.1} parent=1 // pred_region
      _
    $region17: #{xlsr_metric_predictor_full.1} parent=1 // pred_fallthru
      _
    // Predicated region
    $region18: #{xlsr_metric_predictor_full.1} parent=1 // pred_check
      _
    $region19: #{xlsr_metric_predictor_full.1} parent=1 // pred_check_branch
      %2355 = sbr.rel (0) target = $region21
    $region20: #{xlsr_metric_predictor_full.1} parent=1 // pred_region
      _
    $region21: #{xlsr_metric_predictor_full.1} parent=1 // pred_fallthru
      _
    // Predicated region
    $region22: #{xlsr_metric_predictor_full.1} parent=1 // pred_check
      _
    $region23: #{xlsr_metric_predictor_full.1} parent=1 // pred_check_branch
      %2357 = sbr.rel (0) target = $region25
    $region24: #{xlsr_metric_predictor_full.1} parent=1 // pred_region
      _
    $region25: #{xlsr_metric_predictor_full.1} parent=1 // pred_fallthru
      _
    // Predicated region
    $region26: #{xlsr_metric_predictor_full.1} parent=1 // pred_check
      _
    $region27: #{xlsr_metric_predictor_full.1} parent=1 // pred_check_branch
      %2359 = sbr.rel (0) target = $region29
    $region28: #{xlsr_metric_predictor_full.1} parent=1 // pred_region
      _
    $region29: #{xlsr_metric_predictor_full.1} parent=1 // pred_fallthru
      _
    %2360 = vsyncpa [#allocation5], 1

</llo_original>
